<compile_context>
chip_gen: v7x
topology: tpu7x:2x2x1
jax: 0.10.0
libtpu: 0.0.40
codegen_flags: <defaults>
</compile_context>

<pallas_src>
import functools

import jax
import jax.numpy as jnp
from jax.experimental import pallas as pl
from jax.experimental.pallas import tpu as pltpu

LEAKY_SLOPE = 0.01        # nn.LeakyReLU default
BN_EPS = 1e-5             # nn.BatchNorm1d default
HIDDEN = (500, 400, 300, 200, 100, 50)
LANE = 128
MAX_TILE = 512            # batch tile (multiple of 256 for v6e/v7x MXU M dim)
NEG_INF = -1e30


def _round_up(n, m):
    return (n + m - 1) // m * m


def _geometry(input_size, output_size):
    dims = (input_size,) + HIDDEN + (output_size,)
    pads = tuple(_round_up(d, LANE) for d in dims)
    row_offs, off = [], 0
    for l in range(len(dims) - 1):
        row_offs.append(off)
        off += pads[l]
    return dims, pads, tuple(row_offs), off   # off = total weight-slab rows


def _make_kernel(tb, batch, pads, row_offs):
    n_layers = len(pads) - 1
    needs_mask = (batch % tb) != 0   # only the last tile may contain pad rows

    def kernel(x_ref, w_ref, v_ref, o_ref):
        if needs_mask:
            rows_left = batch - pl.program_id(0) * tb
            row_ids = jax.lax.broadcasted_iota(jnp.int32, (tb, 1), 0)
            mask = (row_ids < rows_left).astype(jnp.float32)
            inv_n = 1.0 / jnp.minimum(rows_left, tb).astype(jnp.float32)
        else:
            mask = None
            inv_n = 1.0 / tb

        h = x_ref[...].astype(jnp.float32)

        # 6 x (Linear -> LeakyReLU -> BatchNorm1d with batch statistics)
        for l in range(n_layers - 1):
            din, dout = pads[l], pads[l + 1]
            r0 = row_offs[l]
            w = w_ref[r0:r0 + din, 0:dout]                    # bf16 (din, dout)
            b = v_ref[3 * l + 0:3 * l + 1, 0:dout]            # f32 (1, dout)
            g = v_ref[3 * l + 1:3 * l + 2, 0:dout]            # gamma
            beta = v_ref[3 * l + 2:3 * l + 3, 0:dout]         # beta

            h = jnp.dot(h.astype(jnp.bfloat16), w,
                        preferred_element_type=jnp.float32) + b
            h = jnp.where(h > 0, h, LEAKY_SLOPE * h)          # LeakyReLU (f32)

            hm = h if mask is None else h * mask              # exclude pad rows
            mean = jnp.sum(hm, axis=0, keepdims=True) * inv_n
            ex2 = jnp.sum(hm * hm, axis=0, keepdims=True) * inv_n
            var = jnp.maximum(ex2 - mean * mean, 0.0)         # biased variance
            scale = g * jax.lax.rsqrt(var + BN_EPS)           # fused BN affine
            shift = beta - mean * scale
            h = h * scale + shift

        # final Linear -> LogSoftmax (padded logit columns carry -1e30 bias)
        l = n_layers - 1
        din, dout = pads[l], pads[l + 1]
        r0 = row_offs[l]
        w = w_ref[r0:r0 + din, 0:dout]
        b = v_ref[3 * l + 0:3 * l + 1, 0:dout]
        logits = jnp.dot(h.astype(jnp.bfloat16), w,
                         preferred_element_type=jnp.float32) + b
        m = jnp.max(logits, axis=-1, keepdims=True)
        lse = jnp.log(jnp.sum(jnp.exp(logits - m), axis=-1, keepdims=True)) + m
        o_ref[...] = (logits - lse).astype(o_ref.dtype)

    return kernel


@functools.partial(jax.jit, static_argnames=("output_size",))
def image_classifier_forward(x, w_slab, vec_slab, *, output_size):
    batch, input_size = x.shape
    _, pads, row_offs, _ = _geometry(input_size, output_size)
    in_pad, out_pad = pads[0], pads[-1]

    tb = min(_round_up(batch, 8), MAX_TILE)
    pb = _round_up(batch, tb)
    xp = jnp.pad(x.astype(jnp.float32),
                 ((0, pb - batch), (0, in_pad - input_size)))

    kernel = _make_kernel(tb, batch, pads, row_offs)
    out = pl.pallas_call(
        kernel,
        out_shape=jax.ShapeDtypeStruct((pb, out_pad), jnp.float32),
        grid=(pb // tb,),
        in_specs=[
            pl.BlockSpec((tb, in_pad), lambda i: (i, 0)),      # batch tile of x
            pl.BlockSpec(w_slab.shape, lambda i: (0, 0)),      # VMEM-resident
            pl.BlockSpec(vec_slab.shape, lambda i: (0, 0)),    # VMEM-resident
        ],
        out_specs=pl.BlockSpec((tb, out_pad), lambda i: (i, 0)),
        compiler_params=pltpu.CompilerParams(
            dimension_semantics=("parallel",)),
    )(xp, w_slab, vec_slab)
    return out[:batch, :output_size]


def init_params(key, input_size, output_size):
    """nn.Linear / nn.BatchNorm1d default init, packed into padded slabs.

    Returns:
      w_slab:   (sum_l pad(in_l), 512) bfloat16 — all 7 weights stored as
                (in, out), row-stacked, zero padded to lane multiples.
      vec_slab: (round_up(3*7, 8), 512) float32 — rows 3l/3l+1/3l+2 hold
                bias/gamma/beta of layer l; the last layer's padded logit bias
                columns are -1e30 so logsumexp ignores them.
    """
    dims, pads, row_offs, total_rows = _geometry(input_size, output_size)
    n_layers = len(dims) - 1
    maxw = max(pads[1:])

    w_slab = jnp.zeros((total_rows, maxw), jnp.float32)
    vec = jnp.zeros((_round_up(3 * n_layers, 8), maxw), jnp.float32)

    for l in range(n_layers):
        fan_in, fan_out = dims[l], dims[l + 1]
        key, kw, kb = jax.random.split(key, 3)
        bound = 1.0 / (fan_in ** 0.5)
        w = jax.random.uniform(kw, (fan_in, fan_out), jnp.float32, -bound, bound)
        b = jax.random.uniform(kb, (fan_out,), jnp.float32, -bound, bound)
        w_slab = w_slab.at[row_offs[l]:row_offs[l] + fan_in, :fan_out].set(w)
        vec = vec.at[3 * l, :fan_out].set(b)
        if l < n_layers - 1:
            vec = vec.at[3 * l + 1, :].set(1.0)       # gamma = 1 (beta row = 0)
        else:
            vec = vec.at[3 * l, fan_out:pads[l + 1]].set(NEG_INF)  # mask pads
    return w_slab.astype(jnp.bfloat16), vec


def reference_forward(x, w_slab, vec_slab, input_size, output_size):
    """Pure-JAX f32 reference (same bf16-rounded weights, unpadded math)."""
    dims, pads, row_offs, _ = _geometry(input_size, output_size)
    n_layers = len(dims) - 1
    h = x.astype(jnp.float32)
    for l in range(n_layers):
        fan_in, fan_out = dims[l], dims[l + 1]
        w = w_slab[row_offs[l]:row_offs[l] + fan_in, :fan_out].astype(jnp.float32)
        b = vec_slab[3 * l, :fan_out]
        h = h @ w + b
        if l < n_layers - 1:
            h = jnp.where(h > 0, h, LEAKY_SLOPE * h)
            mean = jnp.mean(h, axis=0, keepdims=True)
            var = jnp.mean((h - mean) ** 2, axis=0, keepdims=True)
            g = vec_slab[3 * l + 1, :fan_out]
            beta = vec_slab[3 * l + 2, :fan_out]
            h = (h - mean) * jax.lax.rsqrt(var + BN_EPS) * g + beta
    return jax.nn.log_softmax(h, axis=-1)


if __name__ == "__main__":
    input_size = 64
    output_size = 10
    batch = 8

    key = jax.random.PRNGKey(0)
    key, kx = jax.random.split(key)
    x = jax.random.normal(kx, (batch, input_size), jnp.float32)

    w_slab, vec_slab = init_params(key, input_size, output_size)

    y = image_classifier_forward(x, w_slab, vec_slab, output_size=output_size)
    jax.block_until_ready(y)

    assert y.shape == (batch, output_size)
    assert bool(jnp.all(jnp.isfinite(y)))
    # log-softmax rows exponentiate-sum to 1
    assert jnp.allclose(jnp.sum(jnp.exp(y), axis=-1), 1.0, atol=1e-4)
    # matches the pure-JAX reference (bf16 activations in the matmuls => loose tol)
    ref = reference_forward(x, w_slab, vec_slab, input_size, output_size)
    assert jnp.allclose(y, ref, atol=5e-2), float(jnp.max(jnp.abs(y - ref)))

    print("KERNEL_OK")
</pallas_src>

<mosaic_0001>
module attributes {stable_mosaic.version = 11 : i64} {
  func.func @kernel(%arg0: i32, %arg1: memref<8x128xf32, #tpu.memory_space<vmem>>, %arg2: memref<2048x512xbf16, #tpu.memory_space<vmem>>, %arg3: memref<24x512xf32, #tpu.memory_space<vmem>>, %arg4: memref<8x128xf32, #tpu.memory_space<vmem>>) attributes {dimension_semantics = [#tpu.dimension_semantics<parallel>], iteration_bounds = array<i64: 1>, scalar_prefetch = 0 : i64, scratch_operands = 0 : i64, tpu.core_type = #tpu.core_type<tc>, window_params = [{transform_indices = @transform_0, window_bounds = array<i64: 8, 128>}, {pipeline_mode = #tpu.pipeline_mode<synchronous>, transform_indices = @transform_1, window_bounds = array<i64: 2048, 512>}, {pipeline_mode = #tpu.pipeline_mode<synchronous>, transform_indices = @transform_2, window_bounds = array<i64: 24, 512>}, {transform_indices = @transform_3, window_bounds = array<i64: 8, 128>}]} {
    %c0 = arith.constant 0 : index
    %c0_0 = arith.constant 0 : index
    %0 = vector.load %arg1[%c0, %c0_0] : memref<8x128xf32, #tpu.memory_space<vmem>>, vector<8x128xf32>
    %c0_1 = arith.constant 0 : index
    %c0_2 = arith.constant 0 : index
    %1 = vector.load %arg2[%c0_1, %c0_2] : memref<2048x512xbf16, #tpu.memory_space<vmem>>, vector<128x512xbf16>
    %c0_3 = arith.constant 0 : index
    %c0_4 = arith.constant 0 : index
    %2 = vector.load %arg3[%c0_3, %c0_4] : memref<24x512xf32, #tpu.memory_space<vmem>>, vector<1x512xf32>
    %c1 = arith.constant 1 : index
    %c0_5 = arith.constant 0 : index
    %3 = vector.load %arg3[%c1, %c0_5] : memref<24x512xf32, #tpu.memory_space<vmem>>, vector<1x512xf32>
    %c2 = arith.constant 2 : index
    %c0_6 = arith.constant 0 : index
    %4 = vector.load %arg3[%c2, %c0_6] : memref<24x512xf32, #tpu.memory_space<vmem>>, vector<1x512xf32>
    %5 = arith.truncf %0 : vector<8x128xf32> to vector<8x128xbf16>
    %cst = arith.constant dense<0.000000e+00> : vector<8x512xf32>
    %6 = tpu.matmul %5, %1, %cst {dimension_numbers = #tpu.dot_dimension_numbers<[1], [0], [0], [1], [0, 0, 1, 1], [], []>} : vector<8x128xbf16>, vector<128x512xbf16>, vector<8x512xf32> -> vector<8x512xf32>
    %7 = vector.broadcast %2 : vector<1x512xf32> to vector<8x512xf32>
    %8 = arith.addf %6, %7 : vector<8x512xf32>
    %cst_7 = arith.constant 0.000000e+00 : f32
    %9 = vector.broadcast %cst_7 : f32 to vector<8x512xf32>
    %10 = arith.cmpf ogt, %8, %9 : vector<8x512xf32>
    %cst_8 = arith.constant 0.00999999977 : f32
    %11 = vector.broadcast %cst_8 : f32 to vector<8x512xf32>
    %12 = arith.mulf %11, %8 : vector<8x512xf32>
    %13 = arith.select %10, %8, %12 : vector<8x512xi1>, vector<8x512xf32>
    %cst_9 = arith.constant dense<0.000000e+00> : vector<512xf32>
    %14 = vector.multi_reduction <add>, %13, %cst_9 [0] : vector<8x512xf32> to vector<512xf32>
    %15 = vector.shape_cast %14 : vector<512xf32> to vector<1x512xf32>
    %cst_10 = arith.constant 1.250000e-01 : f32
    %16 = vector.broadcast %cst_10 : f32 to vector<1x512xf32>
    %17 = arith.mulf %15, %16 : vector<1x512xf32>
    %18 = arith.mulf %13, %13 : vector<8x512xf32>
    %cst_11 = arith.constant dense<0.000000e+00> : vector<512xf32>
    %19 = vector.multi_reduction <add>, %18, %cst_11 [0] : vector<8x512xf32> to vector<512xf32>
    %20 = vector.shape_cast %19 : vector<512xf32> to vector<1x512xf32>
    %cst_12 = arith.constant 1.250000e-01 : f32
    %21 = vector.broadcast %cst_12 : f32 to vector<1x512xf32>
    %22 = arith.mulf %20, %21 : vector<1x512xf32>
    %23 = arith.mulf %17, %17 : vector<1x512xf32>
    %24 = arith.subf %22, %23 : vector<1x512xf32>
    %cst_13 = arith.constant 0.000000e+00 : f32
    %25 = vector.broadcast %cst_13 : f32 to vector<1x512xf32>
    %26 = arith.maximumf %24, %25 : vector<1x512xf32>
    %cst_14 = arith.constant 9.99999974E-6 : f32
    %27 = vector.broadcast %cst_14 : f32 to vector<1x512xf32>
    %28 = arith.addf %26, %27 : vector<1x512xf32>
    %29 = math.rsqrt %28 : vector<1x512xf32>
    %30 = arith.mulf %3, %29 : vector<1x512xf32>
    %31 = arith.mulf %17, %30 : vector<1x512xf32>
    %32 = arith.subf %4, %31 : vector<1x512xf32>
    %33 = vector.broadcast %30 : vector<1x512xf32> to vector<8x512xf32>
    %34 = arith.mulf %13, %33 : vector<8x512xf32>
    %35 = vector.broadcast %32 : vector<1x512xf32> to vector<8x512xf32>
    %36 = arith.addf %34, %35 : vector<8x512xf32>
    %c128 = arith.constant 128 : index
    %c0_15 = arith.constant 0 : index
    %37 = vector.load %arg2[%c128, %c0_15] : memref<2048x512xbf16, #tpu.memory_space<vmem>>, vector<512x512xbf16>
    %c3 = arith.constant 3 : index
    %c0_16 = arith.constant 0 : index
    %38 = vector.load %arg3[%c3, %c0_16] : memref<24x512xf32, #tpu.memory_space<vmem>>, vector<1x512xf32>
    %c4 = arith.constant 4 : index
    %c0_17 = arith.constant 0 : index
    %39 = vector.load %arg3[%c4, %c0_17] : memref<24x512xf32, #tpu.memory_space<vmem>>, vector<1x512xf32>
    %c5 = arith.constant 5 : index
    %c0_18 = arith.constant 0 : index
    %40 = vector.load %arg3[%c5, %c0_18] : memref<24x512xf32, #tpu.memory_space<vmem>>, vector<1x512xf32>
    %41 = arith.truncf %36 : vector<8x512xf32> to vector<8x512xbf16>
    %cst_19 = arith.constant dense<0.000000e+00> : vector<8x512xf32>
    %42 = tpu.matmul %41, %37, %cst_19 {dimension_numbers = #tpu.dot_dimension_numbers<[1], [0], [0], [1], [0, 0, 1, 1], [], []>} : vector<8x512xbf16>, vector<512x512xbf16>, vector<8x512xf32> -> vector<8x512xf32>
    %43 = vector.broadcast %38 : vector<1x512xf32> to vector<8x512xf32>
    %44 = arith.addf %42, %43 : vector<8x512xf32>
    %cst_20 = arith.constant 0.000000e+00 : f32
    %45 = vector.broadcast %cst_20 : f32 to vector<8x512xf32>
    %46 = arith.cmpf ogt, %44, %45 : vector<8x512xf32>
    %cst_21 = arith.constant 0.00999999977 : f32
    %47 = vector.broadcast %cst_21 : f32 to vector<8x512xf32>
    %48 = arith.mulf %47, %44 : vector<8x512xf32>
    %49 = arith.select %46, %44, %48 : vector<8x512xi1>, vector<8x512xf32>
    %cst_22 = arith.constant dense<0.000000e+00> : vector<512xf32>
    %50 = vector.multi_reduction <add>, %49, %cst_22 [0] : vector<8x512xf32> to vector<512xf32>
    %51 = vector.shape_cast %50 : vector<512xf32> to vector<1x512xf32>
    %cst_23 = arith.constant 1.250000e-01 : f32
    %52 = vector.broadcast %cst_23 : f32 to vector<1x512xf32>
    %53 = arith.mulf %51, %52 : vector<1x512xf32>
    %54 = arith.mulf %49, %49 : vector<8x512xf32>
    %cst_24 = arith.constant dense<0.000000e+00> : vector<512xf32>
    %55 = vector.multi_reduction <add>, %54, %cst_24 [0] : vector<8x512xf32> to vector<512xf32>
    %56 = vector.shape_cast %55 : vector<512xf32> to vector<1x512xf32>
    %cst_25 = arith.constant 1.250000e-01 : f32
    %57 = vector.broadcast %cst_25 : f32 to vector<1x512xf32>
    %58 = arith.mulf %56, %57 : vector<1x512xf32>
    %59 = arith.mulf %53, %53 : vector<1x512xf32>
    %60 = arith.subf %58, %59 : vector<1x512xf32>
    %cst_26 = arith.constant 0.000000e+00 : f32
    %61 = vector.broadcast %cst_26 : f32 to vector<1x512xf32>
    %62 = arith.maximumf %60, %61 : vector<1x512xf32>
    %cst_27 = arith.constant 9.99999974E-6 : f32
    %63 = vector.broadcast %cst_27 : f32 to vector<1x512xf32>
    %64 = arith.addf %62, %63 : vector<1x512xf32>
    %65 = math.rsqrt %64 : vector<1x512xf32>
    %66 = arith.mulf %39, %65 : vector<1x512xf32>
    %67 = arith.mulf %53, %66 : vector<1x512xf32>
    %68 = arith.subf %40, %67 : vector<1x512xf32>
    %69 = vector.broadcast %66 : vector<1x512xf32> to vector<8x512xf32>
    %70 = arith.mulf %49, %69 : vector<8x512xf32>
    %71 = vector.broadcast %68 : vector<1x512xf32> to vector<8x512xf32>
    %72 = arith.addf %70, %71 : vector<8x512xf32>
    %c640 = arith.constant 640 : index
    %c0_28 = arith.constant 0 : index
    %73 = vector.load %arg2[%c640, %c0_28] : memref<2048x512xbf16, #tpu.memory_space<vmem>>, vector<512x384xbf16>
    %c6 = arith.constant 6 : index
    %c0_29 = arith.constant 0 : index
    %74 = vector.load %arg3[%c6, %c0_29] : memref<24x512xf32, #tpu.memory_space<vmem>>, vector<1x384xf32>
    %c7 = arith.constant 7 : index
    %c0_30 = arith.constant 0 : index
    %75 = vector.load %arg3[%c7, %c0_30] : memref<24x512xf32, #tpu.memory_space<vmem>>, vector<1x384xf32>
    %c8 = arith.constant 8 : index
    %c0_31 = arith.constant 0 : index
    %76 = vector.load %arg3[%c8, %c0_31] : memref<24x512xf32, #tpu.memory_space<vmem>>, vector<1x384xf32>
    %77 = arith.truncf %72 : vector<8x512xf32> to vector<8x512xbf16>
    %cst_32 = arith.constant dense<0.000000e+00> : vector<8x384xf32>
    %78 = tpu.matmul %77, %73, %cst_32 {dimension_numbers = #tpu.dot_dimension_numbers<[1], [0], [0], [1], [0, 0, 1, 1], [], []>} : vector<8x512xbf16>, vector<512x384xbf16>, vector<8x384xf32> -> vector<8x384xf32>
    %79 = vector.broadcast %74 : vector<1x384xf32> to vector<8x384xf32>
    %80 = arith.addf %78, %79 : vector<8x384xf32>
    %cst_33 = arith.constant 0.000000e+00 : f32
    %81 = vector.broadcast %cst_33 : f32 to vector<8x384xf32>
    %82 = arith.cmpf ogt, %80, %81 : vector<8x384xf32>
    %cst_34 = arith.constant 0.00999999977 : f32
    %83 = vector.broadcast %cst_34 : f32 to vector<8x384xf32>
    %84 = arith.mulf %83, %80 : vector<8x384xf32>
    %85 = arith.select %82, %80, %84 : vector<8x384xi1>, vector<8x384xf32>
    %cst_35 = arith.constant dense<0.000000e+00> : vector<384xf32>
    %86 = vector.multi_reduction <add>, %85, %cst_35 [0] : vector<8x384xf32> to vector<384xf32>
    %87 = vector.shape_cast %86 : vector<384xf32> to vector<1x384xf32>
    %cst_36 = arith.constant 1.250000e-01 : f32
    %88 = vector.broadcast %cst_36 : f32 to vector<1x384xf32>
    %89 = arith.mulf %87, %88 : vector<1x384xf32>
    %90 = arith.mulf %85, %85 : vector<8x384xf32>
    %cst_37 = arith.constant dense<0.000000e+00> : vector<384xf32>
    %91 = vector.multi_reduction <add>, %90, %cst_37 [0] : vector<8x384xf32> to vector<384xf32>
    %92 = vector.shape_cast %91 : vector<384xf32> to vector<1x384xf32>
    %cst_38 = arith.constant 1.250000e-01 : f32
    %93 = vector.broadcast %cst_38 : f32 to vector<1x384xf32>
    %94 = arith.mulf %92, %93 : vector<1x384xf32>
    %95 = arith.mulf %89, %89 : vector<1x384xf32>
    %96 = arith.subf %94, %95 : vector<1x384xf32>
    %cst_39 = arith.constant 0.000000e+00 : f32
    %97 = vector.broadcast %cst_39 : f32 to vector<1x384xf32>
    %98 = arith.maximumf %96, %97 : vector<1x384xf32>
    %cst_40 = arith.constant 9.99999974E-6 : f32
    %99 = vector.broadcast %cst_40 : f32 to vector<1x384xf32>
    %100 = arith.addf %98, %99 : vector<1x384xf32>
    %101 = math.rsqrt %100 : vector<1x384xf32>
    %102 = arith.mulf %75, %101 : vector<1x384xf32>
    %103 = arith.mulf %89, %102 : vector<1x384xf32>
    %104 = arith.subf %76, %103 : vector<1x384xf32>
    %105 = vector.broadcast %102 : vector<1x384xf32> to vector<8x384xf32>
    %106 = arith.mulf %85, %105 : vector<8x384xf32>
    %107 = vector.broadcast %104 : vector<1x384xf32> to vector<8x384xf32>
    %108 = arith.addf %106, %107 : vector<8x384xf32>
    %c1152 = arith.constant 1152 : index
    %c0_41 = arith.constant 0 : index
    %109 = vector.load %arg2[%c1152, %c0_41] : memref<2048x512xbf16, #tpu.memory_space<vmem>>, vector<384x256xbf16>
    %c9 = arith.constant 9 : index
    %c0_42 = arith.constant 0 : index
    %110 = vector.load %arg3[%c9, %c0_42] : memref<24x512xf32, #tpu.memory_space<vmem>>, vector<1x256xf32>
    %c10 = arith.constant 10 : index
    %c0_43 = arith.constant 0 : index
    %111 = vector.load %arg3[%c10, %c0_43] : memref<24x512xf32, #tpu.memory_space<vmem>>, vector<1x256xf32>
    %c11 = arith.constant 11 : index
    %c0_44 = arith.constant 0 : index
    %112 = vector.load %arg3[%c11, %c0_44] : memref<24x512xf32, #tpu.memory_space<vmem>>, vector<1x256xf32>
    %113 = arith.truncf %108 : vector<8x384xf32> to vector<8x384xbf16>
    %cst_45 = arith.constant dense<0.000000e+00> : vector<8x256xf32>
    %114 = tpu.matmul %113, %109, %cst_45 {dimension_numbers = #tpu.dot_dimension_numbers<[1], [0], [0], [1], [0, 0, 1, 1], [], []>} : vector<8x384xbf16>, vector<384x256xbf16>, vector<8x256xf32> -> vector<8x256xf32>
    %115 = vector.broadcast %110 : vector<1x256xf32> to vector<8x256xf32>
    %116 = arith.addf %114, %115 : vector<8x256xf32>
    %cst_46 = arith.constant 0.000000e+00 : f32
    %117 = vector.broadcast %cst_46 : f32 to vector<8x256xf32>
    %118 = arith.cmpf ogt, %116, %117 : vector<8x256xf32>
    %cst_47 = arith.constant 0.00999999977 : f32
    %119 = vector.broadcast %cst_47 : f32 to vector<8x256xf32>
    %120 = arith.mulf %119, %116 : vector<8x256xf32>
    %121 = arith.select %118, %116, %120 : vector<8x256xi1>, vector<8x256xf32>
    %cst_48 = arith.constant dense<0.000000e+00> : vector<256xf32>
    %122 = vector.multi_reduction <add>, %121, %cst_48 [0] : vector<8x256xf32> to vector<256xf32>
    %123 = vector.shape_cast %122 : vector<256xf32> to vector<1x256xf32>
    %cst_49 = arith.constant 1.250000e-01 : f32
    %124 = vector.broadcast %cst_49 : f32 to vector<1x256xf32>
    %125 = arith.mulf %123, %124 : vector<1x256xf32>
    %126 = arith.mulf %121, %121 : vector<8x256xf32>
    %cst_50 = arith.constant dense<0.000000e+00> : vector<256xf32>
    %127 = vector.multi_reduction <add>, %126, %cst_50 [0] : vector<8x256xf32> to vector<256xf32>
    %128 = vector.shape_cast %127 : vector<256xf32> to vector<1x256xf32>
    %cst_51 = arith.constant 1.250000e-01 : f32
    %129 = vector.broadcast %cst_51 : f32 to vector<1x256xf32>
    %130 = arith.mulf %128, %129 : vector<1x256xf32>
    %131 = arith.mulf %125, %125 : vector<1x256xf32>
    %132 = arith.subf %130, %131 : vector<1x256xf32>
    %cst_52 = arith.constant 0.000000e+00 : f32
    %133 = vector.broadcast %cst_52 : f32 to vector<1x256xf32>
    %134 = arith.maximumf %132, %133 : vector<1x256xf32>
    %cst_53 = arith.constant 9.99999974E-6 : f32
    %135 = vector.broadcast %cst_53 : f32 to vector<1x256xf32>
    %136 = arith.addf %134, %135 : vector<1x256xf32>
    %137 = math.rsqrt %136 : vector<1x256xf32>
    %138 = arith.mulf %111, %137 : vector<1x256xf32>
    %139 = arith.mulf %125, %138 : vector<1x256xf32>
    %140 = arith.subf %112, %139 : vector<1x256xf32>
    %141 = vector.broadcast %138 : vector<1x256xf32> to vector<8x256xf32>
    %142 = arith.mulf %121, %141 : vector<8x256xf32>
    %143 = vector.broadcast %140 : vector<1x256xf32> to vector<8x256xf32>
    %144 = arith.addf %142, %143 : vector<8x256xf32>
    %c1536 = arith.constant 1536 : index
    %c0_54 = arith.constant 0 : index
    %145 = vector.load %arg2[%c1536, %c0_54] : memref<2048x512xbf16, #tpu.memory_space<vmem>>, vector<256x128xbf16>
    %c12 = arith.constant 12 : index
    %c0_55 = arith.constant 0 : index
    %146 = vector.load %arg3[%c12, %c0_55] : memref<24x512xf32, #tpu.memory_space<vmem>>, vector<1x128xf32>
    %c13 = arith.constant 13 : index
    %c0_56 = arith.constant 0 : index
    %147 = vector.load %arg3[%c13, %c0_56] : memref<24x512xf32, #tpu.memory_space<vmem>>, vector<1x128xf32>
    %c14 = arith.constant 14 : index
    %c0_57 = arith.constant 0 : index
    %148 = vector.load %arg3[%c14, %c0_57] : memref<24x512xf32, #tpu.memory_space<vmem>>, vector<1x128xf32>
    %149 = arith.truncf %144 : vector<8x256xf32> to vector<8x256xbf16>
    %cst_58 = arith.constant dense<0.000000e+00> : vector<8x128xf32>
    %150 = tpu.matmul %149, %145, %cst_58 {dimension_numbers = #tpu.dot_dimension_numbers<[1], [0], [0], [1], [0, 0, 1, 1], [], []>} : vector<8x256xbf16>, vector<256x128xbf16>, vector<8x128xf32> -> vector<8x128xf32>
    %151 = vector.broadcast %146 : vector<1x128xf32> to vector<8x128xf32>
    %152 = arith.addf %150, %151 : vector<8x128xf32>
    %cst_59 = arith.constant 0.000000e+00 : f32
    %153 = vector.broadcast %cst_59 : f32 to vector<8x128xf32>
    %154 = arith.cmpf ogt, %152, %153 : vector<8x128xf32>
    %cst_60 = arith.constant 0.00999999977 : f32
    %155 = vector.broadcast %cst_60 : f32 to vector<8x128xf32>
    %156 = arith.mulf %155, %152 : vector<8x128xf32>
    %157 = arith.select %154, %152, %156 : vector<8x128xi1>, vector<8x128xf32>
    %cst_61 = arith.constant dense<0.000000e+00> : vector<128xf32>
    %158 = vector.multi_reduction <add>, %157, %cst_61 [0] : vector<8x128xf32> to vector<128xf32>
    %159 = vector.shape_cast %158 : vector<128xf32> to vector<1x128xf32>
    %cst_62 = arith.constant 1.250000e-01 : f32
    %160 = vector.broadcast %cst_62 : f32 to vector<1x128xf32>
    %161 = arith.mulf %159, %160 : vector<1x128xf32>
    %162 = arith.mulf %157, %157 : vector<8x128xf32>
    %cst_63 = arith.constant dense<0.000000e+00> : vector<128xf32>
    %163 = vector.multi_reduction <add>, %162, %cst_63 [0] : vector<8x128xf32> to vector<128xf32>
    %164 = vector.shape_cast %163 : vector<128xf32> to vector<1x128xf32>
    %cst_64 = arith.constant 1.250000e-01 : f32
    %165 = vector.broadcast %cst_64 : f32 to vector<1x128xf32>
    %166 = arith.mulf %164, %165 : vector<1x128xf32>
    %167 = arith.mulf %161, %161 : vector<1x128xf32>
    %168 = arith.subf %166, %167 : vector<1x128xf32>
    %cst_65 = arith.constant 0.000000e+00 : f32
    %169 = vector.broadcast %cst_65 : f32 to vector<1x128xf32>
    %170 = arith.maximumf %168, %169 : vector<1x128xf32>
    %cst_66 = arith.constant 9.99999974E-6 : f32
    %171 = vector.broadcast %cst_66 : f32 to vector<1x128xf32>
    %172 = arith.addf %170, %171 : vector<1x128xf32>
    %173 = math.rsqrt %172 : vector<1x128xf32>
    %174 = arith.mulf %147, %173 : vector<1x128xf32>
    %175 = arith.mulf %161, %174 : vector<1x128xf32>
    %176 = arith.subf %148, %175 : vector<1x128xf32>
    %177 = vector.broadcast %174 : vector<1x128xf32> to vector<8x128xf32>
    %178 = arith.mulf %157, %177 : vector<8x128xf32>
    %179 = vector.broadcast %176 : vector<1x128xf32> to vector<8x128xf32>
    %180 = arith.addf %178, %179 : vector<8x128xf32>
    %c1792 = arith.constant 1792 : index
    %c0_67 = arith.constant 0 : index
    %181 = vector.load %arg2[%c1792, %c0_67] : memref<2048x512xbf16, #tpu.memory_space<vmem>>, vector<128x128xbf16>
    %c15 = arith.constant 15 : index
    %c0_68 = arith.constant 0 : index
    %182 = vector.load %arg3[%c15, %c0_68] : memref<24x512xf32, #tpu.memory_space<vmem>>, vector<1x128xf32>
    %c16 = arith.constant 16 : index
    %c0_69 = arith.constant 0 : index
    %183 = vector.load %arg3[%c16, %c0_69] : memref<24x512xf32, #tpu.memory_space<vmem>>, vector<1x128xf32>
    %c17 = arith.constant 17 : index
    %c0_70 = arith.constant 0 : index
    %184 = vector.load %arg3[%c17, %c0_70] : memref<24x512xf32, #tpu.memory_space<vmem>>, vector<1x128xf32>
    %185 = arith.truncf %180 : vector<8x128xf32> to vector<8x128xbf16>
    %cst_71 = arith.constant dense<0.000000e+00> : vector<8x128xf32>
    %186 = tpu.matmul %185, %181, %cst_71 {dimension_numbers = #tpu.dot_dimension_numbers<[1], [0], [0], [1], [0, 0, 1, 1], [], []>} : vector<8x128xbf16>, vector<128x128xbf16>, vector<8x128xf32> -> vector<8x128xf32>
    %187 = vector.broadcast %182 : vector<1x128xf32> to vector<8x128xf32>
    %188 = arith.addf %186, %187 : vector<8x128xf32>
    %cst_72 = arith.constant 0.000000e+00 : f32
    %189 = vector.broadcast %cst_72 : f32 to vector<8x128xf32>
    %190 = arith.cmpf ogt, %188, %189 : vector<8x128xf32>
    %cst_73 = arith.constant 0.00999999977 : f32
    %191 = vector.broadcast %cst_73 : f32 to vector<8x128xf32>
    %192 = arith.mulf %191, %188 : vector<8x128xf32>
    %193 = arith.select %190, %188, %192 : vector<8x128xi1>, vector<8x128xf32>
    %cst_74 = arith.constant dense<0.000000e+00> : vector<128xf32>
    %194 = vector.multi_reduction <add>, %193, %cst_74 [0] : vector<8x128xf32> to vector<128xf32>
    %195 = vector.shape_cast %194 : vector<128xf32> to vector<1x128xf32>
    %cst_75 = arith.constant 1.250000e-01 : f32
    %196 = vector.broadcast %cst_75 : f32 to vector<1x128xf32>
    %197 = arith.mulf %195, %196 : vector<1x128xf32>
    %198 = arith.mulf %193, %193 : vector<8x128xf32>
    %cst_76 = arith.constant dense<0.000000e+00> : vector<128xf32>
    %199 = vector.multi_reduction <add>, %198, %cst_76 [0] : vector<8x128xf32> to vector<128xf32>
    %200 = vector.shape_cast %199 : vector<128xf32> to vector<1x128xf32>
    %cst_77 = arith.constant 1.250000e-01 : f32
    %201 = vector.broadcast %cst_77 : f32 to vector<1x128xf32>
    %202 = arith.mulf %200, %201 : vector<1x128xf32>
    %203 = arith.mulf %197, %197 : vector<1x128xf32>
    %204 = arith.subf %202, %203 : vector<1x128xf32>
    %cst_78 = arith.constant 0.000000e+00 : f32
    %205 = vector.broadcast %cst_78 : f32 to vector<1x128xf32>
    %206 = arith.maximumf %204, %205 : vector<1x128xf32>
    %cst_79 = arith.constant 9.99999974E-6 : f32
    %207 = vector.broadcast %cst_79 : f32 to vector<1x128xf32>
    %208 = arith.addf %206, %207 : vector<1x128xf32>
    %209 = math.rsqrt %208 : vector<1x128xf32>
    %210 = arith.mulf %183, %209 : vector<1x128xf32>
    %211 = arith.mulf %197, %210 : vector<1x128xf32>
    %212 = arith.subf %184, %211 : vector<1x128xf32>
    %213 = vector.broadcast %210 : vector<1x128xf32> to vector<8x128xf32>
    %214 = arith.mulf %193, %213 : vector<8x128xf32>
    %215 = vector.broadcast %212 : vector<1x128xf32> to vector<8x128xf32>
    %216 = arith.addf %214, %215 : vector<8x128xf32>
    %c1920 = arith.constant 1920 : index
    %c0_80 = arith.constant 0 : index
    %217 = vector.load %arg2[%c1920, %c0_80] : memref<2048x512xbf16, #tpu.memory_space<vmem>>, vector<128x128xbf16>
    %c18 = arith.constant 18 : index
    %c0_81 = arith.constant 0 : index
    %218 = vector.load %arg3[%c18, %c0_81] : memref<24x512xf32, #tpu.memory_space<vmem>>, vector<1x128xf32>
    %219 = arith.truncf %216 : vector<8x128xf32> to vector<8x128xbf16>
    %cst_82 = arith.constant dense<0.000000e+00> : vector<8x128xf32>
    %220 = tpu.matmul %219, %217, %cst_82 {dimension_numbers = #tpu.dot_dimension_numbers<[1], [0], [0], [1], [0, 0, 1, 1], [], []>} : vector<8x128xbf16>, vector<128x128xbf16>, vector<8x128xf32> -> vector<8x128xf32>
    %221 = vector.broadcast %218 : vector<1x128xf32> to vector<8x128xf32>
    %222 = arith.addf %220, %221 : vector<8x128xf32>
    %cst_83 = arith.constant dense<0xFF800000> : vector<8xf32>
    %223 = vector.multi_reduction <maximumf>, %222, %cst_83 [1] : vector<8x128xf32> to vector<8xf32>
    %224 = vector.shape_cast %223 : vector<8xf32> to vector<8x1xf32>
    %225 = vector.broadcast %224 : vector<8x1xf32> to vector<8x128xf32>
    %226 = arith.subf %222, %225 : vector<8x128xf32>
    %227 = math.exp %226 : vector<8x128xf32>
    %cst_84 = arith.constant dense<0.000000e+00> : vector<8xf32>
    %228 = vector.multi_reduction <add>, %227, %cst_84 [1] : vector<8x128xf32> to vector<8xf32>
    %229 = vector.shape_cast %228 : vector<8xf32> to vector<8x1xf32>
    %230 = math.log %229 : vector<8x1xf32>
    %231 = arith.addf %230, %224 : vector<8x1xf32>
    %232 = vector.broadcast %231 : vector<8x1xf32> to vector<8x128xf32>
    %233 = arith.subf %222, %232 : vector<8x128xf32>
    %c0_85 = arith.constant 0 : index
    %c0_86 = arith.constant 0 : index
    %234 = vector.load %arg4[%c0_85, %c0_86] : memref<8x128xf32, #tpu.memory_space<vmem>>, vector<8x128xf32>
    tpu.vector_store %arg4[%c0_85, %c0_86], %233 {strides = array<i32>} : memref<8x128xf32, #tpu.memory_space<vmem>>, vector<8x128xf32>,
    return
  }
  func.func @transform_0(%arg0: i32) -> (i32, i32) {
    %c0_i32 = arith.constant 0 : i32
    %c0_i32_0 = arith.constant 0 : i32
    return %arg0, %c0_i32 : i32, i32
  }
  func.func @transform_1(%arg0: i32) -> (i32, i32) {
    %c0_i32 = arith.constant 0 : i32
    %c0_i32_0 = arith.constant 0 : i32
    %c0_i32_1 = arith.constant 0 : i32
    return %c0_i32, %c0_i32_0 : i32, i32
  }
  func.func @transform_2(%arg0: i32) -> (i32, i32) {
    %c0_i32 = arith.constant 0 : i32
    %c0_i32_0 = arith.constant 0 : i32
    %c0_i32_1 = arith.constant 0 : i32
    return %c0_i32, %c0_i32_0 : i32, i32
  }
  func.func @transform_3(%arg0: i32) -> (i32, i32) {
    %c0_i32 = arith.constant 0 : i32
    %c0_i32_0 = arith.constant 0 : i32
    return %arg0, %c0_i32 : i32, i32
  }
}

</mosaic_0001>

<llo_original>
// kernel: image_classifier_forward.1
$region0: #{image_classifier_forward.1}
  #allocation0 [shape = 'u32[]', space=smem, size = 0x4, offset = 0x4, fixed_abs, tag = 'smem constant byte address 0x4 - core index']
  #allocation1 [shape = 'u32[144,128]{1,0:T(1,128)}', space=vmem, size = 0x12000, scoped, tag = 'internal scratch']
  %s0 = inlined_call_operand.vmem [shape: f32[8,128], index: 0, kind: input, shape index: {}]
  %s1 = inlined_call_operand.hbm [shape: bf16[2048,512], index: 1, kind: input, shape index: {}]
  %s2 = inlined_call_operand.hbm [shape: f32[24,512], index: 2, kind: input, shape index: {}]
  %s3 = inlined_call_operand.hbm [shape: f32[8,128], index: 3, kind: output, shape index: {}]
  %s4 = sld [smem:[#allocation0]]
  $region30: #{image_classifier_forward.1} parent=0
    _
  %s6 = ssub.s32 1, %s4
  %s7 = scalar_select 0, %s6, %s4
  $region1: #{image_classifier_forward.1} parent=0
    #allocation2 [shape = 'u8[2097152]{0}', space=vmem, size = 0x200000, scoped, tag = 'input window, operand 1, single buffered']
    #allocation3 [shape = 's32[1]{0}', space=sflag, size = 0x4, scoped, tag = 'scoped memory for image_classifier_forward.1']
    #allocation4 [shape = 's32[1]{0}', space=sflag, size = 0x4, scoped, tag = 'scoped memory for image_classifier_forward.1']
    #allocation5 [shape = 'u8[49152]{0}', space=vmem, size = 0xc000, scoped, tag = 'input window, operand 2, single buffered']
    #allocation6 [shape = 's32[1]{0}', space=sflag, size = 0x4, scoped, tag = 'scoped memory for image_classifier_forward.1']
    #allocation7 [shape = 'u8[4096]{0}', space=vmem, size = 0x1000, scoped, tag = 'output window, operand 0, single buffered']
    %8 = vsyncpa [#allocation3], 0
    %9 = vsyncpa [#allocation6], 0
    %10 = vsyncpa [#allocation4], 0
    // Predicated region
    $region2: #{image_classifier_forward.1} parent=1 // pred_check
      _
    $region3: #{image_classifier_forward.1} parent=1 // pred_check_branch
      %12 = sbr.rel (0) target = $region5
    $region4: #{image_classifier_forward.1} parent=1 // pred_region
      _
    $region5: #{image_classifier_forward.1} parent=1 // pred_fallthru
      _
    // Predicated region
    $region6: #{image_classifier_forward.1} parent=1 // pred_check
      _
    $region7: #{image_classifier_forward.1} parent=1 // pred_check_branch
      %14 = sbr.rel (0) target = $region9
    $region8: #{image_classifier_forward.1} parent=1 // pred_region
      %s16 = ssub.s32 65536, 65536
      %17 = vsyncadd [#allocation3], %s16
      %s18 = sshll.u32 [#allocation2], 4
      %s19 = int_to_ptr.vmem [resolvable:$true] %s18
      %24 = dma.hbm_to_vmem [thread:$0]  %s1, 65536, %s19, [#allocation3], 256, 256, 16
    $region9: #{image_classifier_forward.1} parent=1 // pred_fallthru
      _
    // Predicated region
    $region10: #{image_classifier_forward.1} parent=1 // pred_check
      _
    $region11: #{image_classifier_forward.1} parent=1 // pred_check_branch
      %26 = sbr.rel (0) target = $region13
    $region12: #{image_classifier_forward.1} parent=1 // pred_region
      %s28 = ssub.s32 1536, 1536
      %29 = vsyncadd [#allocation6], %s28
      %s30 = sshll.u32 [#allocation5], 4
      %s31 = int_to_ptr.vmem [resolvable:$true] %s30
      %36 = dma.hbm_to_vmem [thread:$0]  %s2, 1536, %s31, [#allocation6], 512, 512, 32
    $region13: #{image_classifier_forward.1} parent=1 // pred_fallthru
      _
    // Predicated region
    $region14: #{image_classifier_forward.1} parent=1 // pred_check
      _
    $region15: #{image_classifier_forward.1} parent=1 // pred_check_branch
      %38 = sbr.rel (0) target = $region17
    $region16: #{image_classifier_forward.1} parent=1 // pred_region
      %39 = dma.done [#allocation3], 65536
    $region17: #{image_classifier_forward.1} parent=1 // pred_fallthru
      _
    // Predicated region
    $region18: #{image_classifier_forward.1} parent=1 // pred_check
      _
    $region19: #{image_classifier_forward.1} parent=1 // pred_check_branch
      %41 = sbr.rel (0) target = $region21
    $region20: #{image_classifier_forward.1} parent=1 // pred_region
      %42 = dma.done [#allocation6], 1536
    $region21: #{image_classifier_forward.1} parent=1 // pred_fallthru
      _
    %v44 = vld [vmem:[%s0] sm:$0xff]
    %v45 = vld [vmem:[#allocation2] sm:$0xff]
    %v46 = vld [vmem:[#allocation2 + $0x8] sm:$0xff]
    %v47 = vld [vmem:[#allocation2 + $0x10] sm:$0xff]
    %v48 = vld [vmem:[#allocation2 + $0x18] sm:$0xff]
    %v49 = vld [vmem:[#allocation2 + $0x20] sm:$0xff]
    %v50 = vld [vmem:[#allocation2 + $0x28] sm:$0xff]
    %v51 = vld [vmem:[#allocation2 + $0x30] sm:$0xff]
    %v52 = vld [vmem:[#allocation2 + $0x38] sm:$0xff]
    %v53 = vld [vmem:[#allocation2 + $0x40] sm:$0xff]
    %v54 = vld [vmem:[#allocation2 + $0x48] sm:$0xff]
    %v55 = vld [vmem:[#allocation2 + $0x50] sm:$0xff]
    %v56 = vld [vmem:[#allocation2 + $0x58] sm:$0xff]
    %v57 = vld [vmem:[#allocation2 + $0x60] sm:$0xff]
    %v58 = vld [vmem:[#allocation2 + $0x68] sm:$0xff]
    %v59 = vld [vmem:[#allocation2 + $0x70] sm:$0xff]
    %v60 = vld [vmem:[#allocation2 + $0x78] sm:$0xff]
    %v61 = vld [vmem:[#allocation2 + $0x80] sm:$0xff]
    %v62 = vld [vmem:[#allocation2 + $0x88] sm:$0xff]
    %v63 = vld [vmem:[#allocation2 + $0x90] sm:$0xff]
    %v64 = vld [vmem:[#allocation2 + $0x98] sm:$0xff]
    %v65 = vld [vmem:[#allocation2 + $0xa0] sm:$0xff]
    %v66 = vld [vmem:[#allocation2 + $0xa8] sm:$0xff]
    %v67 = vld [vmem:[#allocation2 + $0xb0] sm:$0xff]
    %v68 = vld [vmem:[#allocation2 + $0xb8] sm:$0xff]
    %v69 = vld [vmem:[#allocation2 + $0xc0] sm:$0xff]
    %v70 = vld [vmem:[#allocation2 + $0xc8] sm:$0xff]
    %v71 = vld [vmem:[#allocation2 + $0xd0] sm:$0xff]
    %v72 = vld [vmem:[#allocation2 + $0xd8] sm:$0xff]
    %v73 = vld [vmem:[#allocation2 + $0xe0] sm:$0xff]
    %v74 = vld [vmem:[#allocation2 + $0xe8] sm:$0xff]
    %v75 = vld [vmem:[#allocation2 + $0xf0] sm:$0xff]
    %v76 = vld [vmem:[#allocation2 + $0xf8] sm:$0xff]
    %v77 = vld [vmem:[#allocation5] ss:$8 sm:$0xf]
    %s78 = scalar_lea.vmem [#allocation5], 1
    %v79 = vld [vmem:[%s78] ss:$8 sm:$0xf]
    %s80 = scalar_lea.vmem [#allocation5], 2
    %v81 = vld [vmem:[%s80] ss:$8 sm:$0xf]
    %v82 = vpack.c.bf16 %v44, %v44
    %v84 = vlaneseq
    %v85 = vshrl.u32 %v84, 7
    %v86 = vsub.s32 0, %v85
    %v87 = vrot.slane %v77, %v86
    %v88 = vlaneseq
    %v89 = vshrl.u32 %v88, 7
    %v90 = vsub.s32 1, %v89
    %v91 = vrot.slane %v77, %v90
    %v92 = vlaneseq
    %v93 = vshrl.u32 %v92, 7
    %v94 = vsub.s32 2, %v93
    %v95 = vrot.slane %v77, %v94
    %v96 = vlaneseq
    %v97 = vshrl.u32 %v96, 7
    %v98 = vsub.s32 3, %v97
    %v99 = vrot.slane %v77, %v98
    %v136 = vunpack.c.l.b16 %v45
    %v137 = vunpack.c.h.b16 %v45
    %v138 = vunpack.c.l.b16 %v46
    %v139 = vunpack.c.h.b16 %v46
    %v140 = vunpack.c.l.b16 %v47
    %v141 = vunpack.c.h.b16 %v47
    %v142 = vunpack.c.l.b16 %v48
    %v143 = vunpack.c.h.b16 %v48
    %v144 = vunpack.c.l.b16 %v49
    %v145 = vunpack.c.h.b16 %v49
    %v146 = vunpack.c.l.b16 %v50
    %v147 = vunpack.c.h.b16 %v50
    %v148 = vunpack.c.l.b16 %v51
    %v149 = vunpack.c.h.b16 %v51
    %v150 = vunpack.c.l.b16 %v52
    %v151 = vunpack.c.h.b16 %v52
    %v152 = vunpack.c.l.b16 %v53
    %v153 = vunpack.c.h.b16 %v53
    %v154 = vunpack.c.l.b16 %v54
    %v155 = vunpack.c.h.b16 %v54
    %v156 = vunpack.c.l.b16 %v55
    %v157 = vunpack.c.h.b16 %v55
    %v158 = vunpack.c.l.b16 %v56
    %v159 = vunpack.c.h.b16 %v56
    %v160 = vunpack.c.l.b16 %v57
    %v161 = vunpack.c.h.b16 %v57
    %v162 = vunpack.c.l.b16 %v58
    %v163 = vunpack.c.h.b16 %v58
    %v164 = vunpack.c.l.b16 %v59
    %v165 = vunpack.c.h.b16 %v59
    %v166 = vunpack.c.l.b16 %v60
    %v167 = vunpack.c.h.b16 %v60
    %v168 = vunpack.c.l.b16 %v61
    %v169 = vunpack.c.h.b16 %v61
    %v170 = vunpack.c.l.b16 %v62
    %v171 = vunpack.c.h.b16 %v62
    %v172 = vunpack.c.l.b16 %v63
    %v173 = vunpack.c.h.b16 %v63
    %v174 = vunpack.c.l.b16 %v64
    %v175 = vunpack.c.h.b16 %v64
    %v176 = vunpack.c.l.b16 %v65
    %v177 = vunpack.c.h.b16 %v65
    %v178 = vunpack.c.l.b16 %v66
    %v179 = vunpack.c.h.b16 %v66
    %v180 = vunpack.c.l.b16 %v67
    %v181 = vunpack.c.h.b16 %v67
    %v182 = vunpack.c.l.b16 %v68
    %v183 = vunpack.c.h.b16 %v68
    %v184 = vunpack.c.l.b16 %v69
    %v185 = vunpack.c.h.b16 %v69
    %v186 = vunpack.c.l.b16 %v70
    %v187 = vunpack.c.h.b16 %v70
    %v188 = vunpack.c.l.b16 %v71
    %v189 = vunpack.c.h.b16 %v71
    %v190 = vunpack.c.l.b16 %v72
    %v191 = vunpack.c.h.b16 %v72
    %v192 = vunpack.c.l.b16 %v73
    %v193 = vunpack.c.h.b16 %v73
    %v194 = vunpack.c.l.b16 %v74
    %v195 = vunpack.c.h.b16 %v74
    %v196 = vunpack.c.l.b16 %v75
    %v197 = vunpack.c.h.b16 %v75
    %v198 = vunpack.c.l.b16 %v76
    %v199 = vunpack.c.h.b16 %v76
    %v200 = vpack.c.b16 %v140, %v136
    %v201 = vpack.c.b16 %v141, %v137
    %v202 = vpack.c.b16 %v142, %v138
    %v203 = vpack.c.b16 %v143, %v139
    %v204 = vpack.c.b16 %v148, %v144
    %v205 = vpack.c.b16 %v149, %v145
    %v206 = vpack.c.b16 %v150, %v146
    %v207 = vpack.c.b16 %v151, %v147
    %v208 = vpack.c.b16 %v156, %v152
    %v209 = vpack.c.b16 %v157, %v153
    %v210 = vpack.c.b16 %v158, %v154
    %v211 = vpack.c.b16 %v159, %v155
    %v212 = vpack.c.b16 %v164, %v160
    %v213 = vpack.c.b16 %v165, %v161
    %v214 = vpack.c.b16 %v166, %v162
    %v215 = vpack.c.b16 %v167, %v163
    %v216 = vpack.c.b16 %v172, %v168
    %v217 = vpack.c.b16 %v173, %v169
    %v218 = vpack.c.b16 %v174, %v170
    %v219 = vpack.c.b16 %v175, %v171
    %v220 = vpack.c.b16 %v180, %v176
    %v221 = vpack.c.b16 %v181, %v177
    %v222 = vpack.c.b16 %v182, %v178
    %v223 = vpack.c.b16 %v183, %v179
    %v224 = vpack.c.b16 %v188, %v184
    %v225 = vpack.c.b16 %v189, %v185
    %v226 = vpack.c.b16 %v190, %v186
    %v227 = vpack.c.b16 %v191, %v187
    %v228 = vpack.c.b16 %v196, %v192
    %v229 = vpack.c.b16 %v197, %v193
    %v230 = vpack.c.b16 %v198, %v194
    %v231 = vpack.c.b16 %v199, %v195
    %264 = vmatprep.subr.bf16.mxu0 %v201
    %265 = vmatpush1.bf16.msra.mxu0 %v200
    %266 = vmatprep.subr.bf16.mxu0 %v205
    %267 = vmatpush1.bf16.msra.mxu0 %v204
    %268 = vmatprep.subr.bf16.mxu0 %v209
    %269 = vmatpush1.bf16.msra.mxu0 %v208
    %270 = vmatprep.subr.bf16.mxu0 %v213
    %271 = vmatpush1.bf16.msra.mxu0 %v212
    %272 = vmatprep.subr.bf16.mxu0 %v217
    %273 = vmatpush1.bf16.msra.mxu0 %v216
    %274 = vmatprep.subr.bf16.mxu0 %v221
    %275 = vmatpush1.bf16.msra.mxu0 %v220
    %276 = vmatprep.subr.bf16.mxu0 %v225
    %277 = vmatpush1.bf16.msra.mxu0 %v224
    %278 = vmatprep.subr.bf16.mxu0 %v229
    %279 = vmatpush1.bf16.msra.mxu0 %v228
    %280 = vmatprep.subr.bf16.mxu0 0
    %281 = vmatpush1.bf16.msra.mxu0 0
    %282 = vmatprep.subr.bf16.mxu0 0
    %283 = vmatpush1.bf16.msra.mxu0 0
    %284 = vmatprep.subr.bf16.mxu0 0
    %285 = vmatpush1.bf16.msra.mxu0 0
    %286 = vmatprep.subr.bf16.mxu0 0
    %287 = vmatpush1.bf16.msra.mxu0 0
    %288 = vmatprep.subr.bf16.mxu0 0
    %289 = vmatpush1.bf16.msra.mxu0 0
    %290 = vmatprep.subr.bf16.mxu0 0
    %291 = vmatpush1.bf16.msra.mxu0 0
    %292 = vmatprep.subr.bf16.mxu0 0
    %293 = vmatpush1.bf16.msra.mxu0 0
    %294 = vmatprep.subr.bf16.mxu0 0
    %295 = vmatpush1.bf16.msra.mxu0 0
    %296 = vmatprep.mubr.bf16.mxu0 0
    %297 = vmatmul.mubr.bf16.gmra.mrb[0].mxu0 %v82
    %v298 = vpop.f32.mrb[0].mxu0
    %v299 = vadd.f32 %v87, %v298
    %v300 = vpop.f32.mrb[0].mxu0
    %v301 = vadd.f32 %v91, %v300
    %v302 = vpop.f32.mrb[0].mxu0
    %v303 = vpop.f32.mrb[0].mxu0
    %304 = vdwg.mxu0
    %305 = vmatprep.subr.bf16.mxu0 %v203
    %306 = vmatpush1.bf16.msra.mxu0 %v202
    %307 = vmatprep.subr.bf16.mxu0 %v207
    %308 = vmatpush1.bf16.msra.mxu0 %v206
    %309 = vmatprep.subr.bf16.mxu0 %v211
    %310 = vmatpush1.bf16.msra.mxu0 %v210
    %311 = vmatprep.subr.bf16.mxu0 %v215
    %312 = vmatpush1.bf16.msra.mxu0 %v214
    %313 = vmatprep.subr.bf16.mxu0 %v219
    %314 = vmatpush1.bf16.msra.mxu0 %v218
    %315 = vmatprep.subr.bf16.mxu0 %v223
    %316 = vmatpush1.bf16.msra.mxu0 %v222
    %317 = vmatprep.subr.bf16.mxu0 %v227
    %318 = vmatpush1.bf16.msra.mxu0 %v226
    %319 = vmatprep.subr.bf16.mxu0 %v231
    %320 = vmatpush1.bf16.msra.mxu0 %v230
    %321 = vmatprep.subr.bf16.mxu0 0
    %322 = vmatpush1.bf16.msra.mxu0 0
    %323 = vmatprep.subr.bf16.mxu0 0
    %324 = vmatpush1.bf16.msra.mxu0 0
    %325 = vmatprep.subr.bf16.mxu0 0
    %326 = vmatpush1.bf16.msra.mxu0 0
    %327 = vmatprep.subr.bf16.mxu0 0
    %328 = vmatpush1.bf16.msra.mxu0 0
    %329 = vmatprep.subr.bf16.mxu0 0
    %330 = vmatpush1.bf16.msra.mxu0 0
    %331 = vmatprep.subr.bf16.mxu0 0
    %332 = vmatpush1.bf16.msra.mxu0 0
    %333 = vmatprep.subr.bf16.mxu0 0
    %334 = vmatpush1.bf16.msra.mxu0 0
    %335 = vmatprep.subr.bf16.mxu0 0
    %336 = vmatpush1.bf16.msra.mxu0 0
    %337 = vmatprep.mubr.bf16.mxu0 0
    %338 = vmatmul.mubr.bf16.gmra.mrb[0].mxu0 %v82
    %v339 = vpop.f32.mrb[0].mxu0
    %v340 = vadd.f32 %v95, %v339
    %v341 = vpop.f32.mrb[0].mxu0
    %v342 = vadd.f32 %v99, %v341
    %v343 = vpop.f32.mrb[0].mxu0
    %v344 = vpop.f32.mrb[0].mxu0
    %345 = vdwg.mxu0
    %vm346 = vcmp.gt.f32.partialorder %v299, 0.0
    %vm347 = vcmp.gt.f32.partialorder %v301, 0.0
    %vm348 = vcmp.gt.f32.partialorder %v340, 0.0
    %vm349 = vcmp.gt.f32.partialorder %v342, 0.0
    %v350 = vmul.f32 %v299, 0.01
    %v351 = vmul.f32 %v301, 0.01
    %v352 = vmul.f32 %v340, 0.01
    %v353 = vmul.f32 %v342, 0.01
    %v354 = vsel %vm346, %v299, %v350
    %v355 = vsel %vm347, %v301, %v351
    %v356 = vsel %vm348, %v340, %v352
    %v357 = vsel %vm349, %v342, %v353
    %v358 = vrot.slane %v354, 4
    %v359 = vadd.f32 %v354, %v358
    %v360 = vrot.slane %v359, 2
    %v361 = vadd.f32 %v359, %v360
    %v362 = vrot.slane %v361, 1
    %v363 = vadd.f32 %v361, %v362
    %v364 = vrot.slane %v355, 4
    %v365 = vadd.f32 %v355, %v364
    %v366 = vrot.slane %v365, 2
    %v367 = vadd.f32 %v365, %v366
    %v368 = vrot.slane %v367, 1
    %v369 = vadd.f32 %v367, %v368
    %v370 = vrot.slane %v356, 4
    %v371 = vadd.f32 %v356, %v370
    %v372 = vrot.slane %v371, 2
    %v373 = vadd.f32 %v371, %v372
    %v374 = vrot.slane %v373, 1
    %v375 = vadd.f32 %v373, %v374
    %v376 = vrot.slane %v357, 4
    %v377 = vadd.f32 %v357, %v376
    %v378 = vrot.slane %v377, 2
    %v379 = vadd.f32 %v377, %v378
    %v380 = vrot.slane %v379, 1
    %v381 = vadd.f32 %v379, %v380
    %v382 = vmul.f32 %v363, 0.125
    %v383 = vmul.f32 %v369, 0.125
    %v384 = vmul.f32 %v375, 0.125
    %v385 = vmul.f32 %v381, 0.125
    %v386 = vmul.f32 %v354, %v354
    %v387 = vmul.f32 %v355, %v355
    %v388 = vmul.f32 %v356, %v356
    %v389 = vmul.f32 %v357, %v357
    %v390 = vrot.slane %v386, 4
    %v391 = vadd.f32 %v386, %v390
    %v392 = vrot.slane %v391, 2
    %v393 = vadd.f32 %v391, %v392
    %v394 = vrot.slane %v393, 1
    %v395 = vadd.f32 %v393, %v394
    %v396 = vrot.slane %v387, 4
    %v397 = vadd.f32 %v387, %v396
    %v398 = vrot.slane %v397, 2
    %v399 = vadd.f32 %v397, %v398
    %v400 = vrot.slane %v399, 1
    %v401 = vadd.f32 %v399, %v400
    %v402 = vrot.slane %v388, 4
    %v403 = vadd.f32 %v388, %v402
    %v404 = vrot.slane %v403, 2
    %v405 = vadd.f32 %v403, %v404
    %v406 = vrot.slane %v405, 1
    %v407 = vadd.f32 %v405, %v406
    %v408 = vrot.slane %v389, 4
    %v409 = vadd.f32 %v389, %v408
    %v410 = vrot.slane %v409, 2
    %v411 = vadd.f32 %v409, %v410
    %v412 = vrot.slane %v411, 1
    %v413 = vadd.f32 %v411, %v412
    %v414 = vmul.f32 %v395, 0.125
    %v415 = vmul.f32 %v401, 0.125
    %v416 = vmul.f32 %v407, 0.125
    %v417 = vmul.f32 %v413, 0.125
    %v418 = vmul.f32 %v382, %v382
    %v419 = vmul.f32 %v383, %v383
    %v420 = vmul.f32 %v384, %v384
    %v421 = vmul.f32 %v385, %v385
    %v422 = vsub.f32 %v414, %v418
    %v423 = vsub.f32 %v415, %v419
    %v424 = vsub.f32 %v416, %v420
    %v425 = vsub.f32 %v417, %v421
    %v426 = vmax.f32 %v422, 0.0
    %v427 = vmax.f32 %v423, 0.0
    %v428 = vmax.f32 %v424, 0.0
    %v429 = vmax.f32 %v425, 0.0
    %v430 = vadd.f32 %v426, 1e-05
    %v431 = vadd.f32 %v427, 1e-05
    %v432 = vadd.f32 %v428, 1e-05
    %v433 = vadd.f32 %v429, 1e-05
    %v434 = vrsqrt.pop %v430
    %v435 = vrsqrt.pop %v431
    %v436 = vrsqrt.pop %v432
    %v437 = vrsqrt.pop %v433
    %v442 = vcombine.low %v434, %v435
    %v443 = vcombine.low %v436, %v437
    %v445 = vunpack.c.l.s4 1966171168
    %v446 = vunpack.c.0.s8 %v445
    %v447 = vlaneseq
    %v448 = vshrl.u32 %v447, 7
    %v449 = vsub.s32 %v446, %v448
    %v450 = vrot.slane %v442, %v449
    %v452 = vunpack.c.l.s4 1966171168
    %v453 = vunpack.c.0.s8 %v452
    %v454 = vlaneseq
    %v455 = vshrl.u32 %v454, 7
    %v456 = vsub.s32 %v453, %v455
    %v457 = vrot.slane %v443, %v456
    %v458 = vcombine.low %v450, %v457
    %v460 = vunpack.c.l.s4 1966171168
    %v461 = vunpack.c.0.s8 %v460
    %v462 = vlaneseq
    %v463 = vshrl.u32 %v462, 7
    %v464 = vsub.s32 %v461, %v463
    %v465 = vrot.slane %v458, %v464
    %v467 = vmul.f32 %v79, %v465
    %v469 = vlaneseq
    %v470 = vshrl.u32 %v469, 7
    %v471 = vsub.s32 0, %v470
    %v472 = vrot.slane %v467, %v471
    %v473 = vlaneseq
    %v474 = vshrl.u32 %v473, 7
    %v475 = vsub.s32 1, %v474
    %v476 = vrot.slane %v467, %v475
    %v477 = vlaneseq
    %v478 = vshrl.u32 %v477, 7
    %v479 = vsub.s32 2, %v478
    %v480 = vrot.slane %v467, %v479
    %v481 = vlaneseq
    %v482 = vshrl.u32 %v481, 7
    %v483 = vsub.s32 3, %v482
    %v484 = vrot.slane %v467, %v483
    %v489 = vmul.f32 %v382, %v472
    %v490 = vmul.f32 %v383, %v476
    %v491 = vmul.f32 %v384, %v480
    %v492 = vmul.f32 %v385, %v484
    %v497 = vcombine.low %v489, %v490
    %v498 = vcombine.low %v491, %v492
    %v500 = vunpack.c.l.s4 1966171168
    %v501 = vunpack.c.0.s8 %v500
    %v502 = vlaneseq
    %v503 = vshrl.u32 %v502, 7
    %v504 = vsub.s32 %v501, %v503
    %v505 = vrot.slane %v497, %v504
    %v507 = vunpack.c.l.s4 1966171168
    %v508 = vunpack.c.0.s8 %v507
    %v509 = vlaneseq
    %v510 = vshrl.u32 %v509, 7
    %v511 = vsub.s32 %v508, %v510
    %v512 = vrot.slane %v498, %v511
    %v513 = vcombine.low %v505, %v512
    %v515 = vunpack.c.l.s4 1966171168
    %v516 = vunpack.c.0.s8 %v515
    %v517 = vlaneseq
    %v518 = vshrl.u32 %v517, 7
    %v519 = vsub.s32 %v516, %v518
    %v520 = vrot.slane %v513, %v519
    %v522 = vsub.f32 %v81, %v520
    %v523 = vmul.f32 %v354, %v472
    %v524 = vmul.f32 %v355, %v476
    %v525 = vmul.f32 %v356, %v480
    %v526 = vmul.f32 %v357, %v484
    %v528 = vlaneseq
    %v529 = vshrl.u32 %v528, 7
    %v530 = vsub.s32 0, %v529
    %v531 = vrot.slane %v522, %v530
    %v532 = vlaneseq
    %v533 = vshrl.u32 %v532, 7
    %v534 = vsub.s32 1, %v533
    %v535 = vrot.slane %v522, %v534
    %v536 = vlaneseq
    %v537 = vshrl.u32 %v536, 7
    %v538 = vsub.s32 2, %v537
    %v539 = vrot.slane %v522, %v538
    %v540 = vlaneseq
    %v541 = vshrl.u32 %v540, 7
    %v542 = vsub.s32 3, %v541
    %v543 = vrot.slane %v522, %v542
    %v548 = vadd.f32 %v523, %v531
    %v549 = vadd.f32 %v524, %v535
    %v550 = vadd.f32 %v525, %v539
    %v551 = vadd.f32 %v526, %v543
    %v552 = vld [vmem:[#allocation2 + $0x100] sm:$0xff]
    %v553 = vld [vmem:[#allocation2 + $0x108] sm:$0xff]
    %v554 = vld [vmem:[#allocation2 + $0x110] sm:$0xff]
    %v555 = vld [vmem:[#allocation2 + $0x118] sm:$0xff]
    %v556 = vld [vmem:[#allocation2 + $0x120] sm:$0xff]
    %v557 = vld [vmem:[#allocation2 + $0x128] sm:$0xff]
    %v558 = vld [vmem:[#allocation2 + $0x130] sm:$0xff]
    %v559 = vld [vmem:[#allocation2 + $0x138] sm:$0xff]
    %v560 = vld [vmem:[#allocation2 + $0x140] sm:$0xff]
    %v561 = vld [vmem:[#allocation2 + $0x148] sm:$0xff]
    %v562 = vld [vmem:[#allocation2 + $0x150] sm:$0xff]
    %v563 = vld [vmem:[#allocation2 + $0x158] sm:$0xff]
    %v564 = vld [vmem:[#allocation2 + $0x160] sm:$0xff]
    %v565 = vld [vmem:[#allocation2 + $0x168] sm:$0xff]
    %v566 = vld [vmem:[#allocation2 + $0x170] sm:$0xff]
    %v567 = vld [vmem:[#allocation2 + $0x178] sm:$0xff]
    %v568 = vld [vmem:[#allocation2 + $0x180] sm:$0xff]
    %v569 = vld [vmem:[#allocation2 + $0x188] sm:$0xff]
    %v570 = vld [vmem:[#allocation2 + $0x190] sm:$0xff]
    %v571 = vld [vmem:[#allocation2 + $0x198] sm:$0xff]
    %v572 = vld [vmem:[#allocation2 + $0x1a0] sm:$0xff]
    %v573 = vld [vmem:[#allocation2 + $0x1a8] sm:$0xff]
    %v574 = vld [vmem:[#allocation2 + $0x1b0] sm:$0xff]
    %v575 = vld [vmem:[#allocation2 + $0x1b8] sm:$0xff]
    %v576 = vld [vmem:[#allocation2 + $0x1c0] sm:$0xff]
    %v577 = vld [vmem:[#allocation2 + $0x1c8] sm:$0xff]
    %v578 = vld [vmem:[#allocation2 + $0x1d0] sm:$0xff]
    %v579 = vld [vmem:[#allocation2 + $0x1d8] sm:$0xff]
    %v580 = vld [vmem:[#allocation2 + $0x1e0] sm:$0xff]
    %v581 = vld [vmem:[#allocation2 + $0x1e8] sm:$0xff]
    %v582 = vld [vmem:[#allocation2 + $0x1f0] sm:$0xff]
    %v583 = vld [vmem:[#allocation2 + $0x1f8] sm:$0xff]
    %v584 = vld [vmem:[#allocation2 + $0x200] sm:$0xff]
    %v585 = vld [vmem:[#allocation2 + $0x208] sm:$0xff]
    %v586 = vld [vmem:[#allocation2 + $0x210] sm:$0xff]
    %v587 = vld [vmem:[#allocation2 + $0x218] sm:$0xff]
    %v588 = vld [vmem:[#allocation2 + $0x220] sm:$0xff]
    %v589 = vld [vmem:[#allocation2 + $0x228] sm:$0xff]
    %v590 = vld [vmem:[#allocation2 + $0x230] sm:$0xff]
    %v591 = vld [vmem:[#allocation2 + $0x238] sm:$0xff]
    %v592 = vld [vmem:[#allocation2 + $0x240] sm:$0xff]
    %v593 = vld [vmem:[#allocation2 + $0x248] sm:$0xff]
    %v594 = vld [vmem:[#allocation2 + $0x250] sm:$0xff]
    %v595 = vld [vmem:[#allocation2 + $0x258] sm:$0xff]
    %v596 = vld [vmem:[#allocation2 + $0x260] sm:$0xff]
    %v597 = vld [vmem:[#allocation2 + $0x268] sm:$0xff]
    %v598 = vld [vmem:[#allocation2 + $0x270] sm:$0xff]
    %v599 = vld [vmem:[#allocation2 + $0x278] sm:$0xff]
    %v600 = vld [vmem:[#allocation2 + $0x280] sm:$0xff]
    %v601 = vld [vmem:[#allocation2 + $0x288] sm:$0xff]
    %v602 = vld [vmem:[#allocation2 + $0x290] sm:$0xff]
    %v603 = vld [vmem:[#allocation2 + $0x298] sm:$0xff]
    %v604 = vld [vmem:[#allocation2 + $0x2a0] sm:$0xff]
    %v605 = vld [vmem:[#allocation2 + $0x2a8] sm:$0xff]
    %v606 = vld [vmem:[#allocation2 + $0x2b0] sm:$0xff]
    %v607 = vld [vmem:[#allocation2 + $0x2b8] sm:$0xff]
    %v608 = vld [vmem:[#allocation2 + $0x2c0] sm:$0xff]
    %v609 = vld [vmem:[#allocation2 + $0x2c8] sm:$0xff]
    %v610 = vld [vmem:[#allocation2 + $0x2d0] sm:$0xff]
    %v611 = vld [vmem:[#allocation2 + $0x2d8] sm:$0xff]
    %v612 = vld [vmem:[#allocation2 + $0x2e0] sm:$0xff]
    %v613 = vld [vmem:[#allocation2 + $0x2e8] sm:$0xff]
    %v614 = vld [vmem:[#allocation2 + $0x2f0] sm:$0xff]
    %v615 = vld [vmem:[#allocation2 + $0x2f8] sm:$0xff]
    %v616 = vld [vmem:[#allocation2 + $0x300] sm:$0xff]
    %v617 = vld [vmem:[#allocation2 + $0x308] sm:$0xff]
    %v618 = vld [vmem:[#allocation2 + $0x310] sm:$0xff]
    %v619 = vld [vmem:[#allocation2 + $0x318] sm:$0xff]
    %v620 = vld [vmem:[#allocation2 + $0x320] sm:$0xff]
    %v621 = vld [vmem:[#allocation2 + $0x328] sm:$0xff]
    %v622 = vld [vmem:[#allocation2 + $0x330] sm:$0xff]
    %v623 = vld [vmem:[#allocation2 + $0x338] sm:$0xff]
    %v624 = vld [vmem:[#allocation2 + $0x340] sm:$0xff]
    %v625 = vld [vmem:[#allocation2 + $0x348] sm:$0xff]
    %v626 = vld [vmem:[#allocation2 + $0x350] sm:$0xff]
    %v627 = vld [vmem:[#allocation2 + $0x358] sm:$0xff]
    %v628 = vld [vmem:[#allocation2 + $0x360] sm:$0xff]
    %v629 = vld [vmem:[#allocation2 + $0x368] sm:$0xff]
    %v630 = vld [vmem:[#allocation2 + $0x370] sm:$0xff]
    %v631 = vld [vmem:[#allocation2 + $0x378] sm:$0xff]
    %v632 = vld [vmem:[#allocation2 + $0x380] sm:$0xff]
    %v633 = vld [vmem:[#allocation2 + $0x388] sm:$0xff]
    %v634 = vld [vmem:[#allocation2 + $0x390] sm:$0xff]
    %v635 = vld [vmem:[#allocation2 + $0x398] sm:$0xff]
    %v636 = vld [vmem:[#allocation2 + $0x3a0] sm:$0xff]
    %v637 = vld [vmem:[#allocation2 + $0x3a8] sm:$0xff]
    %v638 = vld [vmem:[#allocation2 + $0x3b0] sm:$0xff]
    %v639 = vld [vmem:[#allocation2 + $0x3b8] sm:$0xff]
    %v640 = vld [vmem:[#allocation2 + $0x3c0] sm:$0xff]
    %v641 = vld [vmem:[#allocation2 + $0x3c8] sm:$0xff]
    %v642 = vld [vmem:[#allocation2 + $0x3d0] sm:$0xff]
    %v643 = vld [vmem:[#allocation2 + $0x3d8] sm:$0xff]
    %v644 = vld [vmem:[#allocation2 + $0x3e0] sm:$0xff]
    %v645 = vld [vmem:[#allocation2 + $0x3e8] sm:$0xff]
    %v646 = vld [vmem:[#allocation2 + $0x3f0] sm:$0xff]
    %v647 = vld [vmem:[#allocation2 + $0x3f8] sm:$0xff]
    %v648 = vld [vmem:[#allocation2 + $0x400] sm:$0xff]
    %v649 = vld [vmem:[#allocation2 + $0x408] sm:$0xff]
    %v650 = vld [vmem:[#allocation2 + $0x410] sm:$0xff]
    %v651 = vld [vmem:[#allocation2 + $0x418] sm:$0xff]
    %v652 = vld [vmem:[#allocation2 + $0x420] sm:$0xff]
    %v653 = vld [vmem:[#allocation2 + $0x428] sm:$0xff]
    %v654 = vld [vmem:[#allocation2 + $0x430] sm:$0xff]
    %v655 = vld [vmem:[#allocation2 + $0x438] sm:$0xff]
    %v656 = vld [vmem:[#allocation2 + $0x440] sm:$0xff]
    %v657 = vld [vmem:[#allocation2 + $0x448] sm:$0xff]
    %v658 = vld [vmem:[#allocation2 + $0x450] sm:$0xff]
    %v659 = vld [vmem:[#allocation2 + $0x458] sm:$0xff]
    %v660 = vld [vmem:[#allocation2 + $0x460] sm:$0xff]
    %v661 = vld [vmem:[#allocation2 + $0x468] sm:$0xff]
    %v662 = vld [vmem:[#allocation2 + $0x470] sm:$0xff]
    %v663 = vld [vmem:[#allocation2 + $0x478] sm:$0xff]
    %v664 = vld [vmem:[#allocation2 + $0x480] sm:$0xff]
    %v665 = vld [vmem:[#allocation2 + $0x488] sm:$0xff]
    %v666 = vld [vmem:[#allocation2 + $0x490] sm:$0xff]
    %v667 = vld [vmem:[#allocation2 + $0x498] sm:$0xff]
    %v668 = vld [vmem:[#allocation2 + $0x4a0] sm:$0xff]
    %v669 = vld [vmem:[#allocation2 + $0x4a8] sm:$0xff]
    %v670 = vld [vmem:[#allocation2 + $0x4b0] sm:$0xff]
    %v671 = vld [vmem:[#allocation2 + $0x4b8] sm:$0xff]
    %v672 = vld [vmem:[#allocation2 + $0x4c0] sm:$0xff]
    %v673 = vld [vmem:[#allocation2 + $0x4c8] sm:$0xff]
    %v674 = vld [vmem:[#allocation2 + $0x4d0] sm:$0xff]
    %v675 = vld [vmem:[#allocation2 + $0x4d8] sm:$0xff]
    %v676 = vld [vmem:[#allocation2 + $0x4e0] sm:$0xff]
    %v677 = vld [vmem:[#allocation2 + $0x4e8] sm:$0xff]
    %v678 = vld [vmem:[#allocation2 + $0x4f0] sm:$0xff]
    %v679 = vld [vmem:[#allocation2 + $0x4f8] sm:$0xff]
    %s680 = scalar_lea.vmem [#allocation5], 3
    %v681 = vld [vmem:[%s680] ss:$8 sm:$0xf]
    %s682 = scalar_lea.vmem [#allocation5], 4
    %v683 = vld [vmem:[%s682] ss:$8 sm:$0xf]
    %s684 = scalar_lea.vmem [#allocation5], 5
    %v685 = vld [vmem:[%s684] ss:$8 sm:$0xf]
    %v686 = vpack.c.bf16 %v548, %v548
    %v687 = vpack.c.bf16 %v549, %v549
    %v688 = vpack.c.bf16 %v550, %v550
    %v689 = vpack.c.bf16 %v551, %v551
    %v691 = vlaneseq
    %v692 = vshrl.u32 %v691, 7
    %v693 = vsub.s32 0, %v692
    %v694 = vrot.slane %v681, %v693
    %v695 = vlaneseq
    %v696 = vshrl.u32 %v695, 7
    %v697 = vsub.s32 1, %v696
    %v698 = vrot.slane %v681, %v697
    %v699 = vlaneseq
    %v700 = vshrl.u32 %v699, 7
    %v701 = vsub.s32 2, %v700
    %v702 = vrot.slane %v681, %v701
    %v703 = vlaneseq
    %v704 = vshrl.u32 %v703, 7
    %v705 = vsub.s32 3, %v704
    %v706 = vrot.slane %v681, %v705
    %v839 = vunpack.c.l.b16 %v552
    %v840 = vunpack.c.h.b16 %v552
    %v841 = vunpack.c.l.b16 %v553
    %v842 = vunpack.c.h.b16 %v553
    %v843 = vunpack.c.l.b16 %v554
    %v844 = vunpack.c.h.b16 %v554
    %v845 = vunpack.c.l.b16 %v555
    %v846 = vunpack.c.h.b16 %v555
    %v847 = vunpack.c.l.b16 %v556
    %v848 = vunpack.c.h.b16 %v556
    %v849 = vunpack.c.l.b16 %v557
    %v850 = vunpack.c.h.b16 %v557
    %v851 = vunpack.c.l.b16 %v558
    %v852 = vunpack.c.h.b16 %v558
    %v853 = vunpack.c.l.b16 %v559
    %v854 = vunpack.c.h.b16 %v559
    %v855 = vunpack.c.l.b16 %v560
    %v856 = vunpack.c.h.b16 %v560
    %v857 = vunpack.c.l.b16 %v561
    %v858 = vunpack.c.h.b16 %v561
    %v859 = vunpack.c.l.b16 %v562
    %v860 = vunpack.c.h.b16 %v562
    %v861 = vunpack.c.l.b16 %v563
    %v862 = vunpack.c.h.b16 %v563
    %v863 = vunpack.c.l.b16 %v564
    %v864 = vunpack.c.h.b16 %v564
    %v865 = vunpack.c.l.b16 %v565
    %v866 = vunpack.c.h.b16 %v565
    %v867 = vunpack.c.l.b16 %v566
    %v868 = vunpack.c.h.b16 %v566
    %v869 = vunpack.c.l.b16 %v567
    %v870 = vunpack.c.h.b16 %v567
    %v871 = vunpack.c.l.b16 %v568
    %v872 = vunpack.c.h.b16 %v568
    %v873 = vunpack.c.l.b16 %v569
    %v874 = vunpack.c.h.b16 %v569
    %v875 = vunpack.c.l.b16 %v570
    %v876 = vunpack.c.h.b16 %v570
    %v877 = vunpack.c.l.b16 %v571
    %v878 = vunpack.c.h.b16 %v571
    %v879 = vunpack.c.l.b16 %v572
    %v880 = vunpack.c.h.b16 %v572
    %v881 = vunpack.c.l.b16 %v573
    %v882 = vunpack.c.h.b16 %v573
    %v883 = vunpack.c.l.b16 %v574
    %v884 = vunpack.c.h.b16 %v574
    %v885 = vunpack.c.l.b16 %v575
    %v886 = vunpack.c.h.b16 %v575
    %v887 = vunpack.c.l.b16 %v576
    %v888 = vunpack.c.h.b16 %v576
    %v889 = vunpack.c.l.b16 %v577
    %v890 = vunpack.c.h.b16 %v577
    %v891 = vunpack.c.l.b16 %v578
    %v892 = vunpack.c.h.b16 %v578
    %v893 = vunpack.c.l.b16 %v579
    %v894 = vunpack.c.h.b16 %v579
    %v895 = vunpack.c.l.b16 %v580
    %v896 = vunpack.c.h.b16 %v580
    %v897 = vunpack.c.l.b16 %v581
    %v898 = vunpack.c.h.b16 %v581
    %v899 = vunpack.c.l.b16 %v582
    %v900 = vunpack.c.h.b16 %v582
    %v901 = vunpack.c.l.b16 %v583
    %v902 = vunpack.c.h.b16 %v583
    %v903 = vunpack.c.l.b16 %v584
    %v904 = vunpack.c.h.b16 %v584
    %v905 = vunpack.c.l.b16 %v585
    %v906 = vunpack.c.h.b16 %v585
    %v907 = vunpack.c.l.b16 %v586
    %v908 = vunpack.c.h.b16 %v586
    %v909 = vunpack.c.l.b16 %v587
    %v910 = vunpack.c.h.b16 %v587
    %v911 = vunpack.c.l.b16 %v588
    %v912 = vunpack.c.h.b16 %v588
    %v913 = vunpack.c.l.b16 %v589
    %v914 = vunpack.c.h.b16 %v589
    %v915 = vunpack.c.l.b16 %v590
    %v916 = vunpack.c.h.b16 %v590
    %v917 = vunpack.c.l.b16 %v591
    %v918 = vunpack.c.h.b16 %v591
    %v919 = vunpack.c.l.b16 %v592
    %v920 = vunpack.c.h.b16 %v592
    %v921 = vunpack.c.l.b16 %v593
    %v922 = vunpack.c.h.b16 %v593
    %v923 = vunpack.c.l.b16 %v594
    %v924 = vunpack.c.h.b16 %v594
    %v925 = vunpack.c.l.b16 %v595
    %v926 = vunpack.c.h.b16 %v595
    %v927 = vunpack.c.l.b16 %v596
    %v928 = vunpack.c.h.b16 %v596
    %v929 = vunpack.c.l.b16 %v597
    %v930 = vunpack.c.h.b16 %v597
    %v931 = vunpack.c.l.b16 %v598
    %v932 = vunpack.c.h.b16 %v598
    %v933 = vunpack.c.l.b16 %v599
    %v934 = vunpack.c.h.b16 %v599
    %v935 = vunpack.c.l.b16 %v600
    %v936 = vunpack.c.h.b16 %v600
    %v937 = vunpack.c.l.b16 %v601
    %v938 = vunpack.c.h.b16 %v601
    %v939 = vunpack.c.l.b16 %v602
    %v940 = vunpack.c.h.b16 %v602
    %v941 = vunpack.c.l.b16 %v603
    %v942 = vunpack.c.h.b16 %v603
    %v943 = vunpack.c.l.b16 %v604
    %v944 = vunpack.c.h.b16 %v604
    %v945 = vunpack.c.l.b16 %v605
    %v946 = vunpack.c.h.b16 %v605
    %v947 = vunpack.c.l.b16 %v606
    %v948 = vunpack.c.h.b16 %v606
    %v949 = vunpack.c.l.b16 %v607
    %v950 = vunpack.c.h.b16 %v607
    %v951 = vunpack.c.l.b16 %v608
    %v952 = vunpack.c.h.b16 %v608
    %v953 = vunpack.c.l.b16 %v609
    %v954 = vunpack.c.h.b16 %v609
    %v955 = vunpack.c.l.b16 %v610
    %v956 = vunpack.c.h.b16 %v610
    %v957 = vunpack.c.l.b16 %v611
    %v958 = vunpack.c.h.b16 %v611
    %v959 = vunpack.c.l.b16 %v612
    %v960 = vunpack.c.h.b16 %v612
    %v961 = vunpack.c.l.b16 %v613
    %v962 = vunpack.c.h.b16 %v613
    %v963 = vunpack.c.l.b16 %v614
    %v964 = vunpack.c.h.b16 %v614
    %v965 = vunpack.c.l.b16 %v615
    %v966 = vunpack.c.h.b16 %v615
    %v967 = vunpack.c.l.b16 %v616
    %v968 = vunpack.c.h.b16 %v616
    %v969 = vunpack.c.l.b16 %v617
    %v970 = vunpack.c.h.b16 %v617
    %v971 = vunpack.c.l.b16 %v618
    %v972 = vunpack.c.h.b16 %v618
    %v973 = vunpack.c.l.b16 %v619
    %v974 = vunpack.c.h.b16 %v619
    %v975 = vunpack.c.l.b16 %v620
    %v976 = vunpack.c.h.b16 %v620
    %v977 = vunpack.c.l.b16 %v621
    %v978 = vunpack.c.h.b16 %v621
    %v979 = vunpack.c.l.b16 %v622
    %v980 = vunpack.c.h.b16 %v622
    %v981 = vunpack.c.l.b16 %v623
    %v982 = vunpack.c.h.b16 %v623
    %v983 = vunpack.c.l.b16 %v624
    %v984 = vunpack.c.h.b16 %v624
    %v985 = vunpack.c.l.b16 %v625
    %v986 = vunpack.c.h.b16 %v625
    %v987 = vunpack.c.l.b16 %v626
    %v988 = vunpack.c.h.b16 %v626
    %v989 = vunpack.c.l.b16 %v627
    %v990 = vunpack.c.h.b16 %v627
    %v991 = vunpack.c.l.b16 %v628
    %v992 = vunpack.c.h.b16 %v628
    %v993 = vunpack.c.l.b16 %v629
    %v994 = vunpack.c.h.b16 %v629
    %v995 = vunpack.c.l.b16 %v630
    %v996 = vunpack.c.h.b16 %v630
    %v997 = vunpack.c.l.b16 %v631
    %v998 = vunpack.c.h.b16 %v631
    %v999 = vunpack.c.l.b16 %v632
    %v1000 = vunpack.c.h.b16 %v632
    %v1001 = vunpack.c.l.b16 %v633
    %v1002 = vunpack.c.h.b16 %v633
    %v1003 = vunpack.c.l.b16 %v634
    %v1004 = vunpack.c.h.b16 %v634
    %v1005 = vunpack.c.l.b16 %v635
    %v1006 = vunpack.c.h.b16 %v635
    %v1007 = vunpack.c.l.b16 %v636
    %v1008 = vunpack.c.h.b16 %v636
    %v1009 = vunpack.c.l.b16 %v637
    %v1010 = vunpack.c.h.b16 %v637
    %v1011 = vunpack.c.l.b16 %v638
    %v1012 = vunpack.c.h.b16 %v638
    %v1013 = vunpack.c.l.b16 %v639
    %v1014 = vunpack.c.h.b16 %v639
    %v1015 = vunpack.c.l.b16 %v640
    %v1016 = vunpack.c.h.b16 %v640
    %v1017 = vunpack.c.l.b16 %v641
    %v1018 = vunpack.c.h.b16 %v641
    %v1019 = vunpack.c.l.b16 %v642
    %v1020 = vunpack.c.h.b16 %v642
    %v1021 = vunpack.c.l.b16 %v643
    %v1022 = vunpack.c.h.b16 %v643
    %v1023 = vunpack.c.l.b16 %v644
    %v1024 = vunpack.c.h.b16 %v644
    %v1025 = vunpack.c.l.b16 %v645
    %v1026 = vunpack.c.h.b16 %v645
    %v1027 = vunpack.c.l.b16 %v646
    %v1028 = vunpack.c.h.b16 %v646
    %v1029 = vunpack.c.l.b16 %v647
    %v1030 = vunpack.c.h.b16 %v647
    %v1031 = vunpack.c.l.b16 %v648
    %v1032 = vunpack.c.h.b16 %v648
    %v1033 = vunpack.c.l.b16 %v649
    %v1034 = vunpack.c.h.b16 %v649
    %v1035 = vunpack.c.l.b16 %v650
    %v1036 = vunpack.c.h.b16 %v650
    %v1037 = vunpack.c.l.b16 %v651
    %v1038 = vunpack.c.h.b16 %v651
    %v1039 = vunpack.c.l.b16 %v652
    %v1040 = vunpack.c.h.b16 %v652
    %v1041 = vunpack.c.l.b16 %v653
    %v1042 = vunpack.c.h.b16 %v653
    %v1043 = vunpack.c.l.b16 %v654
    %v1044 = vunpack.c.h.b16 %v654
    %v1045 = vunpack.c.l.b16 %v655
    %v1046 = vunpack.c.h.b16 %v655
    %v1047 = vunpack.c.l.b16 %v656
    %v1048 = vunpack.c.h.b16 %v656
    %v1049 = vunpack.c.l.b16 %v657
    %v1050 = vunpack.c.h.b16 %v657
    %v1051 = vunpack.c.l.b16 %v658
    %v1052 = vunpack.c.h.b16 %v658
    %v1053 = vunpack.c.l.b16 %v659
    %v1054 = vunpack.c.h.b16 %v659
    %v1055 = vunpack.c.l.b16 %v660
    %v1056 = vunpack.c.h.b16 %v660
    %v1057 = vunpack.c.l.b16 %v661
    %v1058 = vunpack.c.h.b16 %v661
    %v1059 = vunpack.c.l.b16 %v662
    %v1060 = vunpack.c.h.b16 %v662
    %v1061 = vunpack.c.l.b16 %v663
    %v1062 = vunpack.c.h.b16 %v663
    %v1063 = vunpack.c.l.b16 %v664
    %v1064 = vunpack.c.h.b16 %v664
    %v1065 = vunpack.c.l.b16 %v665
    %v1066 = vunpack.c.h.b16 %v665
    %v1067 = vunpack.c.l.b16 %v666
    %v1068 = vunpack.c.h.b16 %v666
    %v1069 = vunpack.c.l.b16 %v667
    %v1070 = vunpack.c.h.b16 %v667
    %v1071 = vunpack.c.l.b16 %v668
    %v1072 = vunpack.c.h.b16 %v668
    %v1073 = vunpack.c.l.b16 %v669
    %v1074 = vunpack.c.h.b16 %v669
    %v1075 = vunpack.c.l.b16 %v670
    %v1076 = vunpack.c.h.b16 %v670
    %v1077 = vunpack.c.l.b16 %v671
    %v1078 = vunpack.c.h.b16 %v671
    %v1079 = vunpack.c.l.b16 %v672
    %v1080 = vunpack.c.h.b16 %v672
    %v1081 = vunpack.c.l.b16 %v673
    %v1082 = vunpack.c.h.b16 %v673
    %v1083 = vunpack.c.l.b16 %v674
    %v1084 = vunpack.c.h.b16 %v674
    %v1085 = vunpack.c.l.b16 %v675
    %v1086 = vunpack.c.h.b16 %v675
    %v1087 = vunpack.c.l.b16 %v676
    %v1088 = vunpack.c.h.b16 %v676
    %v1089 = vunpack.c.l.b16 %v677
    %v1090 = vunpack.c.h.b16 %v677
    %v1091 = vunpack.c.l.b16 %v678
    %v1092 = vunpack.c.h.b16 %v678
    %v1093 = vunpack.c.l.b16 %v679
    %v1094 = vunpack.c.h.b16 %v679
    %v1095 = vpack.c.b16 %v843, %v839
    %v1096 = vpack.c.b16 %v844, %v840
    %v1097 = vpack.c.b16 %v845, %v841
    %v1098 = vpack.c.b16 %v846, %v842
    %v1099 = vpack.c.b16 %v851, %v847
    %v1100 = vpack.c.b16 %v852, %v848
    %v1101 = vpack.c.b16 %v853, %v849
    %v1102 = vpack.c.b16 %v854, %v850
    %v1103 = vpack.c.b16 %v859, %v855
    %v1104 = vpack.c.b16 %v860, %v856
    %v1105 = vpack.c.b16 %v861, %v857
    %v1106 = vpack.c.b16 %v862, %v858
    %v1107 = vpack.c.b16 %v867, %v863
    %v1108 = vpack.c.b16 %v868, %v864
    %v1109 = vpack.c.b16 %v869, %v865
    %v1110 = vpack.c.b16 %v870, %v866
    %v1111 = vpack.c.b16 %v875, %v871
    %v1112 = vpack.c.b16 %v876, %v872
    %v1113 = vpack.c.b16 %v877, %v873
    %v1114 = vpack.c.b16 %v878, %v874
    %v1115 = vpack.c.b16 %v883, %v879
    %v1116 = vpack.c.b16 %v884, %v880
    %v1117 = vpack.c.b16 %v885, %v881
    %v1118 = vpack.c.b16 %v886, %v882
    %v1119 = vpack.c.b16 %v891, %v887
    %v1120 = vpack.c.b16 %v892, %v888
    %v1121 = vpack.c.b16 %v893, %v889
    %v1122 = vpack.c.b16 %v894, %v890
    %v1123 = vpack.c.b16 %v899, %v895
    %v1124 = vpack.c.b16 %v900, %v896
    %v1125 = vpack.c.b16 %v901, %v897
    %v1126 = vpack.c.b16 %v902, %v898
    %v1127 = vpack.c.b16 %v907, %v903
    %v1128 = vpack.c.b16 %v908, %v904
    %v1129 = vpack.c.b16 %v909, %v905
    %v1130 = vpack.c.b16 %v910, %v906
    %v1131 = vpack.c.b16 %v915, %v911
    %v1132 = vpack.c.b16 %v916, %v912
    %v1133 = vpack.c.b16 %v917, %v913
    %v1134 = vpack.c.b16 %v918, %v914
    %v1135 = vpack.c.b16 %v923, %v919
    %v1136 = vpack.c.b16 %v924, %v920
    %v1137 = vpack.c.b16 %v925, %v921
    %v1138 = vpack.c.b16 %v926, %v922
    %v1139 = vpack.c.b16 %v931, %v927
    %v1140 = vpack.c.b16 %v932, %v928
    %v1141 = vpack.c.b16 %v933, %v929
    %v1142 = vpack.c.b16 %v934, %v930
    %v1143 = vpack.c.b16 %v939, %v935
    %v1144 = vpack.c.b16 %v940, %v936
    %v1145 = vpack.c.b16 %v941, %v937
    %v1146 = vpack.c.b16 %v942, %v938
    %v1147 = vpack.c.b16 %v947, %v943
    %v1148 = vpack.c.b16 %v948, %v944
    %v1149 = vpack.c.b16 %v949, %v945
    %v1150 = vpack.c.b16 %v950, %v946
    %v1151 = vpack.c.b16 %v955, %v951
    %v1152 = vpack.c.b16 %v956, %v952
    %v1153 = vpack.c.b16 %v957, %v953
    %v1154 = vpack.c.b16 %v958, %v954
    %v1155 = vpack.c.b16 %v963, %v959
    %v1156 = vpack.c.b16 %v964, %v960
    %v1157 = vpack.c.b16 %v965, %v961
    %v1158 = vpack.c.b16 %v966, %v962
    %v1159 = vpack.c.b16 %v971, %v967
    %v1160 = vpack.c.b16 %v972, %v968
    %v1161 = vpack.c.b16 %v973, %v969
    %v1162 = vpack.c.b16 %v974, %v970
    %v1163 = vpack.c.b16 %v979, %v975
    %v1164 = vpack.c.b16 %v980, %v976
    %v1165 = vpack.c.b16 %v981, %v977
    %v1166 = vpack.c.b16 %v982, %v978
    %v1167 = vpack.c.b16 %v987, %v983
    %v1168 = vpack.c.b16 %v988, %v984
    %v1169 = vpack.c.b16 %v989, %v985
    %v1170 = vpack.c.b16 %v990, %v986
    %v1171 = vpack.c.b16 %v995, %v991
    %v1172 = vpack.c.b16 %v996, %v992
    %v1173 = vpack.c.b16 %v997, %v993
    %v1174 = vpack.c.b16 %v998, %v994
    %v1175 = vpack.c.b16 %v1003, %v999
    %v1176 = vpack.c.b16 %v1004, %v1000
    %v1177 = vpack.c.b16 %v1005, %v1001
    %v1178 = vpack.c.b16 %v1006, %v1002
    %v1179 = vpack.c.b16 %v1011, %v1007
    %v1180 = vpack.c.b16 %v1012, %v1008
    %v1181 = vpack.c.b16 %v1013, %v1009
    %v1182 = vpack.c.b16 %v1014, %v1010
    %v1183 = vpack.c.b16 %v1019, %v1015
    %v1184 = vpack.c.b16 %v1020, %v1016
    %v1185 = vpack.c.b16 %v1021, %v1017
    %v1186 = vpack.c.b16 %v1022, %v1018
    %v1187 = vpack.c.b16 %v1027, %v1023
    %v1188 = vpack.c.b16 %v1028, %v1024
    %v1189 = vpack.c.b16 %v1029, %v1025
    %v1190 = vpack.c.b16 %v1030, %v1026
    %v1191 = vpack.c.b16 %v1035, %v1031
    %v1192 = vpack.c.b16 %v1036, %v1032
    %v1193 = vpack.c.b16 %v1037, %v1033
    %v1194 = vpack.c.b16 %v1038, %v1034
    %v1195 = vpack.c.b16 %v1043, %v1039
    %v1196 = vpack.c.b16 %v1044, %v1040
    %v1197 = vpack.c.b16 %v1045, %v1041
    %v1198 = vpack.c.b16 %v1046, %v1042
    %v1199 = vpack.c.b16 %v1051, %v1047
    %v1200 = vpack.c.b16 %v1052, %v1048
    %v1201 = vpack.c.b16 %v1053, %v1049
    %v1202 = vpack.c.b16 %v1054, %v1050
    %v1203 = vpack.c.b16 %v1059, %v1055
    %v1204 = vpack.c.b16 %v1060, %v1056
    %v1205 = vpack.c.b16 %v1061, %v1057
    %v1206 = vpack.c.b16 %v1062, %v1058
    %v1207 = vpack.c.b16 %v1067, %v1063
    %v1208 = vpack.c.b16 %v1068, %v1064
    %v1209 = vpack.c.b16 %v1069, %v1065
    %v1210 = vpack.c.b16 %v1070, %v1066
    %v1211 = vpack.c.b16 %v1075, %v1071
    %v1212 = vpack.c.b16 %v1076, %v1072
    %v1213 = vpack.c.b16 %v1077, %v1073
    %v1214 = vpack.c.b16 %v1078, %v1074
    %v1215 = vpack.c.b16 %v1083, %v1079
    %v1216 = vpack.c.b16 %v1084, %v1080
    %v1217 = vpack.c.b16 %v1085, %v1081
    %v1218 = vpack.c.b16 %v1086, %v1082
    %v1219 = vpack.c.b16 %v1091, %v1087
    %v1220 = vpack.c.b16 %v1092, %v1088
    %v1221 = vpack.c.b16 %v1093, %v1089
    %v1222 = vpack.c.b16 %v1094, %v1090
    %1351 = vmatprep.subr.bf16.mxu0 %v1096
    %1352 = vmatpush1.bf16.msra.mxu0 %v1095
    %1353 = vmatprep.subr.bf16.mxu0 %v1100
    %1354 = vmatpush1.bf16.msra.mxu0 %v1099
    %1355 = vmatprep.subr.bf16.mxu0 %v1104
    %1356 = vmatpush1.bf16.msra.mxu0 %v1103
    %1357 = vmatprep.subr.bf16.mxu0 %v1108
    %1358 = vmatpush1.bf16.msra.mxu0 %v1107
    %1359 = vmatprep.subr.bf16.mxu0 %v1112
    %1360 = vmatpush1.bf16.msra.mxu0 %v1111
    %1361 = vmatprep.subr.bf16.mxu0 %v1116
    %1362 = vmatpush1.bf16.msra.mxu0 %v1115
    %1363 = vmatprep.subr.bf16.mxu0 %v1120
    %1364 = vmatpush1.bf16.msra.mxu0 %v1119
    %1365 = vmatprep.subr.bf16.mxu0 %v1124
    %1366 = vmatpush1.bf16.msra.mxu0 %v1123
    %1367 = vmatprep.subr.bf16.mxu0 %v1128
    %1368 = vmatpush1.bf16.msra.mxu0 %v1127
    %1369 = vmatprep.subr.bf16.mxu0 %v1132
    %1370 = vmatpush1.bf16.msra.mxu0 %v1131
    %1371 = vmatprep.subr.bf16.mxu0 %v1136
    %1372 = vmatpush1.bf16.msra.mxu0 %v1135
    %1373 = vmatprep.subr.bf16.mxu0 %v1140
    %1374 = vmatpush1.bf16.msra.mxu0 %v1139
    %1375 = vmatprep.subr.bf16.mxu0 %v1144
    %1376 = vmatpush1.bf16.msra.mxu0 %v1143
    %1377 = vmatprep.subr.bf16.mxu0 %v1148
    %1378 = vmatpush1.bf16.msra.mxu0 %v1147
    %1379 = vmatprep.subr.bf16.mxu0 %v1152
    %1380 = vmatpush1.bf16.msra.mxu0 %v1151
    %1381 = vmatprep.subr.bf16.mxu0 %v1156
    %1382 = vmatpush1.bf16.msra.mxu0 %v1155
    %1383 = vmatprep.mubr.bf16.mxu0 %v687
    %1384 = vmatmul.mubr.bf16.gmra.mrb[0].mxu0 %v686
    %v1385 = vpop.f32.mrb[0].mxu0
    %v1386 = vadd.f32 %v694, %v1385
    %v1387 = vpop.f32.mrb[0].mxu0
    %v1388 = vadd.f32 %v698, %v1387
    %v1389 = vpop.f32.mrb[0].mxu0
    %v1390 = vpop.f32.mrb[0].mxu0
    %1391 = vdwg.mxu0
    %1392 = vmatprep.subr.bf16.mxu0 %v1160
    %1393 = vmatpush1.bf16.msra.mxu0 %v1159
    %1394 = vmatprep.subr.bf16.mxu0 %v1164
    %1395 = vmatpush1.bf16.msra.mxu0 %v1163
    %1396 = vmatprep.subr.bf16.mxu0 %v1168
    %1397 = vmatpush1.bf16.msra.mxu0 %v1167
    %1398 = vmatprep.subr.bf16.mxu0 %v1172
    %1399 = vmatpush1.bf16.msra.mxu0 %v1171
    %1400 = vmatprep.subr.bf16.mxu0 %v1176
    %1401 = vmatpush1.bf16.msra.mxu0 %v1175
    %1402 = vmatprep.subr.bf16.mxu0 %v1180
    %1403 = vmatpush1.bf16.msra.mxu0 %v1179
    %1404 = vmatprep.subr.bf16.mxu0 %v1184
    %1405 = vmatpush1.bf16.msra.mxu0 %v1183
    %1406 = vmatprep.subr.bf16.mxu0 %v1188
    %1407 = vmatpush1.bf16.msra.mxu0 %v1187
    %1408 = vmatprep.subr.bf16.mxu0 %v1192
    %1409 = vmatpush1.bf16.msra.mxu0 %v1191
    %1410 = vmatprep.subr.bf16.mxu0 %v1196
    %1411 = vmatpush1.bf16.msra.mxu0 %v1195
    %1412 = vmatprep.subr.bf16.mxu0 %v1200
    %1413 = vmatpush1.bf16.msra.mxu0 %v1199
    %1414 = vmatprep.subr.bf16.mxu0 %v1204
    %1415 = vmatpush1.bf16.msra.mxu0 %v1203
    %1416 = vmatprep.subr.bf16.mxu0 %v1208
    %1417 = vmatpush1.bf16.msra.mxu0 %v1207
    %1418 = vmatprep.subr.bf16.mxu0 %v1212
    %1419 = vmatpush1.bf16.msra.mxu0 %v1211
    %1420 = vmatprep.subr.bf16.mxu0 %v1216
    %1421 = vmatpush1.bf16.msra.mxu0 %v1215
    %1422 = vmatprep.subr.bf16.mxu0 %v1220
    %1423 = vmatpush1.bf16.msra.mxu0 %v1219
    %1424 = vmatprep.mubr.bf16.mxu0 %v689
    %1425 = vmatmul.mubr.bf16.gmra.mrb[0].mxu0 %v688
    %v1426 = vpop.f32.mrb[0].mxu0
    %v1427 = vadd.f32 %v1386, %v1426
    %v1428 = vpop.f32.mrb[0].mxu0
    %v1429 = vadd.f32 %v1388, %v1428
    %v1430 = vpop.f32.mrb[0].mxu0
    %v1431 = vpop.f32.mrb[0].mxu0
    %1432 = vdwg.mxu0
    %1433 = vmatprep.subr.bf16.mxu0 %v1098
    %1434 = vmatpush1.bf16.msra.mxu0 %v1097
    %1435 = vmatprep.subr.bf16.mxu0 %v1102
    %1436 = vmatpush1.bf16.msra.mxu0 %v1101
    %1437 = vmatprep.subr.bf16.mxu0 %v1106
    %1438 = vmatpush1.bf16.msra.mxu0 %v1105
    %1439 = vmatprep.subr.bf16.mxu0 %v1110
    %1440 = vmatpush1.bf16.msra.mxu0 %v1109
    %1441 = vmatprep.subr.bf16.mxu0 %v1114
    %1442 = vmatpush1.bf16.msra.mxu0 %v1113
    %1443 = vmatprep.subr.bf16.mxu0 %v1118
    %1444 = vmatpush1.bf16.msra.mxu0 %v1117
    %1445 = vmatprep.subr.bf16.mxu0 %v1122
    %1446 = vmatpush1.bf16.msra.mxu0 %v1121
    %1447 = vmatprep.subr.bf16.mxu0 %v1126
    %1448 = vmatpush1.bf16.msra.mxu0 %v1125
    %1449 = vmatprep.subr.bf16.mxu0 %v1130
    %1450 = vmatpush1.bf16.msra.mxu0 %v1129
    %1451 = vmatprep.subr.bf16.mxu0 %v1134
    %1452 = vmatpush1.bf16.msra.mxu0 %v1133
    %1453 = vmatprep.subr.bf16.mxu0 %v1138
    %1454 = vmatpush1.bf16.msra.mxu0 %v1137
    %1455 = vmatprep.subr.bf16.mxu0 %v1142
    %1456 = vmatpush1.bf16.msra.mxu0 %v1141
    %1457 = vmatprep.subr.bf16.mxu0 %v1146
    %1458 = vmatpush1.bf16.msra.mxu0 %v1145
    %1459 = vmatprep.subr.bf16.mxu0 %v1150
    %1460 = vmatpush1.bf16.msra.mxu0 %v1149
    %1461 = vmatprep.subr.bf16.mxu0 %v1154
    %1462 = vmatpush1.bf16.msra.mxu0 %v1153
    %1463 = vmatprep.subr.bf16.mxu0 %v1158
    %1464 = vmatpush1.bf16.msra.mxu0 %v1157
    %1465 = vmatprep.mubr.bf16.mxu0 %v687
    %1466 = vmatmul.mubr.bf16.gmra.mrb[0].mxu0 %v686
    %v1467 = vpop.f32.mrb[0].mxu0
    %v1468 = vadd.f32 %v702, %v1467
    %v1469 = vpop.f32.mrb[0].mxu0
    %v1470 = vadd.f32 %v706, %v1469
    %v1471 = vpop.f32.mrb[0].mxu0
    %v1472 = vpop.f32.mrb[0].mxu0
    %1473 = vdwg.mxu0
    %1474 = vmatprep.subr.bf16.mxu0 %v1162
    %1475 = vmatpush1.bf16.msra.mxu0 %v1161
    %1476 = vmatprep.subr.bf16.mxu0 %v1166
    %1477 = vmatpush1.bf16.msra.mxu0 %v1165
    %1478 = vmatprep.subr.bf16.mxu0 %v1170
    %1479 = vmatpush1.bf16.msra.mxu0 %v1169
    %1480 = vmatprep.subr.bf16.mxu0 %v1174
    %1481 = vmatpush1.bf16.msra.mxu0 %v1173
    %1482 = vmatprep.subr.bf16.mxu0 %v1178
    %1483 = vmatpush1.bf16.msra.mxu0 %v1177
    %1484 = vmatprep.subr.bf16.mxu0 %v1182
    %1485 = vmatpush1.bf16.msra.mxu0 %v1181
    %1486 = vmatprep.subr.bf16.mxu0 %v1186
    %1487 = vmatpush1.bf16.msra.mxu0 %v1185
    %1488 = vmatprep.subr.bf16.mxu0 %v1190
    %1489 = vmatpush1.bf16.msra.mxu0 %v1189
    %1490 = vmatprep.subr.bf16.mxu0 %v1194
    %1491 = vmatpush1.bf16.msra.mxu0 %v1193
    %1492 = vmatprep.subr.bf16.mxu0 %v1198
    %1493 = vmatpush1.bf16.msra.mxu0 %v1197
    %1494 = vmatprep.subr.bf16.mxu0 %v1202
    %1495 = vmatpush1.bf16.msra.mxu0 %v1201
    %1496 = vmatprep.subr.bf16.mxu0 %v1206
    %1497 = vmatpush1.bf16.msra.mxu0 %v1205
    %1498 = vmatprep.subr.bf16.mxu0 %v1210
    %1499 = vmatpush1.bf16.msra.mxu0 %v1209
    %1500 = vmatprep.subr.bf16.mxu0 %v1214
    %1501 = vmatpush1.bf16.msra.mxu0 %v1213
    %1502 = vmatprep.subr.bf16.mxu0 %v1218
    %1503 = vmatpush1.bf16.msra.mxu0 %v1217
    %1504 = vmatprep.subr.bf16.mxu0 %v1222
    %1505 = vmatpush1.bf16.msra.mxu0 %v1221
    %1506 = vmatprep.mubr.bf16.mxu0 %v689
    %1507 = vmatmul.mubr.bf16.gmra.mrb[0].mxu0 %v688
    %v1508 = vpop.f32.mrb[0].mxu0
    %v1509 = vadd.f32 %v1468, %v1508
    %v1510 = vpop.f32.mrb[0].mxu0
    %v1511 = vadd.f32 %v1470, %v1510
    %v1512 = vpop.f32.mrb[0].mxu0
    %v1513 = vpop.f32.mrb[0].mxu0
    %1514 = vdwg.mxu0
    %vm1515 = vcmp.gt.f32.partialorder %v1427, 0.0
    %vm1516 = vcmp.gt.f32.partialorder %v1429, 0.0
    %vm1517 = vcmp.gt.f32.partialorder %v1509, 0.0
    %vm1518 = vcmp.gt.f32.partialorder %v1511, 0.0
    %v1519 = vmul.f32 %v1427, 0.01
    %v1520 = vmul.f32 %v1429, 0.01
    %v1521 = vmul.f32 %v1509, 0.01
    %v1522 = vmul.f32 %v1511, 0.01
    %v1523 = vsel %vm1515, %v1427, %v1519
    %v1524 = vsel %vm1516, %v1429, %v1520
    %v1525 = vsel %vm1517, %v1509, %v1521
    %v1526 = vsel %vm1518, %v1511, %v1522
    %v1527 = vrot.slane %v1523, 4
    %v1528 = vadd.f32 %v1523, %v1527
    %v1529 = vrot.slane %v1528, 2
    %v1530 = vadd.f32 %v1528, %v1529
    %v1531 = vrot.slane %v1530, 1
    %v1532 = vadd.f32 %v1530, %v1531
    %v1533 = vrot.slane %v1524, 4
    %v1534 = vadd.f32 %v1524, %v1533
    %v1535 = vrot.slane %v1534, 2
    %v1536 = vadd.f32 %v1534, %v1535
    %v1537 = vrot.slane %v1536, 1
    %v1538 = vadd.f32 %v1536, %v1537
    %v1539 = vrot.slane %v1525, 4
    %v1540 = vadd.f32 %v1525, %v1539
    %v1541 = vrot.slane %v1540, 2
    %v1542 = vadd.f32 %v1540, %v1541
    %v1543 = vrot.slane %v1542, 1
    %v1544 = vadd.f32 %v1542, %v1543
    %v1545 = vrot.slane %v1526, 4
    %v1546 = vadd.f32 %v1526, %v1545
    %v1547 = vrot.slane %v1546, 2
    %v1548 = vadd.f32 %v1546, %v1547
    %v1549 = vrot.slane %v1548, 1
    %v1550 = vadd.f32 %v1548, %v1549
    %v1551 = vmul.f32 %v1532, 0.125
    %v1552 = vmul.f32 %v1538, 0.125
    %v1553 = vmul.f32 %v1544, 0.125
    %v1554 = vmul.f32 %v1550, 0.125
    %v1555 = vmul.f32 %v1523, %v1523
    %v1556 = vmul.f32 %v1524, %v1524
    %v1557 = vmul.f32 %v1525, %v1525
    %v1558 = vmul.f32 %v1526, %v1526
    %v1559 = vrot.slane %v1555, 4
    %v1560 = vadd.f32 %v1555, %v1559
    %v1561 = vrot.slane %v1560, 2
    %v1562 = vadd.f32 %v1560, %v1561
    %v1563 = vrot.slane %v1562, 1
    %v1564 = vadd.f32 %v1562, %v1563
    %v1565 = vrot.slane %v1556, 4
    %v1566 = vadd.f32 %v1556, %v1565
    %v1567 = vrot.slane %v1566, 2
    %v1568 = vadd.f32 %v1566, %v1567
    %v1569 = vrot.slane %v1568, 1
    %v1570 = vadd.f32 %v1568, %v1569
    %v1571 = vrot.slane %v1557, 4
    %v1572 = vadd.f32 %v1557, %v1571
    %v1573 = vrot.slane %v1572, 2
    %v1574 = vadd.f32 %v1572, %v1573
    %v1575 = vrot.slane %v1574, 1
    %v1576 = vadd.f32 %v1574, %v1575
    %v1577 = vrot.slane %v1558, 4
    %v1578 = vadd.f32 %v1558, %v1577
    %v1579 = vrot.slane %v1578, 2
    %v1580 = vadd.f32 %v1578, %v1579
    %v1581 = vrot.slane %v1580, 1
    %v1582 = vadd.f32 %v1580, %v1581
    %v1583 = vmul.f32 %v1564, 0.125
    %v1584 = vmul.f32 %v1570, 0.125
    %v1585 = vmul.f32 %v1576, 0.125
    %v1586 = vmul.f32 %v1582, 0.125
    %v1587 = vmul.f32 %v1551, %v1551
    %v1588 = vmul.f32 %v1552, %v1552
    %v1589 = vmul.f32 %v1553, %v1553
    %v1590 = vmul.f32 %v1554, %v1554
    %v1591 = vsub.f32 %v1583, %v1587
    %v1592 = vsub.f32 %v1584, %v1588
    %v1593 = vsub.f32 %v1585, %v1589
    %v1594 = vsub.f32 %v1586, %v1590
    %v1595 = vmax.f32 %v1591, 0.0
    %v1596 = vmax.f32 %v1592, 0.0
    %v1597 = vmax.f32 %v1593, 0.0
    %v1598 = vmax.f32 %v1594, 0.0
    %v1599 = vadd.f32 %v1595, 1e-05
    %v1600 = vadd.f32 %v1596, 1e-05
    %v1601 = vadd.f32 %v1597, 1e-05
    %v1602 = vadd.f32 %v1598, 1e-05
    %v1603 = vrsqrt.pop %v1599
    %v1604 = vrsqrt.pop %v1600
    %v1605 = vrsqrt.pop %v1601
    %v1606 = vrsqrt.pop %v1602
    %v1611 = vcombine.low %v1603, %v1604
    %v1612 = vcombine.low %v1605, %v1606
    %v1614 = vunpack.c.l.s4 1966171168
    %v1615 = vunpack.c.0.s8 %v1614
    %v1616 = vlaneseq
    %v1617 = vshrl.u32 %v1616, 7
    %v1618 = vsub.s32 %v1615, %v1617
    %v1619 = vrot.slane %v1611, %v1618
    %v1621 = vunpack.c.l.s4 1966171168
    %v1622 = vunpack.c.0.s8 %v1621
    %v1623 = vlaneseq
    %v1624 = vshrl.u32 %v1623, 7
    %v1625 = vsub.s32 %v1622, %v1624
    %v1626 = vrot.slane %v1612, %v1625
    %v1627 = vcombine.low %v1619, %v1626
    %v1629 = vunpack.c.l.s4 1966171168
    %v1630 = vunpack.c.0.s8 %v1629
    %v1631 = vlaneseq
    %v1632 = vshrl.u32 %v1631, 7
    %v1633 = vsub.s32 %v1630, %v1632
    %v1634 = vrot.slane %v1627, %v1633
    %v1636 = vmul.f32 %v683, %v1634
    %v1638 = vlaneseq
    %v1639 = vshrl.u32 %v1638, 7
    %v1640 = vsub.s32 0, %v1639
    %v1641 = vrot.slane %v1636, %v1640
    %v1642 = vlaneseq
    %v1643 = vshrl.u32 %v1642, 7
    %v1644 = vsub.s32 1, %v1643
    %v1645 = vrot.slane %v1636, %v1644
    %v1646 = vlaneseq
    %v1647 = vshrl.u32 %v1646, 7
    %v1648 = vsub.s32 2, %v1647
    %v1649 = vrot.slane %v1636, %v1648
    %v1650 = vlaneseq
    %v1651 = vshrl.u32 %v1650, 7
    %v1652 = vsub.s32 3, %v1651
    %v1653 = vrot.slane %v1636, %v1652
    %v1658 = vmul.f32 %v1551, %v1641
    %v1659 = vmul.f32 %v1552, %v1645
    %v1660 = vmul.f32 %v1553, %v1649
    %v1661 = vmul.f32 %v1554, %v1653
    %v1666 = vcombine.low %v1658, %v1659
    %v1667 = vcombine.low %v1660, %v1661
    %v1669 = vunpack.c.l.s4 1966171168
    %v1670 = vunpack.c.0.s8 %v1669
    %v1671 = vlaneseq
    %v1672 = vshrl.u32 %v1671, 7
    %v1673 = vsub.s32 %v1670, %v1672
    %v1674 = vrot.slane %v1666, %v1673
    %v1676 = vunpack.c.l.s4 1966171168
    %v1677 = vunpack.c.0.s8 %v1676
    %v1678 = vlaneseq
    %v1679 = vshrl.u32 %v1678, 7
    %v1680 = vsub.s32 %v1677, %v1679
    %v1681 = vrot.slane %v1667, %v1680
    %v1682 = vcombine.low %v1674, %v1681
    %v1684 = vunpack.c.l.s4 1966171168
    %v1685 = vunpack.c.0.s8 %v1684
    %v1686 = vlaneseq
    %v1687 = vshrl.u32 %v1686, 7
    %v1688 = vsub.s32 %v1685, %v1687
    %v1689 = vrot.slane %v1682, %v1688
    %v1691 = vsub.f32 %v685, %v1689
    %v1692 = vmul.f32 %v1523, %v1641
    %v1693 = vmul.f32 %v1524, %v1645
    %v1694 = vmul.f32 %v1525, %v1649
    %v1695 = vmul.f32 %v1526, %v1653
    %v1697 = vlaneseq
    %v1698 = vshrl.u32 %v1697, 7
    %v1699 = vsub.s32 0, %v1698
    %v1700 = vrot.slane %v1691, %v1699
    %v1701 = vlaneseq
    %v1702 = vshrl.u32 %v1701, 7
    %v1703 = vsub.s32 1, %v1702
    %v1704 = vrot.slane %v1691, %v1703
    %v1705 = vlaneseq
    %v1706 = vshrl.u32 %v1705, 7
    %v1707 = vsub.s32 2, %v1706
    %v1708 = vrot.slane %v1691, %v1707
    %v1709 = vlaneseq
    %v1710 = vshrl.u32 %v1709, 7
    %v1711 = vsub.s32 3, %v1710
    %v1712 = vrot.slane %v1691, %v1711
    %v1717 = vadd.f32 %v1692, %v1700
    %v1718 = vadd.f32 %v1693, %v1704
    %v1719 = vadd.f32 %v1694, %v1708
    %v1720 = vadd.f32 %v1695, %v1712
    %v1721 = vld [vmem:[#allocation2 + $0x500] sm:$0xff]
    %v1722 = vld [vmem:[#allocation2 + $0x508] sm:$0xf]
    %v1723 = vld [vmem:[#allocation2 + $0x510] sm:$0xff]
    %v1724 = vld [vmem:[#allocation2 + $0x518] sm:$0xf]
    %v1725 = vld [vmem:[#allocation2 + $0x520] sm:$0xff]
    %v1726 = vld [vmem:[#allocation2 + $0x528] sm:$0xf]
    %v1727 = vld [vmem:[#allocation2 + $0x530] sm:$0xff]
    %v1728 = vld [vmem:[#allocation2 + $0x538] sm:$0xf]
    %v1729 = vld [vmem:[#allocation2 + $0x540] sm:$0xff]
    %v1730 = vld [vmem:[#allocation2 + $0x548] sm:$0xf]
    %v1731 = vld [vmem:[#allocation2 + $0x550] sm:$0xff]
    %v1732 = vld [vmem:[#allocation2 + $0x558] sm:$0xf]
    %v1733 = vld [vmem:[#allocation2 + $0x560] sm:$0xff]
    %v1734 = vld [vmem:[#allocation2 + $0x568] sm:$0xf]
    %v1735 = vld [vmem:[#allocation2 + $0x570] sm:$0xff]
    %v1736 = vld [vmem:[#allocation2 + $0x578] sm:$0xf]
    %v1737 = vld [vmem:[#allocation2 + $0x580] sm:$0xff]
    %v1738 = vld [vmem:[#allocation2 + $0x588] sm:$0xf]
    %v1739 = vld [vmem:[#allocation2 + $0x590] sm:$0xff]
    %v1740 = vld [vmem:[#allocation2 + $0x598] sm:$0xf]
    %v1741 = vld [vmem:[#allocation2 + $0x5a0] sm:$0xff]
    %v1742 = vld [vmem:[#allocation2 + $0x5a8] sm:$0xf]
    %v1743 = vld [vmem:[#allocation2 + $0x5b0] sm:$0xff]
    %v1744 = vld [vmem:[#allocation2 + $0x5b8] sm:$0xf]
    %v1745 = vld [vmem:[#allocation2 + $0x5c0] sm:$0xff]
    %v1746 = vld [vmem:[#allocation2 + $0x5c8] sm:$0xf]
    %v1747 = vld [vmem:[#allocation2 + $0x5d0] sm:$0xff]
    %v1748 = vld [vmem:[#allocation2 + $0x5d8] sm:$0xf]
    %v1749 = vld [vmem:[#allocation2 + $0x5e0] sm:$0xff]
    %v1750 = vld [vmem:[#allocation2 + $0x5e8] sm:$0xf]
    %v1751 = vld [vmem:[#allocation2 + $0x5f0] sm:$0xff]
    %v1752 = vld [vmem:[#allocation2 + $0x5f8] sm:$0xf]
    %v1753 = vld [vmem:[#allocation2 + $0x600] sm:$0xff]
    %v1754 = vld [vmem:[#allocation2 + $0x608] sm:$0xf]
    %v1755 = vld [vmem:[#allocation2 + $0x610] sm:$0xff]
    %v1756 = vld [vmem:[#allocation2 + $0x618] sm:$0xf]
    %v1757 = vld [vmem:[#allocation2 + $0x620] sm:$0xff]
    %v1758 = vld [vmem:[#allocation2 + $0x628] sm:$0xf]
    %v1759 = vld [vmem:[#allocation2 + $0x630] sm:$0xff]
    %v1760 = vld [vmem:[#allocation2 + $0x638] sm:$0xf]
    %v1761 = vld [vmem:[#allocation2 + $0x640] sm:$0xff]
    %v1762 = vld [vmem:[#allocation2 + $0x648] sm:$0xf]
    %v1763 = vld [vmem:[#allocation2 + $0x650] sm:$0xff]
    %v1764 = vld [vmem:[#allocation2 + $0x658] sm:$0xf]
    %v1765 = vld [vmem:[#allocation2 + $0x660] sm:$0xff]
    %v1766 = vld [vmem:[#allocation2 + $0x668] sm:$0xf]
    %v1767 = vld [vmem:[#allocation2 + $0x670] sm:$0xff]
    %v1768 = vld [vmem:[#allocation2 + $0x678] sm:$0xf]
    %v1769 = vld [vmem:[#allocation2 + $0x680] sm:$0xff]
    %v1770 = vld [vmem:[#allocation2 + $0x688] sm:$0xf]
    %v1771 = vld [vmem:[#allocation2 + $0x690] sm:$0xff]
    %v1772 = vld [vmem:[#allocation2 + $0x698] sm:$0xf]
    %v1773 = vld [vmem:[#allocation2 + $0x6a0] sm:$0xff]
    %v1774 = vld [vmem:[#allocation2 + $0x6a8] sm:$0xf]
    %v1775 = vld [vmem:[#allocation2 + $0x6b0] sm:$0xff]
    %v1776 = vld [vmem:[#allocation2 + $0x6b8] sm:$0xf]
    %v1777 = vld [vmem:[#allocation2 + $0x6c0] sm:$0xff]
    %v1778 = vld [vmem:[#allocation2 + $0x6c8] sm:$0xf]
    %v1779 = vld [vmem:[#allocation2 + $0x6d0] sm:$0xff]
    %v1780 = vld [vmem:[#allocation2 + $0x6d8] sm:$0xf]
    %v1781 = vld [vmem:[#allocation2 + $0x6e0] sm:$0xff]
    %v1782 = vld [vmem:[#allocation2 + $0x6e8] sm:$0xf]
    %v1783 = vld [vmem:[#allocation2 + $0x6f0] sm:$0xff]
    %v1784 = vld [vmem:[#allocation2 + $0x6f8] sm:$0xf]
    %v1785 = vld [vmem:[#allocation2 + $0x700] sm:$0xff]
    %v1786 = vld [vmem:[#allocation2 + $0x708] sm:$0xf]
    %v1787 = vld [vmem:[#allocation2 + $0x710] sm:$0xff]
    %v1788 = vld [vmem:[#allocation2 + $0x718] sm:$0xf]
    %v1789 = vld [vmem:[#allocation2 + $0x720] sm:$0xff]
    %v1790 = vld [vmem:[#allocation2 + $0x728] sm:$0xf]
    %v1791 = vld [vmem:[#allocation2 + $0x730] sm:$0xff]
    %v1792 = vld [vmem:[#allocation2 + $0x738] sm:$0xf]
    %v1793 = vld [vmem:[#allocation2 + $0x740] sm:$0xff]
    %v1794 = vld [vmem:[#allocation2 + $0x748] sm:$0xf]
    %v1795 = vld [vmem:[#allocation2 + $0x750] sm:$0xff]
    %v1796 = vld [vmem:[#allocation2 + $0x758] sm:$0xf]
    %v1797 = vld [vmem:[#allocation2 + $0x760] sm:$0xff]
    %v1798 = vld [vmem:[#allocation2 + $0x768] sm:$0xf]
    %v1799 = vld [vmem:[#allocation2 + $0x770] sm:$0xff]
    %v1800 = vld [vmem:[#allocation2 + $0x778] sm:$0xf]
    %v1801 = vld [vmem:[#allocation2 + $0x780] sm:$0xff]
    %v1802 = vld [vmem:[#allocation2 + $0x788] sm:$0xf]
    %v1803 = vld [vmem:[#allocation2 + $0x790] sm:$0xff]
    %v1804 = vld [vmem:[#allocation2 + $0x798] sm:$0xf]
    %v1805 = vld [vmem:[#allocation2 + $0x7a0] sm:$0xff]
    %v1806 = vld [vmem:[#allocation2 + $0x7a8] sm:$0xf]
    %v1807 = vld [vmem:[#allocation2 + $0x7b0] sm:$0xff]
    %v1808 = vld [vmem:[#allocation2 + $0x7b8] sm:$0xf]
    %v1809 = vld [vmem:[#allocation2 + $0x7c0] sm:$0xff]
    %v1810 = vld [vmem:[#allocation2 + $0x7c8] sm:$0xf]
    %v1811 = vld [vmem:[#allocation2 + $0x7d0] sm:$0xff]
    %v1812 = vld [vmem:[#allocation2 + $0x7d8] sm:$0xf]
    %v1813 = vld [vmem:[#allocation2 + $0x7e0] sm:$0xff]
    %v1814 = vld [vmem:[#allocation2 + $0x7e8] sm:$0xf]
    %v1815 = vld [vmem:[#allocation2 + $0x7f0] sm:$0xff]
    %v1816 = vld [vmem:[#allocation2 + $0x7f8] sm:$0xf]
    %v1817 = vld [vmem:[#allocation2 + $0x800] sm:$0xff]
    %v1818 = vld [vmem:[#allocation2 + $0x808] sm:$0xf]
    %v1819 = vld [vmem:[#allocation2 + $0x810] sm:$0xff]
    %v1820 = vld [vmem:[#allocation2 + $0x818] sm:$0xf]
    %v1821 = vld [vmem:[#allocation2 + $0x820] sm:$0xff]
    %v1822 = vld [vmem:[#allocation2 + $0x828] sm:$0xf]
    %v1823 = vld [vmem:[#allocation2 + $0x830] sm:$0xff]
    %v1824 = vld [vmem:[#allocation2 + $0x838] sm:$0xf]
    %v1825 = vld [vmem:[#allocation2 + $0x840] sm:$0xff]
    %v1826 = vld [vmem:[#allocation2 + $0x848] sm:$0xf]
    %v1827 = vld [vmem:[#allocation2 + $0x850] sm:$0xff]
    %v1828 = vld [vmem:[#allocation2 + $0x858] sm:$0xf]
    %v1829 = vld [vmem:[#allocation2 + $0x860] sm:$0xff]
    %v1830 = vld [vmem:[#allocation2 + $0x868] sm:$0xf]
    %v1831 = vld [vmem:[#allocation2 + $0x870] sm:$0xff]
    %v1832 = vld [vmem:[#allocation2 + $0x878] sm:$0xf]
    %v1833 = vld [vmem:[#allocation2 + $0x880] sm:$0xff]
    %v1834 = vld [vmem:[#allocation2 + $0x888] sm:$0xf]
    %v1835 = vld [vmem:[#allocation2 + $0x890] sm:$0xff]
    %v1836 = vld [vmem:[#allocation2 + $0x898] sm:$0xf]
    %v1837 = vld [vmem:[#allocation2 + $0x8a0] sm:$0xff]
    %v1838 = vld [vmem:[#allocation2 + $0x8a8] sm:$0xf]
    %v1839 = vld [vmem:[#allocation2 + $0x8b0] sm:$0xff]
    %v1840 = vld [vmem:[#allocation2 + $0x8b8] sm:$0xf]
    %v1841 = vld [vmem:[#allocation2 + $0x8c0] sm:$0xff]
    %v1842 = vld [vmem:[#allocation2 + $0x8c8] sm:$0xf]
    %v1843 = vld [vmem:[#allocation2 + $0x8d0] sm:$0xff]
    %v1844 = vld [vmem:[#allocation2 + $0x8d8] sm:$0xf]
    %v1845 = vld [vmem:[#allocation2 + $0x8e0] sm:$0xff]
    %v1846 = vld [vmem:[#allocation2 + $0x8e8] sm:$0xf]
    %v1847 = vld [vmem:[#allocation2 + $0x8f0] sm:$0xff]
    %v1848 = vld [vmem:[#allocation2 + $0x8f8] sm:$0xf]
    %s1849 = scalar_lea.vmem [#allocation5], 6
    %v1850 = vld [vmem:[%s1849] ss:$8 sm:$0x7]
    %s1851 = scalar_lea.vmem [#allocation5], 7
    %v1852 = vld [vmem:[%s1851] ss:$8 sm:$0x7]
    %s1853 = scalar_lea.vmem [#allocation5], 32
    %v1854 = vld [vmem:[%s1853] ss:$8 sm:$0x7]
    %v1855 = vpack.c.bf16 %v1717, %v1717
    %v1856 = vpack.c.bf16 %v1718, %v1718
    %v1857 = vpack.c.bf16 %v1719, %v1719
    %v1858 = vpack.c.bf16 %v1720, %v1720
    %v1860 = vlaneseq
    %v1861 = vshrl.u32 %v1860, 7
    %v1862 = vsub.s32 0, %v1861
    %v1863 = vrot.slane %v1850, %v1862
    %v1864 = vlaneseq
    %v1865 = vshrl.u32 %v1864, 7
    %v1866 = vsub.s32 1, %v1865
    %v1867 = vrot.slane %v1850, %v1866
    %v1868 = vlaneseq
    %v1869 = vshrl.u32 %v1868, 7
    %v1870 = vsub.s32 2, %v1869
    %v1871 = vrot.slane %v1850, %v1870
    %v2003 = vunpack.c.l.b16 %v1721
    %v2004 = vunpack.c.h.b16 %v1721
    %v2005 = vunpack.c.l.b16 %v1722
    %v2006 = vunpack.c.l.b16 %v1723
    %v2007 = vunpack.c.h.b16 %v1723
    %v2008 = vunpack.c.l.b16 %v1724
    %v2009 = vunpack.c.l.b16 %v1725
    %v2010 = vunpack.c.h.b16 %v1725
    %v2011 = vunpack.c.l.b16 %v1726
    %v2012 = vunpack.c.l.b16 %v1727
    %v2013 = vunpack.c.h.b16 %v1727
    %v2014 = vunpack.c.l.b16 %v1728
    %v2015 = vunpack.c.l.b16 %v1729
    %v2016 = vunpack.c.h.b16 %v1729
    %v2017 = vunpack.c.l.b16 %v1730
    %v2018 = vunpack.c.l.b16 %v1731
    %v2019 = vunpack.c.h.b16 %v1731
    %v2020 = vunpack.c.l.b16 %v1732
    %v2021 = vunpack.c.l.b16 %v1733
    %v2022 = vunpack.c.h.b16 %v1733
    %v2023 = vunpack.c.l.b16 %v1734
    %v2024 = vunpack.c.l.b16 %v1735
    %v2025 = vunpack.c.h.b16 %v1735
    %v2026 = vunpack.c.l.b16 %v1736
    %v2027 = vunpack.c.l.b16 %v1737
    %v2028 = vunpack.c.h.b16 %v1737
    %v2029 = vunpack.c.l.b16 %v1738
    %v2030 = vunpack.c.l.b16 %v1739
    %v2031 = vunpack.c.h.b16 %v1739
    %v2032 = vunpack.c.l.b16 %v1740
    %v2033 = vunpack.c.l.b16 %v1741
    %v2034 = vunpack.c.h.b16 %v1741
    %v2035 = vunpack.c.l.b16 %v1742
    %v2036 = vunpack.c.l.b16 %v1743
    %v2037 = vunpack.c.h.b16 %v1743
    %v2038 = vunpack.c.l.b16 %v1744
    %v2039 = vunpack.c.l.b16 %v1745
    %v2040 = vunpack.c.h.b16 %v1745
    %v2041 = vunpack.c.l.b16 %v1746
    %v2042 = vunpack.c.l.b16 %v1747
    %v2043 = vunpack.c.h.b16 %v1747
    %v2044 = vunpack.c.l.b16 %v1748
    %v2045 = vunpack.c.l.b16 %v1749
    %v2046 = vunpack.c.h.b16 %v1749
    %v2047 = vunpack.c.l.b16 %v1750
    %v2048 = vunpack.c.l.b16 %v1751
    %v2049 = vunpack.c.h.b16 %v1751
    %v2050 = vunpack.c.l.b16 %v1752
    %v2051 = vunpack.c.l.b16 %v1753
    %v2052 = vunpack.c.h.b16 %v1753
    %v2053 = vunpack.c.l.b16 %v1754
    %v2054 = vunpack.c.l.b16 %v1755
    %v2055 = vunpack.c.h.b16 %v1755
    %v2056 = vunpack.c.l.b16 %v1756
    %v2057 = vunpack.c.l.b16 %v1757
    %v2058 = vunpack.c.h.b16 %v1757
    %v2059 = vunpack.c.l.b16 %v1758
    %v2060 = vunpack.c.l.b16 %v1759
    %v2061 = vunpack.c.h.b16 %v1759
    %v2062 = vunpack.c.l.b16 %v1760
    %v2063 = vunpack.c.l.b16 %v1761
    %v2064 = vunpack.c.h.b16 %v1761
    %v2065 = vunpack.c.l.b16 %v1762
    %v2066 = vunpack.c.l.b16 %v1763
    %v2067 = vunpack.c.h.b16 %v1763
    %v2068 = vunpack.c.l.b16 %v1764
    %v2069 = vunpack.c.l.b16 %v1765
    %v2070 = vunpack.c.h.b16 %v1765
    %v2071 = vunpack.c.l.b16 %v1766
    %v2072 = vunpack.c.l.b16 %v1767
    %v2073 = vunpack.c.h.b16 %v1767
    %v2074 = vunpack.c.l.b16 %v1768
    %v2075 = vunpack.c.l.b16 %v1769
    %v2076 = vunpack.c.h.b16 %v1769
    %v2077 = vunpack.c.l.b16 %v1770
    %v2078 = vunpack.c.l.b16 %v1771
    %v2079 = vunpack.c.h.b16 %v1771
    %v2080 = vunpack.c.l.b16 %v1772
    %v2081 = vunpack.c.l.b16 %v1773
    %v2082 = vunpack.c.h.b16 %v1773
    %v2083 = vunpack.c.l.b16 %v1774
    %v2084 = vunpack.c.l.b16 %v1775
    %v2085 = vunpack.c.h.b16 %v1775
    %v2086 = vunpack.c.l.b16 %v1776
    %v2087 = vunpack.c.l.b16 %v1777
    %v2088 = vunpack.c.h.b16 %v1777
    %v2089 = vunpack.c.l.b16 %v1778
    %v2090 = vunpack.c.l.b16 %v1779
    %v2091 = vunpack.c.h.b16 %v1779
    %v2092 = vunpack.c.l.b16 %v1780
    %v2093 = vunpack.c.l.b16 %v1781
    %v2094 = vunpack.c.h.b16 %v1781
    %v2095 = vunpack.c.l.b16 %v1782
    %v2096 = vunpack.c.l.b16 %v1783
    %v2097 = vunpack.c.h.b16 %v1783
    %v2098 = vunpack.c.l.b16 %v1784
    %v2099 = vunpack.c.l.b16 %v1785
    %v2100 = vunpack.c.h.b16 %v1785
    %v2101 = vunpack.c.l.b16 %v1786
    %v2102 = vunpack.c.l.b16 %v1787
    %v2103 = vunpack.c.h.b16 %v1787
    %v2104 = vunpack.c.l.b16 %v1788
    %v2105 = vunpack.c.l.b16 %v1789
    %v2106 = vunpack.c.h.b16 %v1789
    %v2107 = vunpack.c.l.b16 %v1790
    %v2108 = vunpack.c.l.b16 %v1791
    %v2109 = vunpack.c.h.b16 %v1791
    %v2110 = vunpack.c.l.b16 %v1792
    %v2111 = vunpack.c.l.b16 %v1793
    %v2112 = vunpack.c.h.b16 %v1793
    %v2113 = vunpack.c.l.b16 %v1794
    %v2114 = vunpack.c.l.b16 %v1795
    %v2115 = vunpack.c.h.b16 %v1795
    %v2116 = vunpack.c.l.b16 %v1796
    %v2117 = vunpack.c.l.b16 %v1797
    %v2118 = vunpack.c.h.b16 %v1797
    %v2119 = vunpack.c.l.b16 %v1798
    %v2120 = vunpack.c.l.b16 %v1799
    %v2121 = vunpack.c.h.b16 %v1799
    %v2122 = vunpack.c.l.b16 %v1800
    %v2123 = vunpack.c.l.b16 %v1801
    %v2124 = vunpack.c.h.b16 %v1801
    %v2125 = vunpack.c.l.b16 %v1802
    %v2126 = vunpack.c.l.b16 %v1803
    %v2127 = vunpack.c.h.b16 %v1803
    %v2128 = vunpack.c.l.b16 %v1804
    %v2129 = vunpack.c.l.b16 %v1805
    %v2130 = vunpack.c.h.b16 %v1805
    %v2131 = vunpack.c.l.b16 %v1806
    %v2132 = vunpack.c.l.b16 %v1807
    %v2133 = vunpack.c.h.b16 %v1807
    %v2134 = vunpack.c.l.b16 %v1808
    %v2135 = vunpack.c.l.b16 %v1809
    %v2136 = vunpack.c.h.b16 %v1809
    %v2137 = vunpack.c.l.b16 %v1810
    %v2138 = vunpack.c.l.b16 %v1811
    %v2139 = vunpack.c.h.b16 %v1811
    %v2140 = vunpack.c.l.b16 %v1812
    %v2141 = vunpack.c.l.b16 %v1813
    %v2142 = vunpack.c.h.b16 %v1813
    %v2143 = vunpack.c.l.b16 %v1814
    %v2144 = vunpack.c.l.b16 %v1815
    %v2145 = vunpack.c.h.b16 %v1815
    %v2146 = vunpack.c.l.b16 %v1816
    %v2147 = vunpack.c.l.b16 %v1817
    %v2148 = vunpack.c.h.b16 %v1817
    %v2149 = vunpack.c.l.b16 %v1818
    %v2150 = vunpack.c.l.b16 %v1819
    %v2151 = vunpack.c.h.b16 %v1819
    %v2152 = vunpack.c.l.b16 %v1820
    %v2153 = vunpack.c.l.b16 %v1821
    %v2154 = vunpack.c.h.b16 %v1821
    %v2155 = vunpack.c.l.b16 %v1822
    %v2156 = vunpack.c.l.b16 %v1823
    %v2157 = vunpack.c.h.b16 %v1823
    %v2158 = vunpack.c.l.b16 %v1824
    %v2159 = vunpack.c.l.b16 %v1825
    %v2160 = vunpack.c.h.b16 %v1825
    %v2161 = vunpack.c.l.b16 %v1826
    %v2162 = vunpack.c.l.b16 %v1827
    %v2163 = vunpack.c.h.b16 %v1827
    %v2164 = vunpack.c.l.b16 %v1828
    %v2165 = vunpack.c.l.b16 %v1829
    %v2166 = vunpack.c.h.b16 %v1829
    %v2167 = vunpack.c.l.b16 %v1830
    %v2168 = vunpack.c.l.b16 %v1831
    %v2169 = vunpack.c.h.b16 %v1831
    %v2170 = vunpack.c.l.b16 %v1832
    %v2171 = vunpack.c.l.b16 %v1833
    %v2172 = vunpack.c.h.b16 %v1833
    %v2173 = vunpack.c.l.b16 %v1834
    %v2174 = vunpack.c.l.b16 %v1835
    %v2175 = vunpack.c.h.b16 %v1835
    %v2176 = vunpack.c.l.b16 %v1836
    %v2177 = vunpack.c.l.b16 %v1837
    %v2178 = vunpack.c.h.b16 %v1837
    %v2179 = vunpack.c.l.b16 %v1838
    %v2180 = vunpack.c.l.b16 %v1839
    %v2181 = vunpack.c.h.b16 %v1839
    %v2182 = vunpack.c.l.b16 %v1840
    %v2183 = vunpack.c.l.b16 %v1841
    %v2184 = vunpack.c.h.b16 %v1841
    %v2185 = vunpack.c.l.b16 %v1842
    %v2186 = vunpack.c.l.b16 %v1843
    %v2187 = vunpack.c.h.b16 %v1843
    %v2188 = vunpack.c.l.b16 %v1844
    %v2189 = vunpack.c.l.b16 %v1845
    %v2190 = vunpack.c.h.b16 %v1845
    %v2191 = vunpack.c.l.b16 %v1846
    %v2192 = vunpack.c.l.b16 %v1847
    %v2193 = vunpack.c.h.b16 %v1847
    %v2194 = vunpack.c.l.b16 %v1848
    %v2195 = vpack.c.b16 %v2006, %v2003
    %v2196 = vpack.c.b16 %v2007, %v2004
    %v2197 = vpack.c.b16 %v2008, %v2005
    %v2198 = vpack.c.b16 %v2012, %v2009
    %v2199 = vpack.c.b16 %v2013, %v2010
    %v2200 = vpack.c.b16 %v2014, %v2011
    %v2201 = vpack.c.b16 %v2018, %v2015
    %v2202 = vpack.c.b16 %v2019, %v2016
    %v2203 = vpack.c.b16 %v2020, %v2017
    %v2204 = vpack.c.b16 %v2024, %v2021
    %v2205 = vpack.c.b16 %v2025, %v2022
    %v2206 = vpack.c.b16 %v2026, %v2023
    %v2207 = vpack.c.b16 %v2030, %v2027
    %v2208 = vpack.c.b16 %v2031, %v2028
    %v2209 = vpack.c.b16 %v2032, %v2029
    %v2210 = vpack.c.b16 %v2036, %v2033
    %v2211 = vpack.c.b16 %v2037, %v2034
    %v2212 = vpack.c.b16 %v2038, %v2035
    %v2213 = vpack.c.b16 %v2042, %v2039
    %v2214 = vpack.c.b16 %v2043, %v2040
    %v2215 = vpack.c.b16 %v2044, %v2041
    %v2216 = vpack.c.b16 %v2048, %v2045
    %v2217 = vpack.c.b16 %v2049, %v2046
    %v2218 = vpack.c.b16 %v2050, %v2047
    %v2219 = vpack.c.b16 %v2054, %v2051
    %v2220 = vpack.c.b16 %v2055, %v2052
    %v2221 = vpack.c.b16 %v2056, %v2053
    %v2222 = vpack.c.b16 %v2060, %v2057
    %v2223 = vpack.c.b16 %v2061, %v2058
    %v2224 = vpack.c.b16 %v2062, %v2059
    %v2225 = vpack.c.b16 %v2066, %v2063
    %v2226 = vpack.c.b16 %v2067, %v2064
    %v2227 = vpack.c.b16 %v2068, %v2065
    %v2228 = vpack.c.b16 %v2072, %v2069
    %v2229 = vpack.c.b16 %v2073, %v2070
    %v2230 = vpack.c.b16 %v2074, %v2071
    %v2231 = vpack.c.b16 %v2078, %v2075
    %v2232 = vpack.c.b16 %v2079, %v2076
    %v2233 = vpack.c.b16 %v2080, %v2077
    %v2234 = vpack.c.b16 %v2084, %v2081
    %v2235 = vpack.c.b16 %v2085, %v2082
    %v2236 = vpack.c.b16 %v2086, %v2083
    %v2237 = vpack.c.b16 %v2090, %v2087
    %v2238 = vpack.c.b16 %v2091, %v2088
    %v2239 = vpack.c.b16 %v2092, %v2089
    %v2240 = vpack.c.b16 %v2096, %v2093
    %v2241 = vpack.c.b16 %v2097, %v2094
    %v2242 = vpack.c.b16 %v2098, %v2095
    %v2243 = vpack.c.b16 %v2102, %v2099
    %v2244 = vpack.c.b16 %v2103, %v2100
    %v2245 = vpack.c.b16 %v2104, %v2101
    %v2246 = vpack.c.b16 %v2108, %v2105
    %v2247 = vpack.c.b16 %v2109, %v2106
    %v2248 = vpack.c.b16 %v2110, %v2107
    %v2249 = vpack.c.b16 %v2114, %v2111
    %v2250 = vpack.c.b16 %v2115, %v2112
    %v2251 = vpack.c.b16 %v2116, %v2113
    %v2252 = vpack.c.b16 %v2120, %v2117
    %v2253 = vpack.c.b16 %v2121, %v2118
    %v2254 = vpack.c.b16 %v2122, %v2119
    %v2255 = vpack.c.b16 %v2126, %v2123
    %v2256 = vpack.c.b16 %v2127, %v2124
    %v2257 = vpack.c.b16 %v2128, %v2125
    %v2258 = vpack.c.b16 %v2132, %v2129
    %v2259 = vpack.c.b16 %v2133, %v2130
    %v2260 = vpack.c.b16 %v2134, %v2131
    %v2261 = vpack.c.b16 %v2138, %v2135
    %v2262 = vpack.c.b16 %v2139, %v2136
    %v2263 = vpack.c.b16 %v2140, %v2137
    %v2264 = vpack.c.b16 %v2144, %v2141
    %v2265 = vpack.c.b16 %v2145, %v2142
    %v2266 = vpack.c.b16 %v2146, %v2143
    %v2267 = vpack.c.b16 %v2150, %v2147
    %v2268 = vpack.c.b16 %v2151, %v2148
    %v2269 = vpack.c.b16 %v2152, %v2149
    %v2270 = vpack.c.b16 %v2156, %v2153
    %v2271 = vpack.c.b16 %v2157, %v2154
    %v2272 = vpack.c.b16 %v2158, %v2155
    %v2273 = vpack.c.b16 %v2162, %v2159
    %v2274 = vpack.c.b16 %v2163, %v2160
    %v2275 = vpack.c.b16 %v2164, %v2161
    %v2276 = vpack.c.b16 %v2168, %v2165
    %v2277 = vpack.c.b16 %v2169, %v2166
    %v2278 = vpack.c.b16 %v2170, %v2167
    %v2279 = vpack.c.b16 %v2174, %v2171
    %v2280 = vpack.c.b16 %v2175, %v2172
    %v2281 = vpack.c.b16 %v2176, %v2173
    %v2282 = vpack.c.b16 %v2180, %v2177
    %v2283 = vpack.c.b16 %v2181, %v2178
    %v2284 = vpack.c.b16 %v2182, %v2179
    %v2285 = vpack.c.b16 %v2186, %v2183
    %v2286 = vpack.c.b16 %v2187, %v2184
    %v2287 = vpack.c.b16 %v2188, %v2185
    %v2288 = vpack.c.b16 %v2192, %v2189
    %v2289 = vpack.c.b16 %v2193, %v2190
    %v2290 = vpack.c.b16 %v2194, %v2191
    %2387 = vmatprep.subr.bf16.mxu0 %v2196
    %2388 = vmatpush1.bf16.msra.mxu0 %v2195
    %2389 = vmatprep.subr.bf16.mxu0 %v2199
    %2390 = vmatpush1.bf16.msra.mxu0 %v2198
    %2391 = vmatprep.subr.bf16.mxu0 %v2202
    %2392 = vmatpush1.bf16.msra.mxu0 %v2201
    %2393 = vmatprep.subr.bf16.mxu0 %v2205
    %2394 = vmatpush1.bf16.msra.mxu0 %v2204
    %2395 = vmatprep.subr.bf16.mxu0 %v2208
    %2396 = vmatpush1.bf16.msra.mxu0 %v2207
    %2397 = vmatprep.subr.bf16.mxu0 %v2211
    %2398 = vmatpush1.bf16.msra.mxu0 %v2210
    %2399 = vmatprep.subr.bf16.mxu0 %v2214
    %2400 = vmatpush1.bf16.msra.mxu0 %v2213
    %2401 = vmatprep.subr.bf16.mxu0 %v2217
    %2402 = vmatpush1.bf16.msra.mxu0 %v2216
    %2403 = vmatprep.subr.bf16.mxu0 %v2220
    %2404 = vmatpush1.bf16.msra.mxu0 %v2219
    %2405 = vmatprep.subr.bf16.mxu0 %v2223
    %2406 = vmatpush1.bf16.msra.mxu0 %v2222
    %2407 = vmatprep.subr.bf16.mxu0 %v2226
    %2408 = vmatpush1.bf16.msra.mxu0 %v2225
    %2409 = vmatprep.subr.bf16.mxu0 %v2229
    %2410 = vmatpush1.bf16.msra.mxu0 %v2228
    %2411 = vmatprep.subr.bf16.mxu0 %v2232
    %2412 = vmatpush1.bf16.msra.mxu0 %v2231
    %2413 = vmatprep.subr.bf16.mxu0 %v2235
    %2414 = vmatpush1.bf16.msra.mxu0 %v2234
    %2415 = vmatprep.subr.bf16.mxu0 %v2238
    %2416 = vmatpush1.bf16.msra.mxu0 %v2237
    %2417 = vmatprep.subr.bf16.mxu0 %v2241
    %2418 = vmatpush1.bf16.msra.mxu0 %v2240
    %2419 = vmatprep.mubr.bf16.mxu0 %v1856
    %2420 = vmatmul.mubr.bf16.gmra.mrb[0].mxu0 %v1855
    %v2421 = vpop.f32.mrb[0].mxu0
    %v2422 = vadd.f32 %v1863, %v2421
    %v2423 = vpop.f32.mrb[0].mxu0
    %v2424 = vadd.f32 %v1867, %v2423
    %v2425 = vpop.f32.mrb[0].mxu0
    %v2426 = vpop.f32.mrb[0].mxu0
    %2427 = vdwg.mxu0
    %2428 = vmatprep.subr.bf16.mxu0 %v2244
    %2429 = vmatpush1.bf16.msra.mxu0 %v2243
    %2430 = vmatprep.subr.bf16.mxu0 %v2247
    %2431 = vmatpush1.bf16.msra.mxu0 %v2246
    %2432 = vmatprep.subr.bf16.mxu0 %v2250
    %2433 = vmatpush1.bf16.msra.mxu0 %v2249
    %2434 = vmatprep.subr.bf16.mxu0 %v2253
    %2435 = vmatpush1.bf16.msra.mxu0 %v2252
    %2436 = vmatprep.subr.bf16.mxu0 %v2256
    %2437 = vmatpush1.bf16.msra.mxu0 %v2255
    %2438 = vmatprep.subr.bf16.mxu0 %v2259
    %2439 = vmatpush1.bf16.msra.mxu0 %v2258
    %2440 = vmatprep.subr.bf16.mxu0 %v2262
    %2441 = vmatpush1.bf16.msra.mxu0 %v2261
    %2442 = vmatprep.subr.bf16.mxu0 %v2265
    %2443 = vmatpush1.bf16.msra.mxu0 %v2264
    %2444 = vmatprep.subr.bf16.mxu0 %v2268
    %2445 = vmatpush1.bf16.msra.mxu0 %v2267
    %2446 = vmatprep.subr.bf16.mxu0 %v2271
    %2447 = vmatpush1.bf16.msra.mxu0 %v2270
    %2448 = vmatprep.subr.bf16.mxu0 %v2274
    %2449 = vmatpush1.bf16.msra.mxu0 %v2273
    %2450 = vmatprep.subr.bf16.mxu0 %v2277
    %2451 = vmatpush1.bf16.msra.mxu0 %v2276
    %2452 = vmatprep.subr.bf16.mxu0 %v2280
    %2453 = vmatpush1.bf16.msra.mxu0 %v2279
    %2454 = vmatprep.subr.bf16.mxu0 %v2283
    %2455 = vmatpush1.bf16.msra.mxu0 %v2282
    %2456 = vmatprep.subr.bf16.mxu0 %v2286
    %2457 = vmatpush1.bf16.msra.mxu0 %v2285
    %2458 = vmatprep.subr.bf16.mxu0 %v2289
    %2459 = vmatpush1.bf16.msra.mxu0 %v2288
    %2460 = vmatprep.mubr.bf16.mxu0 %v1858
    %2461 = vmatmul.mubr.bf16.gmra.mrb[0].mxu0 %v1857
    %v2462 = vpop.f32.mrb[0].mxu0
    %v2463 = vadd.f32 %v2422, %v2462
    %v2464 = vpop.f32.mrb[0].mxu0
    %v2465 = vadd.f32 %v2424, %v2464
    %v2466 = vpop.f32.mrb[0].mxu0
    %v2467 = vpop.f32.mrb[0].mxu0
    %2468 = vdwg.mxu0
    %2469 = vmatprep.subr.bf16.mxu0 0
    %2470 = vmatpush1.bf16.msra.mxu0 %v2197
    %2471 = vmatprep.subr.bf16.mxu0 0
    %2472 = vmatpush1.bf16.msra.mxu0 %v2200
    %2473 = vmatprep.subr.bf16.mxu0 0
    %2474 = vmatpush1.bf16.msra.mxu0 %v2203
    %2475 = vmatprep.subr.bf16.mxu0 0
    %2476 = vmatpush1.bf16.msra.mxu0 %v2206
    %2477 = vmatprep.subr.bf16.mxu0 0
    %2478 = vmatpush1.bf16.msra.mxu0 %v2209
    %2479 = vmatprep.subr.bf16.mxu0 0
    %2480 = vmatpush1.bf16.msra.mxu0 %v2212
    %2481 = vmatprep.subr.bf16.mxu0 0
    %2482 = vmatpush1.bf16.msra.mxu0 %v2215
    %2483 = vmatprep.subr.bf16.mxu0 0
    %2484 = vmatpush1.bf16.msra.mxu0 %v2218
    %2485 = vmatprep.subr.bf16.mxu0 0
    %2486 = vmatpush1.bf16.msra.mxu0 %v2221
    %2487 = vmatprep.subr.bf16.mxu0 0
    %2488 = vmatpush1.bf16.msra.mxu0 %v2224
    %2489 = vmatprep.subr.bf16.mxu0 0
    %2490 = vmatpush1.bf16.msra.mxu0 %v2227
    %2491 = vmatprep.subr.bf16.mxu0 0
    %2492 = vmatpush1.bf16.msra.mxu0 %v2230
    %2493 = vmatprep.subr.bf16.mxu0 0
    %2494 = vmatpush1.bf16.msra.mxu0 %v2233
    %2495 = vmatprep.subr.bf16.mxu0 0
    %2496 = vmatpush1.bf16.msra.mxu0 %v2236
    %2497 = vmatprep.subr.bf16.mxu0 0
    %2498 = vmatpush1.bf16.msra.mxu0 %v2239
    %2499 = vmatprep.subr.bf16.mxu0 0
    %2500 = vmatpush1.bf16.msra.mxu0 %v2242
    %2501 = vmatprep.mubr.bf16.mxu0 %v1856
    %2502 = vmatmul.mubr.bf16.gmra.mrb[0].mxu0 %v1855
    %v2503 = vpop.f32.mrb[0].mxu0
    %v2504 = vadd.f32 %v1871, %v2503
    %v2505 = vpop.f32.mrb[0].mxu0
    %v2506 = vpop.f32.mrb[0].mxu0
    %v2507 = vpop.f32.mrb[0].mxu0
    %2508 = vdwg.mxu0
    %2509 = vmatprep.subr.bf16.mxu0 0
    %2510 = vmatpush1.bf16.msra.mxu0 %v2245
    %2511 = vmatprep.subr.bf16.mxu0 0
    %2512 = vmatpush1.bf16.msra.mxu0 %v2248
    %2513 = vmatprep.subr.bf16.mxu0 0
    %2514 = vmatpush1.bf16.msra.mxu0 %v2251
    %2515 = vmatprep.subr.bf16.mxu0 0
    %2516 = vmatpush1.bf16.msra.mxu0 %v2254
    %2517 = vmatprep.subr.bf16.mxu0 0
    %2518 = vmatpush1.bf16.msra.mxu0 %v2257
    %2519 = vmatprep.subr.bf16.mxu0 0
    %2520 = vmatpush1.bf16.msra.mxu0 %v2260
    %2521 = vmatprep.subr.bf16.mxu0 0
    %2522 = vmatpush1.bf16.msra.mxu0 %v2263
    %2523 = vmatprep.subr.bf16.mxu0 0
    %2524 = vmatpush1.bf16.msra.mxu0 %v2266
    %2525 = vmatprep.subr.bf16.mxu0 0
    %2526 = vmatpush1.bf16.msra.mxu0 %v2269
    %2527 = vmatprep.subr.bf16.mxu0 0
    %2528 = vmatpush1.bf16.msra.mxu0 %v2272
    %2529 = vmatprep.subr.bf16.mxu0 0
    %2530 = vmatpush1.bf16.msra.mxu0 %v2275
    %2531 = vmatprep.subr.bf16.mxu0 0
    %2532 = vmatpush1.bf16.msra.mxu0 %v2278
    %2533 = vmatprep.subr.bf16.mxu0 0
    %2534 = vmatpush1.bf16.msra.mxu0 %v2281
    %2535 = vmatprep.subr.bf16.mxu0 0
    %2536 = vmatpush1.bf16.msra.mxu0 %v2284
    %2537 = vmatprep.subr.bf16.mxu0 0
    %2538 = vmatpush1.bf16.msra.mxu0 %v2287
    %2539 = vmatprep.subr.bf16.mxu0 0
    %2540 = vmatpush1.bf16.msra.mxu0 %v2290
    %2541 = vmatprep.mubr.bf16.mxu0 %v1858
    %2542 = vmatmul.mubr.bf16.gmra.mrb[0].mxu0 %v1857
    %v2543 = vpop.f32.mrb[0].mxu0
    %v2544 = vadd.f32 %v2504, %v2543
    %v2545 = vpop.f32.mrb[0].mxu0
    %v2546 = vpop.f32.mrb[0].mxu0
    %v2547 = vpop.f32.mrb[0].mxu0
    %2548 = vdwg.mxu0
    %vm2549 = vcmp.gt.f32.partialorder %v2463, 0.0
    %vm2550 = vcmp.gt.f32.partialorder %v2465, 0.0
    %vm2551 = vcmp.gt.f32.partialorder %v2544, 0.0
    %v2552 = vmul.f32 %v2463, 0.01
    %v2553 = vmul.f32 %v2465, 0.01
    %v2554 = vmul.f32 %v2544, 0.01
    %v2555 = vsel %vm2549, %v2463, %v2552
    %v2556 = vsel %vm2550, %v2465, %v2553
    %v2557 = vsel %vm2551, %v2544, %v2554
    %v2558 = vrot.slane %v2555, 4
    %v2559 = vadd.f32 %v2555, %v2558
    %v2560 = vrot.slane %v2559, 2
    %v2561 = vadd.f32 %v2559, %v2560
    %v2562 = vrot.slane %v2561, 1
    %v2563 = vadd.f32 %v2561, %v2562
    %v2564 = vrot.slane %v2556, 4
    %v2565 = vadd.f32 %v2556, %v2564
    %v2566 = vrot.slane %v2565, 2
    %v2567 = vadd.f32 %v2565, %v2566
    %v2568 = vrot.slane %v2567, 1
    %v2569 = vadd.f32 %v2567, %v2568
    %v2570 = vrot.slane %v2557, 4
    %v2571 = vadd.f32 %v2557, %v2570
    %v2572 = vrot.slane %v2571, 2
    %v2573 = vadd.f32 %v2571, %v2572
    %v2574 = vrot.slane %v2573, 1
    %v2575 = vadd.f32 %v2573, %v2574
    %v2576 = vmul.f32 %v2563, 0.125
    %v2577 = vmul.f32 %v2569, 0.125
    %v2578 = vmul.f32 %v2575, 0.125
    %v2579 = vmul.f32 %v2555, %v2555
    %v2580 = vmul.f32 %v2556, %v2556
    %v2581 = vmul.f32 %v2557, %v2557
    %v2582 = vrot.slane %v2579, 4
    %v2583 = vadd.f32 %v2579, %v2582
    %v2584 = vrot.slane %v2583, 2
    %v2585 = vadd.f32 %v2583, %v2584
    %v2586 = vrot.slane %v2585, 1
    %v2587 = vadd.f32 %v2585, %v2586
    %v2588 = vrot.slane %v2580, 4
    %v2589 = vadd.f32 %v2580, %v2588
    %v2590 = vrot.slane %v2589, 2
    %v2591 = vadd.f32 %v2589, %v2590
    %v2592 = vrot.slane %v2591, 1
    %v2593 = vadd.f32 %v2591, %v2592
    %v2594 = vrot.slane %v2581, 4
    %v2595 = vadd.f32 %v2581, %v2594
    %v2596 = vrot.slane %v2595, 2
    %v2597 = vadd.f32 %v2595, %v2596
    %v2598 = vrot.slane %v2597, 1
    %v2599 = vadd.f32 %v2597, %v2598
    %v2600 = vmul.f32 %v2587, 0.125
    %v2601 = vmul.f32 %v2593, 0.125
    %v2602 = vmul.f32 %v2599, 0.125
    %v2603 = vmul.f32 %v2576, %v2576
    %v2604 = vmul.f32 %v2577, %v2577
    %v2605 = vmul.f32 %v2578, %v2578
    %v2606 = vsub.f32 %v2600, %v2603
    %v2607 = vsub.f32 %v2601, %v2604
    %v2608 = vsub.f32 %v2602, %v2605
    %v2609 = vmax.f32 %v2606, 0.0
    %v2610 = vmax.f32 %v2607, 0.0
    %v2611 = vmax.f32 %v2608, 0.0
    %v2612 = vadd.f32 %v2609, 1e-05
    %v2613 = vadd.f32 %v2610, 1e-05
    %v2614 = vadd.f32 %v2611, 1e-05
    %v2615 = vrsqrt.pop %v2612
    %v2616 = vrsqrt.pop %v2613
    %v2617 = vrsqrt.pop %v2614
    %v2621 = vcombine.low %v2615, %v2616
    %v2623 = vunpack.c.l.s4 1966171168
    %v2624 = vunpack.c.0.s8 %v2623
    %v2625 = vlaneseq
    %v2626 = vshrl.u32 %v2625, 7
    %v2627 = vsub.s32 %v2624, %v2626
    %v2628 = vrot.slane %v2621, %v2627
    %v2630 = vunpack.c.l.s4 1966171168
    %v2631 = vunpack.c.0.s8 %v2630
    %v2632 = vlaneseq
    %v2633 = vshrl.u32 %v2632, 7
    %v2634 = vsub.s32 %v2631, %v2633
    %v2635 = vrot.slane %v2617, %v2634
    %v2636 = vcombine.low %v2628, %v2635
    %v2638 = vunpack.c.l.s4 1966171168
    %v2639 = vunpack.c.0.s8 %v2638
    %v2640 = vlaneseq
    %v2641 = vshrl.u32 %v2640, 7
    %v2642 = vsub.s32 %v2639, %v2641
    %v2643 = vrot.slane %v2636, %v2642
    %v2645 = vmul.f32 %v1852, %v2643
    %v2647 = vlaneseq
    %v2648 = vshrl.u32 %v2647, 7
    %v2649 = vsub.s32 0, %v2648
    %v2650 = vrot.slane %v2645, %v2649
    %v2651 = vlaneseq
    %v2652 = vshrl.u32 %v2651, 7
    %v2653 = vsub.s32 1, %v2652
    %v2654 = vrot.slane %v2645, %v2653
    %v2655 = vlaneseq
    %v2656 = vshrl.u32 %v2655, 7
    %v2657 = vsub.s32 2, %v2656
    %v2658 = vrot.slane %v2645, %v2657
    %v2662 = vmul.f32 %v2576, %v2650
    %v2663 = vmul.f32 %v2577, %v2654
    %v2664 = vmul.f32 %v2578, %v2658
    %v2668 = vcombine.low %v2662, %v2663
    %v2670 = vunpack.c.l.s4 1966171168
    %v2671 = vunpack.c.0.s8 %v2670
    %v2672 = vlaneseq
    %v2673 = vshrl.u32 %v2672, 7
    %v2674 = vsub.s32 %v2671, %v2673
    %v2675 = vrot.slane %v2668, %v2674
    %v2677 = vunpack.c.l.s4 1966171168
    %v2678 = vunpack.c.0.s8 %v2677
    %v2679 = vlaneseq
    %v2680 = vshrl.u32 %v2679, 7
    %v2681 = vsub.s32 %v2678, %v2680
    %v2682 = vrot.slane %v2664, %v2681
    %v2683 = vcombine.low %v2675, %v2682
    %v2685 = vunpack.c.l.s4 1966171168
    %v2686 = vunpack.c.0.s8 %v2685
    %v2687 = vlaneseq
    %v2688 = vshrl.u32 %v2687, 7
    %v2689 = vsub.s32 %v2686, %v2688
    %v2690 = vrot.slane %v2683, %v2689
    %v2692 = vsub.f32 %v1854, %v2690
    %v2693 = vmul.f32 %v2555, %v2650
    %v2694 = vmul.f32 %v2556, %v2654
    %v2695 = vmul.f32 %v2557, %v2658
    %v2697 = vlaneseq
    %v2698 = vshrl.u32 %v2697, 7
    %v2699 = vsub.s32 0, %v2698
    %v2700 = vrot.slane %v2692, %v2699
    %v2701 = vlaneseq
    %v2702 = vshrl.u32 %v2701, 7
    %v2703 = vsub.s32 1, %v2702
    %v2704 = vrot.slane %v2692, %v2703
    %v2705 = vlaneseq
    %v2706 = vshrl.u32 %v2705, 7
    %v2707 = vsub.s32 2, %v2706
    %v2708 = vrot.slane %v2692, %v2707
    %v2712 = vadd.f32 %v2693, %v2700
    %v2713 = vadd.f32 %v2694, %v2704
    %v2714 = vadd.f32 %v2695, %v2708
    %v2715 = vld [vmem:[#allocation2 + $0x900] sm:$0xff]
    %v2716 = vld [vmem:[#allocation2 + $0x910] sm:$0xff]
    %v2717 = vld [vmem:[#allocation2 + $0x920] sm:$0xff]
    %v2718 = vld [vmem:[#allocation2 + $0x930] sm:$0xff]
    %v2719 = vld [vmem:[#allocation2 + $0x940] sm:$0xff]
    %v2720 = vld [vmem:[#allocation2 + $0x950] sm:$0xff]
    %v2721 = vld [vmem:[#allocation2 + $0x960] sm:$0xff]
    %v2722 = vld [vmem:[#allocation2 + $0x970] sm:$0xff]
    %v2723 = vld [vmem:[#allocation2 + $0x980] sm:$0xff]
    %v2724 = vld [vmem:[#allocation2 + $0x990] sm:$0xff]
    %v2725 = vld [vmem:[#allocation2 + $0x9a0] sm:$0xff]
    %v2726 = vld [vmem:[#allocation2 + $0x9b0] sm:$0xff]
    %v2727 = vld [vmem:[#allocation2 + $0x9c0] sm:$0xff]
    %v2728 = vld [vmem:[#allocation2 + $0x9d0] sm:$0xff]
    %v2729 = vld [vmem:[#allocation2 + $0x9e0] sm:$0xff]
    %v2730 = vld [vmem:[#allocation2 + $0x9f0] sm:$0xff]
    %v2731 = vld [vmem:[#allocation2 + $0xa00] sm:$0xff]
    %v2732 = vld [vmem:[#allocation2 + $0xa10] sm:$0xff]
    %v2733 = vld [vmem:[#allocation2 + $0xa20] sm:$0xff]
    %v2734 = vld [vmem:[#allocation2 + $0xa30] sm:$0xff]
    %v2735 = vld [vmem:[#allocation2 + $0xa40] sm:$0xff]
    %v2736 = vld [vmem:[#allocation2 + $0xa50] sm:$0xff]
    %v2737 = vld [vmem:[#allocation2 + $0xa60] sm:$0xff]
    %v2738 = vld [vmem:[#allocation2 + $0xa70] sm:$0xff]
    %v2739 = vld [vmem:[#allocation2 + $0xa80] sm:$0xff]
    %v2740 = vld [vmem:[#allocation2 + $0xa90] sm:$0xff]
    %v2741 = vld [vmem:[#allocation2 + $0xaa0] sm:$0xff]
    %v2742 = vld [vmem:[#allocation2 + $0xab0] sm:$0xff]
    %v2743 = vld [vmem:[#allocation2 + $0xac0] sm:$0xff]
    %v2744 = vld [vmem:[#allocation2 + $0xad0] sm:$0xff]
    %v2745 = vld [vmem:[#allocation2 + $0xae0] sm:$0xff]
    %v2746 = vld [vmem:[#allocation2 + $0xaf0] sm:$0xff]
    %v2747 = vld [vmem:[#allocation2 + $0xb00] sm:$0xff]
    %v2748 = vld [vmem:[#allocation2 + $0xb10] sm:$0xff]
    %v2749 = vld [vmem:[#allocation2 + $0xb20] sm:$0xff]
    %v2750 = vld [vmem:[#allocation2 + $0xb30] sm:$0xff]
    %v2751 = vld [vmem:[#allocation2 + $0xb40] sm:$0xff]
    %v2752 = vld [vmem:[#allocation2 + $0xb50] sm:$0xff]
    %v2753 = vld [vmem:[#allocation2 + $0xb60] sm:$0xff]
    %v2754 = vld [vmem:[#allocation2 + $0xb70] sm:$0xff]
    %v2755 = vld [vmem:[#allocation2 + $0xb80] sm:$0xff]
    %v2756 = vld [vmem:[#allocation2 + $0xb90] sm:$0xff]
    %v2757 = vld [vmem:[#allocation2 + $0xba0] sm:$0xff]
    %v2758 = vld [vmem:[#allocation2 + $0xbb0] sm:$0xff]
    %v2759 = vld [vmem:[#allocation2 + $0xbc0] sm:$0xff]
    %v2760 = vld [vmem:[#allocation2 + $0xbd0] sm:$0xff]
    %v2761 = vld [vmem:[#allocation2 + $0xbe0] sm:$0xff]
    %v2762 = vld [vmem:[#allocation2 + $0xbf0] sm:$0xff]
    %s2763 = scalar_lea.vmem [#allocation5], 33
    %v2764 = vld [vmem:[%s2763] ss:$8 sm:$0x3]
    %s2765 = scalar_lea.vmem [#allocation5], 34
    %v2766 = vld [vmem:[%s2765] ss:$8 sm:$0x3]
    %s2767 = scalar_lea.vmem [#allocation5], 35
    %v2768 = vld [vmem:[%s2767] ss:$8 sm:$0x3]
    %v2769 = vpack.c.bf16 %v2712, %v2712
    %v2770 = vpack.c.bf16 %v2713, %v2713
    %v2771 = vpack.c.bf16 %v2714, %v2714
    %v2773 = vlaneseq
    %v2774 = vshrl.u32 %v2773, 7
    %v2775 = vsub.s32 0, %v2774
    %v2776 = vrot.slane %v2764, %v2775
    %v2777 = vlaneseq
    %v2778 = vshrl.u32 %v2777, 7
    %v2779 = vsub.s32 1, %v2778
    %v2780 = vrot.slane %v2764, %v2779
    %v2831 = vunpack.c.l.b16 %v2715
    %v2832 = vunpack.c.h.b16 %v2715
    %v2833 = vunpack.c.l.b16 %v2716
    %v2834 = vunpack.c.h.b16 %v2716
    %v2835 = vunpack.c.l.b16 %v2717
    %v2836 = vunpack.c.h.b16 %v2717
    %v2837 = vunpack.c.l.b16 %v2718
    %v2838 = vunpack.c.h.b16 %v2718
    %v2839 = vunpack.c.l.b16 %v2719
    %v2840 = vunpack.c.h.b16 %v2719
    %v2841 = vunpack.c.l.b16 %v2720
    %v2842 = vunpack.c.h.b16 %v2720
    %v2843 = vunpack.c.l.b16 %v2721
    %v2844 = vunpack.c.h.b16 %v2721
    %v2845 = vunpack.c.l.b16 %v2722
    %v2846 = vunpack.c.h.b16 %v2722
    %v2847 = vunpack.c.l.b16 %v2723
    %v2848 = vunpack.c.h.b16 %v2723
    %v2849 = vunpack.c.l.b16 %v2724
    %v2850 = vunpack.c.h.b16 %v2724
    %v2851 = vunpack.c.l.b16 %v2725
    %v2852 = vunpack.c.h.b16 %v2725
    %v2853 = vunpack.c.l.b16 %v2726
    %v2854 = vunpack.c.h.b16 %v2726
    %v2855 = vunpack.c.l.b16 %v2727
    %v2856 = vunpack.c.h.b16 %v2727
    %v2857 = vunpack.c.l.b16 %v2728
    %v2858 = vunpack.c.h.b16 %v2728
    %v2859 = vunpack.c.l.b16 %v2729
    %v2860 = vunpack.c.h.b16 %v2729
    %v2861 = vunpack.c.l.b16 %v2730
    %v2862 = vunpack.c.h.b16 %v2730
    %v2863 = vunpack.c.l.b16 %v2731
    %v2864 = vunpack.c.h.b16 %v2731
    %v2865 = vunpack.c.l.b16 %v2732
    %v2866 = vunpack.c.h.b16 %v2732
    %v2867 = vunpack.c.l.b16 %v2733
    %v2868 = vunpack.c.h.b16 %v2733
    %v2869 = vunpack.c.l.b16 %v2734
    %v2870 = vunpack.c.h.b16 %v2734
    %v2871 = vunpack.c.l.b16 %v2735
    %v2872 = vunpack.c.h.b16 %v2735
    %v2873 = vunpack.c.l.b16 %v2736
    %v2874 = vunpack.c.h.b16 %v2736
    %v2875 = vunpack.c.l.b16 %v2737
    %v2876 = vunpack.c.h.b16 %v2737
    %v2877 = vunpack.c.l.b16 %v2738
    %v2878 = vunpack.c.h.b16 %v2738
    %v2879 = vunpack.c.l.b16 %v2739
    %v2880 = vunpack.c.h.b16 %v2739
    %v2881 = vunpack.c.l.b16 %v2740
    %v2882 = vunpack.c.h.b16 %v2740
    %v2883 = vunpack.c.l.b16 %v2741
    %v2884 = vunpack.c.h.b16 %v2741
    %v2885 = vunpack.c.l.b16 %v2742
    %v2886 = vunpack.c.h.b16 %v2742
    %v2887 = vunpack.c.l.b16 %v2743
    %v2888 = vunpack.c.h.b16 %v2743
    %v2889 = vunpack.c.l.b16 %v2744
    %v2890 = vunpack.c.h.b16 %v2744
    %v2891 = vunpack.c.l.b16 %v2745
    %v2892 = vunpack.c.h.b16 %v2745
    %v2893 = vunpack.c.l.b16 %v2746
    %v2894 = vunpack.c.h.b16 %v2746
    %v2895 = vunpack.c.l.b16 %v2747
    %v2896 = vunpack.c.h.b16 %v2747
    %v2897 = vunpack.c.l.b16 %v2748
    %v2898 = vunpack.c.h.b16 %v2748
    %v2899 = vunpack.c.l.b16 %v2749
    %v2900 = vunpack.c.h.b16 %v2749
    %v2901 = vunpack.c.l.b16 %v2750
    %v2902 = vunpack.c.h.b16 %v2750
    %v2903 = vunpack.c.l.b16 %v2751
    %v2904 = vunpack.c.h.b16 %v2751
    %v2905 = vunpack.c.l.b16 %v2752
    %v2906 = vunpack.c.h.b16 %v2752
    %v2907 = vunpack.c.l.b16 %v2753
    %v2908 = vunpack.c.h.b16 %v2753
    %v2909 = vunpack.c.l.b16 %v2754
    %v2910 = vunpack.c.h.b16 %v2754
    %v2911 = vunpack.c.l.b16 %v2755
    %v2912 = vunpack.c.h.b16 %v2755
    %v2913 = vunpack.c.l.b16 %v2756
    %v2914 = vunpack.c.h.b16 %v2756
    %v2915 = vunpack.c.l.b16 %v2757
    %v2916 = vunpack.c.h.b16 %v2757
    %v2917 = vunpack.c.l.b16 %v2758
    %v2918 = vunpack.c.h.b16 %v2758
    %v2919 = vunpack.c.l.b16 %v2759
    %v2920 = vunpack.c.h.b16 %v2759
    %v2921 = vunpack.c.l.b16 %v2760
    %v2922 = vunpack.c.h.b16 %v2760
    %v2923 = vunpack.c.l.b16 %v2761
    %v2924 = vunpack.c.h.b16 %v2761
    %v2925 = vunpack.c.l.b16 %v2762
    %v2926 = vunpack.c.h.b16 %v2762
    %v2927 = vpack.c.b16 %v2833, %v2831
    %v2928 = vpack.c.b16 %v2834, %v2832
    %v2929 = vpack.c.b16 %v2837, %v2835
    %v2930 = vpack.c.b16 %v2838, %v2836
    %v2931 = vpack.c.b16 %v2841, %v2839
    %v2932 = vpack.c.b16 %v2842, %v2840
    %v2933 = vpack.c.b16 %v2845, %v2843
    %v2934 = vpack.c.b16 %v2846, %v2844
    %v2935 = vpack.c.b16 %v2849, %v2847
    %v2936 = vpack.c.b16 %v2850, %v2848
    %v2937 = vpack.c.b16 %v2853, %v2851
    %v2938 = vpack.c.b16 %v2854, %v2852
    %v2939 = vpack.c.b16 %v2857, %v2855
    %v2940 = vpack.c.b16 %v2858, %v2856
    %v2941 = vpack.c.b16 %v2861, %v2859
    %v2942 = vpack.c.b16 %v2862, %v2860
    %v2943 = vpack.c.b16 %v2865, %v2863
    %v2944 = vpack.c.b16 %v2866, %v2864
    %v2945 = vpack.c.b16 %v2869, %v2867
    %v2946 = vpack.c.b16 %v2870, %v2868
    %v2947 = vpack.c.b16 %v2873, %v2871
    %v2948 = vpack.c.b16 %v2874, %v2872
    %v2949 = vpack.c.b16 %v2877, %v2875
    %v2950 = vpack.c.b16 %v2878, %v2876
    %v2951 = vpack.c.b16 %v2881, %v2879
    %v2952 = vpack.c.b16 %v2882, %v2880
    %v2953 = vpack.c.b16 %v2885, %v2883
    %v2954 = vpack.c.b16 %v2886, %v2884
    %v2955 = vpack.c.b16 %v2889, %v2887
    %v2956 = vpack.c.b16 %v2890, %v2888
    %v2957 = vpack.c.b16 %v2893, %v2891
    %v2958 = vpack.c.b16 %v2894, %v2892
    %v2959 = vpack.c.b16 %v2897, %v2895
    %v2960 = vpack.c.b16 %v2898, %v2896
    %v2961 = vpack.c.b16 %v2901, %v2899
    %v2962 = vpack.c.b16 %v2902, %v2900
    %v2963 = vpack.c.b16 %v2905, %v2903
    %v2964 = vpack.c.b16 %v2906, %v2904
    %v2965 = vpack.c.b16 %v2909, %v2907
    %v2966 = vpack.c.b16 %v2910, %v2908
    %v2967 = vpack.c.b16 %v2913, %v2911
    %v2968 = vpack.c.b16 %v2914, %v2912
    %v2969 = vpack.c.b16 %v2917, %v2915
    %v2970 = vpack.c.b16 %v2918, %v2916
    %v2971 = vpack.c.b16 %v2921, %v2919
    %v2972 = vpack.c.b16 %v2922, %v2920
    %v2973 = vpack.c.b16 %v2925, %v2923
    %v2974 = vpack.c.b16 %v2926, %v2924
    %3023 = vmatprep.subr.bf16.mxu0 %v2928
    %3024 = vmatpush1.bf16.msra.mxu0 %v2927
    %3025 = vmatprep.subr.bf16.mxu0 %v2930
    %3026 = vmatpush1.bf16.msra.mxu0 %v2929
    %3027 = vmatprep.subr.bf16.mxu0 %v2932
    %3028 = vmatpush1.bf16.msra.mxu0 %v2931
    %3029 = vmatprep.subr.bf16.mxu0 %v2934
    %3030 = vmatpush1.bf16.msra.mxu0 %v2933
    %3031 = vmatprep.subr.bf16.mxu0 %v2936
    %3032 = vmatpush1.bf16.msra.mxu0 %v2935
    %3033 = vmatprep.subr.bf16.mxu0 %v2938
    %3034 = vmatpush1.bf16.msra.mxu0 %v2937
    %3035 = vmatprep.subr.bf16.mxu0 %v2940
    %3036 = vmatpush1.bf16.msra.mxu0 %v2939
    %3037 = vmatprep.subr.bf16.mxu0 %v2942
    %3038 = vmatpush1.bf16.msra.mxu0 %v2941
    %3039 = vmatprep.subr.bf16.mxu0 %v2944
    %3040 = vmatpush1.bf16.msra.mxu0 %v2943
    %3041 = vmatprep.subr.bf16.mxu0 %v2946
    %3042 = vmatpush1.bf16.msra.mxu0 %v2945
    %3043 = vmatprep.subr.bf16.mxu0 %v2948
    %3044 = vmatpush1.bf16.msra.mxu0 %v2947
    %3045 = vmatprep.subr.bf16.mxu0 %v2950
    %3046 = vmatpush1.bf16.msra.mxu0 %v2949
    %3047 = vmatprep.subr.bf16.mxu0 %v2952
    %3048 = vmatpush1.bf16.msra.mxu0 %v2951
    %3049 = vmatprep.subr.bf16.mxu0 %v2954
    %3050 = vmatpush1.bf16.msra.mxu0 %v2953
    %3051 = vmatprep.subr.bf16.mxu0 %v2956
    %3052 = vmatpush1.bf16.msra.mxu0 %v2955
    %3053 = vmatprep.subr.bf16.mxu0 %v2958
    %3054 = vmatpush1.bf16.msra.mxu0 %v2957
    %3055 = vmatprep.mubr.bf16.mxu0 %v2770
    %3056 = vmatmul.mubr.bf16.gmra.mrb[0].mxu0 %v2769
    %v3057 = vpop.f32.mrb[0].mxu0
    %v3058 = vadd.f32 %v2776, %v3057
    %v3059 = vpop.f32.mrb[0].mxu0
    %v3060 = vadd.f32 %v2780, %v3059
    %v3061 = vpop.f32.mrb[0].mxu0
    %v3062 = vpop.f32.mrb[0].mxu0
    %3063 = vdwg.mxu0
    %3064 = vmatprep.subr.bf16.mxu0 %v2960
    %3065 = vmatpush1.bf16.msra.mxu0 %v2959
    %3066 = vmatprep.subr.bf16.mxu0 %v2962
    %3067 = vmatpush1.bf16.msra.mxu0 %v2961
    %3068 = vmatprep.subr.bf16.mxu0 %v2964
    %3069 = vmatpush1.bf16.msra.mxu0 %v2963
    %3070 = vmatprep.subr.bf16.mxu0 %v2966
    %3071 = vmatpush1.bf16.msra.mxu0 %v2965
    %3072 = vmatprep.subr.bf16.mxu0 %v2968
    %3073 = vmatpush1.bf16.msra.mxu0 %v2967
    %3074 = vmatprep.subr.bf16.mxu0 %v2970
    %3075 = vmatpush1.bf16.msra.mxu0 %v2969
    %3076 = vmatprep.subr.bf16.mxu0 %v2972
    %3077 = vmatpush1.bf16.msra.mxu0 %v2971
    %3078 = vmatprep.subr.bf16.mxu0 %v2974
    %3079 = vmatpush1.bf16.msra.mxu0 %v2973
    %3080 = vmatprep.subr.bf16.mxu0 0
    %3081 = vmatpush1.bf16.msra.mxu0 0
    %3082 = vmatprep.subr.bf16.mxu0 0
    %3083 = vmatpush1.bf16.msra.mxu0 0
    %3084 = vmatprep.subr.bf16.mxu0 0
    %3085 = vmatpush1.bf16.msra.mxu0 0
    %3086 = vmatprep.subr.bf16.mxu0 0
    %3087 = vmatpush1.bf16.msra.mxu0 0
    %3088 = vmatprep.subr.bf16.mxu0 0
    %3089 = vmatpush1.bf16.msra.mxu0 0
    %3090 = vmatprep.subr.bf16.mxu0 0
    %3091 = vmatpush1.bf16.msra.mxu0 0
    %3092 = vmatprep.subr.bf16.mxu0 0
    %3093 = vmatpush1.bf16.msra.mxu0 0
    %3094 = vmatprep.subr.bf16.mxu0 0
    %3095 = vmatpush1.bf16.msra.mxu0 0
    %3096 = vmatprep.mubr.bf16.mxu0 0
    %3097 = vmatmul.mubr.bf16.gmra.mrb[0].mxu0 %v2771
    %v3098 = vpop.f32.mrb[0].mxu0
    %v3099 = vadd.f32 %v3058, %v3098
    %v3100 = vpop.f32.mrb[0].mxu0
    %v3101 = vadd.f32 %v3060, %v3100
    %v3102 = vpop.f32.mrb[0].mxu0
    %v3103 = vpop.f32.mrb[0].mxu0
    %3104 = vdwg.mxu0
    %vm3105 = vcmp.gt.f32.partialorder %v3099, 0.0
    %vm3106 = vcmp.gt.f32.partialorder %v3101, 0.0
    %v3107 = vmul.f32 %v3099, 0.01
    %v3108 = vmul.f32 %v3101, 0.01
    %v3109 = vsel %vm3105, %v3099, %v3107
    %v3110 = vsel %vm3106, %v3101, %v3108
    %v3111 = vrot.slane %v3109, 4
    %v3112 = vadd.f32 %v3109, %v3111
    %v3113 = vrot.slane %v3112, 2
    %v3114 = vadd.f32 %v3112, %v3113
    %v3115 = vrot.slane %v3114, 1
    %v3116 = vadd.f32 %v3114, %v3115
    %v3117 = vrot.slane %v3110, 4
    %v3118 = vadd.f32 %v3110, %v3117
    %v3119 = vrot.slane %v3118, 2
    %v3120 = vadd.f32 %v3118, %v3119
    %v3121 = vrot.slane %v3120, 1
    %v3122 = vadd.f32 %v3120, %v3121
    %v3123 = vmul.f32 %v3116, 0.125
    %v3124 = vmul.f32 %v3122, 0.125
    %v3125 = vmul.f32 %v3109, %v3109
    %v3126 = vmul.f32 %v3110, %v3110
    %v3127 = vrot.slane %v3125, 4
    %v3128 = vadd.f32 %v3125, %v3127
    %v3129 = vrot.slane %v3128, 2
    %v3130 = vadd.f32 %v3128, %v3129
    %v3131 = vrot.slane %v3130, 1
    %v3132 = vadd.f32 %v3130, %v3131
    %v3133 = vrot.slane %v3126, 4
    %v3134 = vadd.f32 %v3126, %v3133
    %v3135 = vrot.slane %v3134, 2
    %v3136 = vadd.f32 %v3134, %v3135
    %v3137 = vrot.slane %v3136, 1
    %v3138 = vadd.f32 %v3136, %v3137
    %v3139 = vmul.f32 %v3132, 0.125
    %v3140 = vmul.f32 %v3138, 0.125
    %v3141 = vmul.f32 %v3123, %v3123
    %v3142 = vmul.f32 %v3124, %v3124
    %v3143 = vsub.f32 %v3139, %v3141
    %v3144 = vsub.f32 %v3140, %v3142
    %v3145 = vmax.f32 %v3143, 0.0
    %v3146 = vmax.f32 %v3144, 0.0
    %v3147 = vadd.f32 %v3145, 1e-05
    %v3148 = vadd.f32 %v3146, 1e-05
    %v3149 = vrsqrt.pop %v3147
    %v3150 = vrsqrt.pop %v3148
    %v3153 = vcombine.low %v3149, %v3150
    %v3155 = vunpack.c.l.s4 1966171168
    %v3156 = vunpack.c.0.s8 %v3155
    %v3157 = vlaneseq
    %v3158 = vshrl.u32 %v3157, 7
    %v3159 = vsub.s32 %v3156, %v3158
    %v3160 = vrot.slane %v3153, %v3159
    %v3162 = vunpack.c.l.s4 1966171168
    %v3163 = vunpack.c.0.s8 %v3162
    %v3164 = vlaneseq
    %v3165 = vshrl.u32 %v3164, 7
    %v3166 = vsub.s32 %v3163, %v3165
    %v3167 = vrot.slane %v3160, %v3166
    %v3169 = vmul.f32 %v2766, %v3167
    %v3171 = vlaneseq
    %v3172 = vshrl.u32 %v3171, 7
    %v3173 = vsub.s32 0, %v3172
    %v3174 = vrot.slane %v3169, %v3173
    %v3175 = vlaneseq
    %v3176 = vshrl.u32 %v3175, 7
    %v3177 = vsub.s32 1, %v3176
    %v3178 = vrot.slane %v3169, %v3177
    %v3181 = vmul.f32 %v3123, %v3174
    %v3182 = vmul.f32 %v3124, %v3178
    %v3185 = vcombine.low %v3181, %v3182
    %v3187 = vunpack.c.l.s4 1966171168
    %v3188 = vunpack.c.0.s8 %v3187
    %v3189 = vlaneseq
    %v3190 = vshrl.u32 %v3189, 7
    %v3191 = vsub.s32 %v3188, %v3190
    %v3192 = vrot.slane %v3185, %v3191
    %v3194 = vunpack.c.l.s4 1966171168
    %v3195 = vunpack.c.0.s8 %v3194
    %v3196 = vlaneseq
    %v3197 = vshrl.u32 %v3196, 7
    %v3198 = vsub.s32 %v3195, %v3197
    %v3199 = vrot.slane %v3192, %v3198
    %v3201 = vsub.f32 %v2768, %v3199
    %v3202 = vmul.f32 %v3109, %v3174
    %v3203 = vmul.f32 %v3110, %v3178
    %v3205 = vlaneseq
    %v3206 = vshrl.u32 %v3205, 7
    %v3207 = vsub.s32 0, %v3206
    %v3208 = vrot.slane %v3201, %v3207
    %v3209 = vlaneseq
    %v3210 = vshrl.u32 %v3209, 7
    %v3211 = vsub.s32 1, %v3210
    %v3212 = vrot.slane %v3201, %v3211
    %v3215 = vadd.f32 %v3202, %v3208
    %v3216 = vadd.f32 %v3203, %v3212
    %v3217 = vld [vmem:[#allocation2 + $0xc00] sm:$0xf]
    %v3218 = vld [vmem:[#allocation2 + $0xc10] sm:$0xf]
    %v3219 = vld [vmem:[#allocation2 + $0xc20] sm:$0xf]
    %v3220 = vld [vmem:[#allocation2 + $0xc30] sm:$0xf]
    %v3221 = vld [vmem:[#allocation2 + $0xc40] sm:$0xf]
    %v3222 = vld [vmem:[#allocation2 + $0xc50] sm:$0xf]
    %v3223 = vld [vmem:[#allocation2 + $0xc60] sm:$0xf]
    %v3224 = vld [vmem:[#allocation2 + $0xc70] sm:$0xf]
    %v3225 = vld [vmem:[#allocation2 + $0xc80] sm:$0xf]
    %v3226 = vld [vmem:[#allocation2 + $0xc90] sm:$0xf]
    %v3227 = vld [vmem:[#allocation2 + $0xca0] sm:$0xf]
    %v3228 = vld [vmem:[#allocation2 + $0xcb0] sm:$0xf]
    %v3229 = vld [vmem:[#allocation2 + $0xcc0] sm:$0xf]
    %v3230 = vld [vmem:[#allocation2 + $0xcd0] sm:$0xf]
    %v3231 = vld [vmem:[#allocation2 + $0xce0] sm:$0xf]
    %v3232 = vld [vmem:[#allocation2 + $0xcf0] sm:$0xf]
    %v3233 = vld [vmem:[#allocation2 + $0xd00] sm:$0xf]
    %v3234 = vld [vmem:[#allocation2 + $0xd10] sm:$0xf]
    %v3235 = vld [vmem:[#allocation2 + $0xd20] sm:$0xf]
    %v3236 = vld [vmem:[#allocation2 + $0xd30] sm:$0xf]
    %v3237 = vld [vmem:[#allocation2 + $0xd40] sm:$0xf]
    %v3238 = vld [vmem:[#allocation2 + $0xd50] sm:$0xf]
    %v3239 = vld [vmem:[#allocation2 + $0xd60] sm:$0xf]
    %v3240 = vld [vmem:[#allocation2 + $0xd70] sm:$0xf]
    %v3241 = vld [vmem:[#allocation2 + $0xd80] sm:$0xf]
    %v3242 = vld [vmem:[#allocation2 + $0xd90] sm:$0xf]
    %v3243 = vld [vmem:[#allocation2 + $0xda0] sm:$0xf]
    %v3244 = vld [vmem:[#allocation2 + $0xdb0] sm:$0xf]
    %v3245 = vld [vmem:[#allocation2 + $0xdc0] sm:$0xf]
    %v3246 = vld [vmem:[#allocation2 + $0xdd0] sm:$0xf]
    %v3247 = vld [vmem:[#allocation2 + $0xde0] sm:$0xf]
    %v3248 = vld [vmem:[#allocation2 + $0xdf0] sm:$0xf]
    %v3249 = vld [vmem:[#allocation5 + $0x24] ss:$0 sm:$0xff]
    %v3250 = vld [vmem:[#allocation5 + $0x25] ss:$0 sm:$0xff]
    %v3251 = vld [vmem:[#allocation5 + $0x26] ss:$0 sm:$0xff]
    %v3252 = vpack.c.bf16 %v3215, %v3215
    %v3253 = vpack.c.bf16 %v3216, %v3216
    %v3286 = vunpack.c.l.b16 %v3217
    %v3287 = vunpack.c.l.b16 %v3218
    %v3288 = vunpack.c.l.b16 %v3219
    %v3289 = vunpack.c.l.b16 %v3220
    %v3290 = vunpack.c.l.b16 %v3221
    %v3291 = vunpack.c.l.b16 %v3222
    %v3292 = vunpack.c.l.b16 %v3223
    %v3293 = vunpack.c.l.b16 %v3224
    %v3294 = vunpack.c.l.b16 %v3225
    %v3295 = vunpack.c.l.b16 %v3226
    %v3296 = vunpack.c.l.b16 %v3227
    %v3297 = vunpack.c.l.b16 %v3228
    %v3298 = vunpack.c.l.b16 %v3229
    %v3299 = vunpack.c.l.b16 %v3230
    %v3300 = vunpack.c.l.b16 %v3231
    %v3301 = vunpack.c.l.b16 %v3232
    %v3302 = vunpack.c.l.b16 %v3233
    %v3303 = vunpack.c.l.b16 %v3234
    %v3304 = vunpack.c.l.b16 %v3235
    %v3305 = vunpack.c.l.b16 %v3236
    %v3306 = vunpack.c.l.b16 %v3237
    %v3307 = vunpack.c.l.b16 %v3238
    %v3308 = vunpack.c.l.b16 %v3239
    %v3309 = vunpack.c.l.b16 %v3240
    %v3310 = vunpack.c.l.b16 %v3241
    %v3311 = vunpack.c.l.b16 %v3242
    %v3312 = vunpack.c.l.b16 %v3243
    %v3313 = vunpack.c.l.b16 %v3244
    %v3314 = vunpack.c.l.b16 %v3245
    %v3315 = vunpack.c.l.b16 %v3246
    %v3316 = vunpack.c.l.b16 %v3247
    %v3317 = vunpack.c.l.b16 %v3248
    %v3318 = vpack.c.b16 %v3287, %v3286
    %v3319 = vpack.c.b16 %v3289, %v3288
    %v3320 = vpack.c.b16 %v3291, %v3290
    %v3321 = vpack.c.b16 %v3293, %v3292
    %v3322 = vpack.c.b16 %v3295, %v3294
    %v3323 = vpack.c.b16 %v3297, %v3296
    %v3324 = vpack.c.b16 %v3299, %v3298
    %v3325 = vpack.c.b16 %v3301, %v3300
    %v3326 = vpack.c.b16 %v3303, %v3302
    %v3327 = vpack.c.b16 %v3305, %v3304
    %v3328 = vpack.c.b16 %v3307, %v3306
    %v3329 = vpack.c.b16 %v3309, %v3308
    %v3330 = vpack.c.b16 %v3311, %v3310
    %v3331 = vpack.c.b16 %v3313, %v3312
    %v3332 = vpack.c.b16 %v3315, %v3314
    %v3333 = vpack.c.b16 %v3317, %v3316
    %3350 = vmatprep.subr.bf16.mxu0 0
    %3351 = vmatpush1.bf16.msra.mxu0 %v3318
    %3352 = vmatprep.subr.bf16.mxu0 0
    %3353 = vmatpush1.bf16.msra.mxu0 %v3319
    %3354 = vmatprep.subr.bf16.mxu0 0
    %3355 = vmatpush1.bf16.msra.mxu0 %v3320
    %3356 = vmatprep.subr.bf16.mxu0 0
    %3357 = vmatpush1.bf16.msra.mxu0 %v3321
    %3358 = vmatprep.subr.bf16.mxu0 0
    %3359 = vmatpush1.bf16.msra.mxu0 %v3322
    %3360 = vmatprep.subr.bf16.mxu0 0
    %3361 = vmatpush1.bf16.msra.mxu0 %v3323
    %3362 = vmatprep.subr.bf16.mxu0 0
    %3363 = vmatpush1.bf16.msra.mxu0 %v3324
    %3364 = vmatprep.subr.bf16.mxu0 0
    %3365 = vmatpush1.bf16.msra.mxu0 %v3325
    %3366 = vmatprep.subr.bf16.mxu0 0
    %3367 = vmatpush1.bf16.msra.mxu0 %v3326
    %3368 = vmatprep.subr.bf16.mxu0 0
    %3369 = vmatpush1.bf16.msra.mxu0 %v3327
    %3370 = vmatprep.subr.bf16.mxu0 0
    %3371 = vmatpush1.bf16.msra.mxu0 %v3328
    %3372 = vmatprep.subr.bf16.mxu0 0
    %3373 = vmatpush1.bf16.msra.mxu0 %v3329
    %3374 = vmatprep.subr.bf16.mxu0 0
    %3375 = vmatpush1.bf16.msra.mxu0 %v3330
    %3376 = vmatprep.subr.bf16.mxu0 0
    %3377 = vmatpush1.bf16.msra.mxu0 %v3331
    %3378 = vmatprep.subr.bf16.mxu0 0
    %3379 = vmatpush1.bf16.msra.mxu0 %v3332
    %3380 = vmatprep.subr.bf16.mxu0 0
    %3381 = vmatpush1.bf16.msra.mxu0 %v3333
    %3382 = vmatprep.mubr.bf16.mxu0 %v3253
    %3383 = vmatmul.mubr.bf16.gmra.mrb[0].mxu0 %v3252
    %v3384 = vpop.f32.mrb[0].mxu0
    %v3385 = vadd.f32 %v3249, %v3384
    %v3386 = vpop.f32.mrb[0].mxu0
    %v3387 = vpop.f32.mrb[0].mxu0
    %v3388 = vpop.f32.mrb[0].mxu0
    %3389 = vdwg.mxu0
    %vm3390 = vcmp.gt.f32.partialorder %v3385, 0.0
    %v3391 = vmul.f32 %v3385, 0.01
    %v3392 = vsel %vm3390, %v3385, %v3391
    %v3393 = vrot.slane %v3392, 4
    %v3394 = vadd.f32 %v3392, %v3393
    %v3395 = vrot.slane %v3394, 2
    %v3396 = vadd.f32 %v3394, %v3395
    %v3397 = vrot.slane %v3396, 1
    %v3398 = vadd.f32 %v3396, %v3397
    %v3399 = vmul.f32 %v3398, 0.125
    %v3400 = vmul.f32 %v3392, %v3392
    %v3401 = vrot.slane %v3400, 4
    %v3402 = vadd.f32 %v3400, %v3401
    %v3403 = vrot.slane %v3402, 2
    %v3404 = vadd.f32 %v3402, %v3403
    %v3405 = vrot.slane %v3404, 1
    %v3406 = vadd.f32 %v3404, %v3405
    %v3407 = vmul.f32 %v3406, 0.125
    %v3408 = vmul.f32 %v3399, %v3399
    %v3409 = vsub.f32 %v3407, %v3408
    %v3410 = vmax.f32 %v3409, 0.0
    %v3411 = vadd.f32 %v3410, 1e-05
    %v3412 = vrsqrt.pop %v3411
    %v3413 = vmul.f32 %v3250, %v3412
    %v3414 = vmul.f32 %v3399, %v3413
    %v3415 = vsub.f32 %v3251, %v3414
    %v3416 = vmul.f32 %v3392, %v3413
    %v3417 = vadd.f32 %v3416, %v3415
    %v3418 = vld [vmem:[#allocation2 + $0xe00] sm:$0xf]
    %v3419 = vld [vmem:[#allocation2 + $0xe10] sm:$0xf]
    %v3420 = vld [vmem:[#allocation2 + $0xe20] sm:$0xf]
    %v3421 = vld [vmem:[#allocation2 + $0xe30] sm:$0xf]
    %v3422 = vld [vmem:[#allocation2 + $0xe40] sm:$0xf]
    %v3423 = vld [vmem:[#allocation2 + $0xe50] sm:$0xf]
    %v3424 = vld [vmem:[#allocation2 + $0xe60] sm:$0xf]
    %v3425 = vld [vmem:[#allocation2 + $0xe70] sm:$0xf]
    %v3426 = vld [vmem:[#allocation2 + $0xe80] sm:$0xf]
    %v3427 = vld [vmem:[#allocation2 + $0xe90] sm:$0xf]
    %v3428 = vld [vmem:[#allocation2 + $0xea0] sm:$0xf]
    %v3429 = vld [vmem:[#allocation2 + $0xeb0] sm:$0xf]
    %v3430 = vld [vmem:[#allocation2 + $0xec0] sm:$0xf]
    %v3431 = vld [vmem:[#allocation2 + $0xed0] sm:$0xf]
    %v3432 = vld [vmem:[#allocation2 + $0xee0] sm:$0xf]
    %v3433 = vld [vmem:[#allocation2 + $0xef0] sm:$0xf]
    %v3434 = vld [vmem:[#allocation5 + $0x27] ss:$0 sm:$0xff]
    %v3435 = vld [vmem:[#allocation5 + $0x40] ss:$0 sm:$0xff]
    %v3436 = vld [vmem:[#allocation5 + $0x41] ss:$0 sm:$0xff]
    %v3437 = vpack.c.bf16 %v3417, %v3417
    %v3454 = vunpack.c.l.b16 %v3418
    %v3455 = vunpack.c.l.b16 %v3419
    %v3456 = vunpack.c.l.b16 %v3420
    %v3457 = vunpack.c.l.b16 %v3421
    %v3458 = vunpack.c.l.b16 %v3422
    %v3459 = vunpack.c.l.b16 %v3423
    %v3460 = vunpack.c.l.b16 %v3424
    %v3461 = vunpack.c.l.b16 %v3425
    %v3462 = vunpack.c.l.b16 %v3426
    %v3463 = vunpack.c.l.b16 %v3427
    %v3464 = vunpack.c.l.b16 %v3428
    %v3465 = vunpack.c.l.b16 %v3429
    %v3466 = vunpack.c.l.b16 %v3430
    %v3467 = vunpack.c.l.b16 %v3431
    %v3468 = vunpack.c.l.b16 %v3432
    %v3469 = vunpack.c.l.b16 %v3433
    %v3470 = vpack.c.b16 %v3455, %v3454
    %v3471 = vpack.c.b16 %v3457, %v3456
    %v3472 = vpack.c.b16 %v3459, %v3458
    %v3473 = vpack.c.b16 %v3461, %v3460
    %v3474 = vpack.c.b16 %v3463, %v3462
    %v3475 = vpack.c.b16 %v3465, %v3464
    %v3476 = vpack.c.b16 %v3467, %v3466
    %v3477 = vpack.c.b16 %v3469, %v3468
    %3486 = vmatprep.subr.bf16.mxu0 0
    %3487 = vmatpush1.bf16.msra.mxu0 %v3470
    %3488 = vmatprep.subr.bf16.mxu0 0
    %3489 = vmatpush1.bf16.msra.mxu0 %v3471
    %3490 = vmatprep.subr.bf16.mxu0 0
    %3491 = vmatpush1.bf16.msra.mxu0 %v3472
    %3492 = vmatprep.subr.bf16.mxu0 0
    %3493 = vmatpush1.bf16.msra.mxu0 %v3473
    %3494 = vmatprep.subr.bf16.mxu0 0
    %3495 = vmatpush1.bf16.msra.mxu0 %v3474
    %3496 = vmatprep.subr.bf16.mxu0 0
    %3497 = vmatpush1.bf16.msra.mxu0 %v3475
    %3498 = vmatprep.subr.bf16.mxu0 0
    %3499 = vmatpush1.bf16.msra.mxu0 %v3476
    %3500 = vmatprep.subr.bf16.mxu0 0
    %3501 = vmatpush1.bf16.msra.mxu0 %v3477
    %3502 = vmatprep.subr.bf16.mxu0 0
    %3503 = vmatpush1.bf16.msra.mxu0 0
    %3504 = vmatprep.subr.bf16.mxu0 0
    %3505 = vmatpush1.bf16.msra.mxu0 0
    %3506 = vmatprep.subr.bf16.mxu0 0
    %3507 = vmatpush1.bf16.msra.mxu0 0
    %3508 = vmatprep.subr.bf16.mxu0 0
    %3509 = vmatpush1.bf16.msra.mxu0 0
    %3510 = vmatprep.subr.bf16.mxu0 0
    %3511 = vmatpush1.bf16.msra.mxu0 0
    %3512 = vmatprep.subr.bf16.mxu0 0
    %3513 = vmatpush1.bf16.msra.mxu0 0
    %3514 = vmatprep.subr.bf16.mxu0 0
    %3515 = vmatpush1.bf16.msra.mxu0 0
    %3516 = vmatprep.subr.bf16.mxu0 0
    %3517 = vmatpush1.bf16.msra.mxu0 0
    %3518 = vmatprep.mubr.bf16.mxu0 0
    %3519 = vmatmul.mubr.bf16.gmra.mrb[0].mxu0 %v3437
    %v3520 = vpop.f32.mrb[0].mxu0
    %v3521 = vadd.f32 %v3434, %v3520
    %v3522 = vpop.f32.mrb[0].mxu0
    %v3523 = vpop.f32.mrb[0].mxu0
    %v3524 = vpop.f32.mrb[0].mxu0
    %3525 = vdwg.mxu0
    %vm3526 = vcmp.gt.f32.partialorder %v3521, 0.0
    %v3527 = vmul.f32 %v3521, 0.01
    %v3528 = vsel %vm3526, %v3521, %v3527
    %v3529 = vrot.slane %v3528, 4
    %v3530 = vadd.f32 %v3528, %v3529
    %v3531 = vrot.slane %v3530, 2
    %v3532 = vadd.f32 %v3530, %v3531
    %v3533 = vrot.slane %v3532, 1
    %v3534 = vadd.f32 %v3532, %v3533
    %v3535 = vmul.f32 %v3534, 0.125
    %v3536 = vmul.f32 %v3528, %v3528
    %v3537 = vrot.slane %v3536, 4
    %v3538 = vadd.f32 %v3536, %v3537
    %v3539 = vrot.slane %v3538, 2
    %v3540 = vadd.f32 %v3538, %v3539
    %v3541 = vrot.slane %v3540, 1
    %v3542 = vadd.f32 %v3540, %v3541
    %v3543 = vmul.f32 %v3542, 0.125
    %v3544 = vmul.f32 %v3535, %v3535
    %v3545 = vsub.f32 %v3543, %v3544
    %v3546 = vmax.f32 %v3545, 0.0
    %v3547 = vadd.f32 %v3546, 1e-05
    %v3548 = vrsqrt.pop %v3547
    %v3549 = vmul.f32 %v3435, %v3548
    %v3550 = vmul.f32 %v3535, %v3549
    %v3551 = vsub.f32 %v3436, %v3550
    %v3552 = vmul.f32 %v3528, %v3549
    %v3553 = vadd.f32 %v3552, %v3551
    %v3554 = vld [vmem:[#allocation2 + $0xf00] sm:$0xf]
    %v3555 = vld [vmem:[#allocation2 + $0xf10] sm:$0xf]
    %v3556 = vld [vmem:[#allocation2 + $0xf20] sm:$0xf]
    %v3557 = vld [vmem:[#allocation2 + $0xf30] sm:$0xf]
    %v3558 = vld [vmem:[#allocation2 + $0xf40] sm:$0xf]
    %v3559 = vld [vmem:[#allocation2 + $0xf50] sm:$0xf]
    %v3560 = vld [vmem:[#allocation2 + $0xf60] sm:$0xf]
    %v3561 = vld [vmem:[#allocation2 + $0xf70] sm:$0xf]
    %v3562 = vld [vmem:[#allocation2 + $0xf80] sm:$0xf]
    %v3563 = vld [vmem:[#allocation2 + $0xf90] sm:$0xf]
    %v3564 = vld [vmem:[#allocation2 + $0xfa0] sm:$0xf]
    %v3565 = vld [vmem:[#allocation2 + $0xfb0] sm:$0xf]
    %v3566 = vld [vmem:[#allocation2 + $0xfc0] sm:$0xf]
    %v3567 = vld [vmem:[#allocation2 + $0xfd0] sm:$0xf]
    %v3568 = vld [vmem:[#allocation2 + $0xfe0] sm:$0xf]
    %v3569 = vld [vmem:[#allocation2 + $0xff0] sm:$0xf]
    %v3570 = vld [vmem:[#allocation5 + $0x42] ss:$0 sm:$0xff]
    %v3571 = vpack.c.bf16 %v3553, %v3553
    %v3588 = vunpack.c.l.b16 %v3554
    %v3589 = vunpack.c.l.b16 %v3555
    %v3590 = vunpack.c.l.b16 %v3556
    %v3591 = vunpack.c.l.b16 %v3557
    %v3592 = vunpack.c.l.b16 %v3558
    %v3593 = vunpack.c.l.b16 %v3559
    %v3594 = vunpack.c.l.b16 %v3560
    %v3595 = vunpack.c.l.b16 %v3561
    %v3596 = vunpack.c.l.b16 %v3562
    %v3597 = vunpack.c.l.b16 %v3563
    %v3598 = vunpack.c.l.b16 %v3564
    %v3599 = vunpack.c.l.b16 %v3565
    %v3600 = vunpack.c.l.b16 %v3566
    %v3601 = vunpack.c.l.b16 %v3567
    %v3602 = vunpack.c.l.b16 %v3568
    %v3603 = vunpack.c.l.b16 %v3569
    %v3604 = vpack.c.b16 %v3589, %v3588
    %v3605 = vpack.c.b16 %v3591, %v3590
    %v3606 = vpack.c.b16 %v3593, %v3592
    %v3607 = vpack.c.b16 %v3595, %v3594
    %v3608 = vpack.c.b16 %v3597, %v3596
    %v3609 = vpack.c.b16 %v3599, %v3598
    %v3610 = vpack.c.b16 %v3601, %v3600
    %v3611 = vpack.c.b16 %v3603, %v3602
    %3620 = vmatprep.subr.bf16.mxu0 0
    %3621 = vmatpush1.bf16.msra.mxu0 %v3604
    %3622 = vmatprep.subr.bf16.mxu0 0
    %3623 = vmatpush1.bf16.msra.mxu0 %v3605
    %3624 = vmatprep.subr.bf16.mxu0 0
    %3625 = vmatpush1.bf16.msra.mxu0 %v3606
    %3626 = vmatprep.subr.bf16.mxu0 0
    %3627 = vmatpush1.bf16.msra.mxu0 %v3607
    %3628 = vmatprep.subr.bf16.mxu0 0
    %3629 = vmatpush1.bf16.msra.mxu0 %v3608
    %3630 = vmatprep.subr.bf16.mxu0 0
    %3631 = vmatpush1.bf16.msra.mxu0 %v3609
    %3632 = vmatprep.subr.bf16.mxu0 0
    %3633 = vmatpush1.bf16.msra.mxu0 %v3610
    %3634 = vmatprep.subr.bf16.mxu0 0
    %3635 = vmatpush1.bf16.msra.mxu0 %v3611
    %3636 = vmatprep.subr.bf16.mxu0 0
    %3637 = vmatpush1.bf16.msra.mxu0 0
    %3638 = vmatprep.subr.bf16.mxu0 0
    %3639 = vmatpush1.bf16.msra.mxu0 0
    %3640 = vmatprep.subr.bf16.mxu0 0
    %3641 = vmatpush1.bf16.msra.mxu0 0
    %3642 = vmatprep.subr.bf16.mxu0 0
    %3643 = vmatpush1.bf16.msra.mxu0 0
    %3644 = vmatprep.subr.bf16.mxu0 0
    %3645 = vmatpush1.bf16.msra.mxu0 0
    %3646 = vmatprep.subr.bf16.mxu0 0
    %3647 = vmatpush1.bf16.msra.mxu0 0
    %3648 = vmatprep.subr.bf16.mxu0 0
    %3649 = vmatpush1.bf16.msra.mxu0 0
    %3650 = vmatprep.subr.bf16.mxu0 0
    %3651 = vmatpush1.bf16.msra.mxu0 0
    %3652 = vmatprep.mubr.bf16.mxu0 0
    %3653 = vmatmul.mubr.bf16.gmra.mrb[0].mxu0 %v3571
    %v3654 = vpop.f32.mrb[0].mxu0
    %v3655 = vadd.f32 %v3570, %v3654
    %v3656 = vpop.f32.mrb[0].mxu0
    %v3657 = vpop.f32.mrb[0].mxu0
    %v3658 = vpop.f32.mrb[0].mxu0
    %3659 = vdwg.mxu0
    %3660 = vmax.xlane.f32.xlu0 %v3655
    %v3661 = vpop.xlane.xlu0 %3660
    %v3662 = vsub.f32 %v3655, %v3661
    %v3663 = vmul.f32 %v3662, 1.442695
    %v3664 = vpow.pop %v3663
    %3665 = vadd.xlane.f32.xlu0 %v3664
    %v3666 = vpop.xlane.xlu0 %3665
    %v3667 = vlog2.pop %v3666
    %v3668 = vmul.f32 %v3667, 0.6931472
    %v3669 = vadd.f32 %v3668, %v3661
    %v3670 = vsub.f32 %v3655, %v3669
    %3671 = vst [vmem:[#allocation7] sm:$0xff] %v3670
    // Predicated region
    $region22: #{image_classifier_forward.1} parent=1 // pred_check
      _
    $region23: #{image_classifier_forward.1} parent=1 // pred_check_branch
      %3673 = sbr.rel (0) target = $region25
    $region24: #{image_classifier_forward.1} parent=1 // pred_region
      %s3675 = ssub.s32 128, 128
      %3676 = vsyncadd [#allocation4], %s3675
      %s3678 = sshll.u32 [#allocation7], 4
      %s3679 = int_to_ptr.vmem [resolvable:$true] %s3678
      %3681 = dma.vmem_to_hbm [thread:$0]  %s3679, 128, %s3, [#allocation4]
    $region25: #{image_classifier_forward.1} parent=1 // pred_fallthru
      _
    // Predicated region
    $region26: #{image_classifier_forward.1} parent=1 // pred_check
      _
    $region27: #{image_classifier_forward.1} parent=1 // pred_check_branch
      %3683 = sbr.rel (0) target = $region29
    $region28: #{image_classifier_forward.1} parent=1 // pred_region
      %3684 = dma.done [#allocation4], 128
    $region29: #{image_classifier_forward.1} parent=1 // pred_fallthru
      _
    %3685 = vsyncpa [#allocation3], 1
    %3686 = vsyncpa [#allocation6], 1
    %3687 = vsyncpa [#allocation4], 1

</llo_original>
